<compile_context>
chip_gen: v7x
topology: tpu7x:2x2x1
jax: 0.10.0
libtpu: 0.0.40
codegen_flags: <defaults>
</compile_context>

<pallas_src>
import functools
import math

import jax
import jax.numpy as jnp
from jax.experimental import pallas as pl
from jax.experimental.pallas import tpu as pltpu


# ----------------------------------------------------------------------------- config

class Cfg:
    B = 2
    T_cur = 4          # chunk_frames
    T_prev = 2         # prev_frames
    C, H, W = 1, 16, 16
    Dz = 32            # dim_latent
    hidden = 64        # dim_hidden
    depth = 2
    heads = 2
    mlp_ratio = 2
    num_class = 4
    attn_window = 3
    p_uncond = 0.1
    seed = 0


# ----------------------------------------------------------------------------- fused Pallas kernel

def _fused_fmt_loss_kernel(
    # activations / conditioning inputs
    x_ref, zn_ref, t_ref, cond_in_ref,
    # embedding weights
    vae_w_ref, vae_b_ref, cond_w_ref, cond_b_ref, in_w_ref, in_b_ref, pos_ref,
    # stacked transformer-block weights (leading dim = depth)
    ln1_g_ref, ln1_b_ref, qkv_w_ref, qkv_b_ref, proj_w_ref, proj_b_ref,
    ln2_g_ref, ln2_b_ref, mlp_w1_ref, mlp_b1_ref, mlp_w2_ref, mlp_b2_ref,
    # head
    lnf_g_ref, lnf_b_ref, out_w_ref, out_b_ref,
    # output (SMEM scalar)
    loss_ref,
    *, cfg, beta, gamma,
):
    B, D, Dz = cfg.B, cfg.hidden, cfg.Dz
    Tp, Tc = cfg.T_prev, cfg.T_cur
    S = Tp + Tc
    N = B * S
    heads = cfg.heads
    dh = D // heads
    scale = 1.0 / math.sqrt(dh)
    f32, bf16 = jnp.float32, jnp.bfloat16

    def mm(a, w_bf16):
        # activation cast to bf16 (tiny), weight already bf16, f32 accumulation on the MXU
        return jnp.dot(a.astype(bf16), w_bf16, preferred_element_type=f32)

    def ln(x, g, b):
        mu = jnp.mean(x, axis=-1, keepdims=True)
        var = jnp.mean((x - mu) ** 2, axis=-1, keepdims=True)
        return (x - mu) * jax.lax.rsqrt(var + 1e-5) * g + b

    # ---- per-row helpers (built once): sequence index, current-chunk mask, per-row t ----------
    row = jax.lax.broadcasted_iota(jnp.int32, (N, Dz), 0)          # rows ordered b-major, s-minor
    s_idx = row
    t_full = jnp.zeros((N, Dz), f32) + t_ref[0]                    # t broadcast from SMEM scalars
    for b in range(1, B):
        s_idx = jnp.where(row >= b * S, row - b * S, s_idx)
        t_full = jnp.where(row >= b * S, t_ref[b], t_full)
    is_cur = s_idx >= Tp                                           # True on current-chunk rows

    # ---- VAE encode: prev + current frames in one matmul ---------------------------------------
    # TODO(synk): the VAE class is not in the provided source; encode_frames is approximated by
    # a per-frame linear projection (C*H*W -> Dz).
    z_all = mm(x_ref[...], vae_w_ref[...]) + vae_b_ref[...]        # (N, Dz)

    # ---- flow-matching interpolation (mask-select, no sublane concat/slice) --------------------
    zn = zn_ref[...]                                               # (N, Dz), zeros on prev rows
    z_tok = jnp.where(is_cur, (1.0 - t_full) * zn + t_full * z_all, z_all)
    v_target = z_all - zn                                          # only current rows enter loss

    # ---- conditioning: single fused matmul (time features + keep-masked class one-hot) ---------
    cond = mm(cond_in_ref[...], cond_w_ref[...]) + cond_b_ref[...]   # (B, D)

    # ---- token embedding + positional + conditioning -------------------------------------------
    x3 = (mm(z_tok, in_w_ref[...]) + in_b_ref[...]).reshape(B, S, D)
    x3 = x3 + pos_ref[...][None, :, :] + cond[:, None, :]
    x2 = x3.reshape(N, D)                                          # persistent 2-D residual stream

    # ---- attention masks, built once and reused across layers ----------------------------------
    qi = jax.lax.broadcasted_iota(jnp.int32, (S, S), 0)
    ki = jax.lax.broadcasted_iota(jnp.int32, (S, S), 1)
    neg = jnp.where(jnp.abs(qi - ki) <= cfg.attn_window, 0.0, -1e30).astype(f32)
    lane = jax.lax.broadcasted_iota(jnp.int32, (S, D), 1)
    head_masks = [
        jnp.logical_and(lane >= hh * dh, lane < (hh + 1) * dh).astype(f32)[None, :, :]
        for hh in range(heads)
    ]                                                              # each (1, S, D)

    # ---- transformer blocks (depth=2 -> static unroll) ------------------------------------------
    # TODO(synk): FlowMatchingTransformer internals are not in the provided source; a standard
    # pre-LN transformer with additive time/class conditioning and a windowed attention is used.
    for d in range(cfg.depth):
        h = ln(x2, ln1_g_ref[d], ln1_b_ref[d])
        qkv = mm(h, qkv_w_ref[d]) + qkv_b_ref[d]                   # (N, 3D), one MXU push
        qkv3 = qkv.reshape(B, S, 3 * D)
        q3 = qkv3[:, :, 0:D] * scale                               # lane offsets 0 / D / 2D
        k3 = qkv3[:, :, D:2 * D].astype(bf16)
        v3 = qkv3[:, :, 2 * D:3 * D].astype(bf16)

        attn3 = jnp.zeros((B, S, D), f32)
        for hh in range(heads):
            # head split via lane masks: no 32-lane slices, no lane-axis concat
            qh = (q3 * head_masks[hh]).astype(bf16)
            s = jnp.einsum("bqd,bkd->bqk", qh, k3, preferred_element_type=f32)
            s = s + neg[None, :, :]
            s = s - jnp.max(s, axis=-1, keepdims=True)
            p = jnp.exp(s)
            p = p * pl.reciprocal(jnp.sum(p, axis=-1, keepdims=True), approx=True)
            o = jnp.einsum("bqk,bkd->bqd", p.astype(bf16), v3, preferred_element_type=f32)
            attn3 = attn3 + o * head_masks[hh]                     # keeps head-hh lanes only

        x2 = x2 + mm(attn3.reshape(N, D), proj_w_ref[d]) + proj_b_ref[d]

        h2 = ln(x2, ln2_g_ref[d], ln2_b_ref[d])
        m = mm(h2, mlp_w1_ref[d]) + mlp_b1_ref[d]
        # tanh-approx GELU (tanh goes to the EUP slot)
        m = 0.5 * m * (1.0 + jnp.tanh(0.7978845608028654 * (m + 0.044715 * m * m * m)))
        x2 = x2 + mm(m, mlp_w2_ref[d]) + mlp_b2_ref[d]

    # ---- output head on ALL tokens; non-current rows are masked out of the loss ----------------
    xf = ln(x2, lnf_g_ref[...], lnf_b_ref[...])
    v_pred = mm(xf, out_w_ref[...]) + out_b_ref[...]               # (N, Dz)

    # ---- focal MSE (masked mean over current-chunk rows) ----------------------------------------
    # TODO(synk): focal_mse is referenced but not defined in the source file; using the common
    # variant  w = (1 - exp(-beta * err))**gamma,  loss = mean(w * err).
    err = (v_pred - v_target) ** 2
    w = (1.0 - jnp.exp(-beta * err)) ** gamma
    masked = jnp.where(is_cur, w * err, 0.0)
    loss_ref[0, 0] = jnp.sum(masked) / float(B * Tc * Dz)


def fmt_loss_pallas(params, inputs, cfg, beta=10.0, gamma=2.0):
    ordered = [
        inputs["x_flat"], inputs["zn"], inputs["t"], inputs["cond_in"],
        params["vae_w"], params["vae_b"], params["cond_w"], params["cond_b"],
        params["in_w"], params["in_b"], params["pos"],
        params["ln1_g"], params["ln1_b"], params["qkv_w"], params["qkv_b"],
        params["proj_w"], params["proj_b"], params["ln2_g"], params["ln2_b"],
        params["mlp_w1"], params["mlp_b1"], params["mlp_w2"], params["mlp_b2"],
        params["lnf_g"], params["lnf_b"], params["out_w"], params["out_b"],
    ]
    smem_inputs = {2}  # per-batch t scalars live in SMEM; everything else in VMEM
    in_specs = [
        pl.BlockSpec(memory_space=(pltpu.MemorySpace.SMEM if i in smem_inputs
                                   else pltpu.MemorySpace.VMEM))
        for i in range(len(ordered))
    ]
    kern = functools.partial(_fused_fmt_loss_kernel, cfg=cfg, beta=beta, gamma=gamma)
    loss = pl.pallas_call(
        kern,
        in_specs=in_specs,
        out_specs=pl.BlockSpec(memory_space=pltpu.MemorySpace.SMEM),
        out_shape=jax.ShapeDtypeStruct((1, 1), jnp.float32),
    )(*ordered)
    return loss[0, 0]


# ----------------------------------------------------------------------------- parameters

def init_params(cfg):
    key = jax.random.PRNGKey(cfg.seed)

    def nrm(k, shape, scale=0.02, dtype=jnp.float32):
        return (scale * jax.random.normal(k, shape, dtype=jnp.float32)).astype(dtype)

    keys = iter(jax.random.split(key, 32))
    S = cfg.T_prev + cfg.T_cur
    D = cfg.hidden
    Hm = D * cfg.mlp_ratio
    dep = cfg.depth
    bf16 = jnp.bfloat16

    p = {}
    # MXU-feeding weights stored in bf16; biases / LN params / pos stay f32
    p["vae_w"] = nrm(next(keys), (cfg.C * cfg.H * cfg.W, cfg.Dz), dtype=bf16)
    p["vae_b"] = jnp.zeros((1, cfg.Dz), jnp.float32)

    # fused conditioning weight: rows [0:32] time-feature proj, rows [32:36] class embedding
    p["cond_w"] = nrm(next(keys), (32 + cfg.num_class, D), dtype=bf16)
    p["cond_b"] = jnp.zeros((1, D), jnp.float32)

    p["in_w"] = nrm(next(keys), (cfg.Dz, D), dtype=bf16)
    p["in_b"] = jnp.zeros((1, D), jnp.float32)
    p["pos"] = nrm(next(keys), (S, D))

    # per-block weights stacked along a leading depth axis (single fused kernel reads them all)
    p["ln1_g"] = jnp.ones((dep, 1, D), jnp.float32)
    p["ln1_b"] = jnp.zeros((dep, 1, D), jnp.float32)
    p["qkv_w"] = nrm(next(keys), (dep, D, 3 * D), dtype=bf16)
    p["qkv_b"] = jnp.zeros((dep, 1, 3 * D), jnp.float32)
    p["proj_w"] = nrm(next(keys), (dep, D, D), dtype=bf16)
    p["proj_b"] = jnp.zeros((dep, 1, D), jnp.float32)
    p["ln2_g"] = jnp.ones((dep, 1, D), jnp.float32)
    p["ln2_b"] = jnp.zeros((dep, 1, D), jnp.float32)
    p["mlp_w1"] = nrm(next(keys), (dep, D, Hm), dtype=bf16)
    p["mlp_b1"] = jnp.zeros((dep, 1, Hm), jnp.float32)
    p["mlp_w2"] = nrm(next(keys), (dep, Hm, D), dtype=bf16)
    p["mlp_b2"] = jnp.zeros((dep, 1, D), jnp.float32)

    p["lnf_g"] = jnp.ones((1, D), jnp.float32)
    p["lnf_b"] = jnp.zeros((1, D), jnp.float32)
    p["out_w"] = nrm(next(keys), (D, cfg.Dz), dtype=bf16)
    p["out_b"] = jnp.zeros((1, cfg.Dz), jnp.float32)
    return p


# ----------------------------------------------------------------------------- host-side glue

def pad_prev_chunk(prev_chunk, T_prev):
    if prev_chunk is None:
        return None
    B, L, C, H, W = prev_chunk.shape
    if L < T_prev:
        pad = jnp.zeros((B, T_prev - L, C, H, W), prev_chunk.dtype)
        prev_chunk = jnp.concatenate([pad, prev_chunk], axis=1)
    return prev_chunk[:, -T_prev:, ...]


def pad_cur_chunk(cur_chunk, T_cur):
    B, L, C, H, W = cur_chunk.shape
    if L < T_cur:
        pad = jnp.zeros((B, T_cur - L, C, H, W), cur_chunk.dtype)
        cur_chunk = jnp.concatenate([cur_chunk, pad], axis=1)
    return cur_chunk


def timestep_features(t):
    # (B,) -> (B, 32) Fourier features; tiny, done in plain JAX
    half = 16
    freqs = jnp.exp(-math.log(10000.0) * jnp.arange(half, dtype=jnp.float32) / half)
    ang = t[:, None] * freqs[None, :]
    return jnp.concatenate([jnp.sin(ang), jnp.cos(ang)], axis=-1)


def autoregressive_fmt_forward(params, x_clean, c_onehot, x_prev, rng, cfg):
    """Mirrors AutoregressiveFMT.forward: returns the scalar flow-matching loss."""
    B = x_clean.shape[0]
    x_prev = pad_prev_chunk(x_prev, cfg.T_prev)
    x_clean = pad_cur_chunk(x_clean, cfg.T_cur)
    if x_prev is None:
        x_prev = jnp.zeros((B, cfg.T_prev, cfg.C, cfg.H, cfg.W), x_clean.dtype)
    S = cfg.T_prev + cfg.T_cur

    # flatten frames channels-last; prev first, then current (token order in the transformer)
    x_all = jnp.concatenate([x_prev, x_clean], axis=1)                       # (B, S, C, H, W)
    x_flat = x_all.reshape(B * S, cfg.C * cfg.H * cfg.W).astype(jnp.float32)

    k_noise, k_t, k_keep = jax.random.split(rng, 3)
    z_noise = jax.random.normal(k_noise, (B, cfg.T_cur, cfg.Dz), dtype=jnp.float32)
    zn_full = jnp.concatenate(
        [jnp.zeros((B, cfg.T_prev, cfg.Dz), jnp.float32), z_noise], axis=1
    ).reshape(B * S, cfg.Dz)                                                 # zeros on prev rows
    t = jax.random.uniform(k_t, (B,), dtype=jnp.float32)
    keep_mask = (jax.random.uniform(k_keep, (B,)) > cfg.p_uncond).astype(jnp.float32)[:, None]
    # fused conditioning input: [fourier(t), keep_mask * class one-hot]  -> single kernel matmul
    cond_in = jnp.concatenate(
        [timestep_features(t), keep_mask * c_onehot.astype(jnp.float32)], axis=-1)

    inputs = {"x_flat": x_flat, "zn": zn_full, "t": t, "cond_in": cond_in}
    return fmt_loss_pallas(params, inputs, cfg, beta=10.0, gamma=2.0)


# ----------------------------------------------------------------------------- main

if __name__ == "__main__":
    cfg = Cfg()
    params = init_params(cfg)

    key = jax.random.PRNGKey(0)
    k_x, k_p, k_c, k_fwd = jax.random.split(key, 4)

    # current chunk shorter than chunk_frames and prev chunk shorter than prev_frames to
    # exercise both padding helpers.
    x_clean = jax.random.normal(k_x, (cfg.B, 2, cfg.C, cfg.H, cfg.W), dtype=jnp.float32)
    x_prev = jax.random.normal(k_p, (cfg.B, 1, cfg.C, cfg.H, cfg.W), dtype=jnp.float32)
    labels = jax.random.randint(k_c, (cfg.B,), 0, cfg.num_class)
    c_onehot = jax.nn.one_hot(labels, cfg.num_class, dtype=jnp.float32)

    loss = autoregressive_fmt_forward(params, x_clean, c_onehot, x_prev, k_fwd, cfg)
    loss = jax.block_until_ready(loss)
    assert loss.shape == () and jnp.isfinite(loss)
    print("KERNEL_OK")
</pallas_src>

<mosaic_0001>
module attributes {stable_mosaic.version = 11 : i64} {
  func.func @_fused_fmt_loss_kernel(%arg0: memref<12x256xf32, #tpu.memory_space<vmem>>, %arg1: memref<12x32xf32, #tpu.memory_space<vmem>>, %arg2: memref<2xf32, #tpu.memory_space<smem>>, %arg3: memref<2x36xf32, #tpu.memory_space<vmem>>, %arg4: memref<256x32xbf16, #tpu.memory_space<vmem>>, %arg5: memref<1x32xf32, #tpu.memory_space<vmem>>, %arg6: memref<36x64xbf16, #tpu.memory_space<vmem>>, %arg7: memref<1x64xf32, #tpu.memory_space<vmem>>, %arg8: memref<32x64xbf16, #tpu.memory_space<vmem>>, %arg9: memref<1x64xf32, #tpu.memory_space<vmem>>, %arg10: memref<6x64xf32, #tpu.memory_space<vmem>>, %arg11: memref<2x1x64xf32, #tpu.memory_space<vmem>>, %arg12: memref<2x1x64xf32, #tpu.memory_space<vmem>>, %arg13: memref<2x64x192xbf16, #tpu.memory_space<vmem>>, %arg14: memref<2x1x192xf32, #tpu.memory_space<vmem>>, %arg15: memref<2x64x64xbf16, #tpu.memory_space<vmem>>, %arg16: memref<2x1x64xf32, #tpu.memory_space<vmem>>, %arg17: memref<2x1x64xf32, #tpu.memory_space<vmem>>, %arg18: memref<2x1x64xf32, #tpu.memory_space<vmem>>, %arg19: memref<2x64x128xbf16, #tpu.memory_space<vmem>>, %arg20: memref<2x1x128xf32, #tpu.memory_space<vmem>>, %arg21: memref<2x128x64xbf16, #tpu.memory_space<vmem>>, %arg22: memref<2x1x64xf32, #tpu.memory_space<vmem>>, %arg23: memref<1x64xf32, #tpu.memory_space<vmem>>, %arg24: memref<1x64xf32, #tpu.memory_space<vmem>>, %arg25: memref<64x32xbf16, #tpu.memory_space<vmem>>, %arg26: memref<1x32xf32, #tpu.memory_space<vmem>>, %arg27: memref<1x1xf32, #tpu.memory_space<smem>>) attributes {dimension_semantics = [], scalar_prefetch = 0 : i64, scratch_operands = 0 : i64, tpu.core_type = #tpu.core_type<tc>} {
    %0 = tpu.iota {dimensions = array<i32: 0>} : vector<12x32xi32>
    %cst = arith.constant 0.000000e+00 : f32
    %1 = vector.broadcast %cst : f32 to vector<12x32xf32>
    %c0 = arith.constant 0 : index
    %2 = memref.load %arg2[%c0] : memref<2xf32, #tpu.memory_space<smem>>
    %3 = vector.broadcast %2 : f32 to vector<12x32xf32>
    %4 = arith.addf %1, %3 : vector<12x32xf32>
    %c6_i32 = arith.constant 6 : i32
    %5 = vector.broadcast %c6_i32 : i32 to vector<12x32xi32>
    %6 = arith.cmpi sge, %0, %5 : vector<12x32xi32>
    %c6_i32_0 = arith.constant 6 : i32
    %7 = vector.broadcast %c6_i32_0 : i32 to vector<12x32xi32>
    %8 = arith.subi %0, %7 : vector<12x32xi32>
    %9 = arith.select %6, %8, %0 : vector<12x32xi1>, vector<12x32xi32>
    %c6_i32_1 = arith.constant 6 : i32
    %10 = vector.broadcast %c6_i32_1 : i32 to vector<12x32xi32>
    %11 = arith.cmpi sge, %0, %10 : vector<12x32xi32>
    %c1 = arith.constant 1 : index
    %12 = memref.load %arg2[%c1] : memref<2xf32, #tpu.memory_space<smem>>
    %13 = vector.broadcast %12 : f32 to vector<12x32xf32>
    %14 = arith.select %11, %13, %4 : vector<12x32xi1>, vector<12x32xf32>
    %c2_i32 = arith.constant 2 : i32
    %15 = vector.broadcast %c2_i32 : i32 to vector<12x32xi32>
    %16 = arith.cmpi sge, %9, %15 : vector<12x32xi32>
    %c0_2 = arith.constant 0 : index
    %c0_3 = arith.constant 0 : index
    %17 = vector.load %arg0[%c0_2, %c0_3] : memref<12x256xf32, #tpu.memory_space<vmem>>, vector<12x256xf32>
    %c0_4 = arith.constant 0 : index
    %c0_5 = arith.constant 0 : index
    %18 = vector.load %arg4[%c0_4, %c0_5] : memref<256x32xbf16, #tpu.memory_space<vmem>>, vector<256x32xbf16>
    %19 = arith.truncf %17 : vector<12x256xf32> to vector<12x256xbf16>
    %cst_6 = arith.constant dense<0.000000e+00> : vector<12x32xf32>
    %20 = tpu.matmul %19, %18, %cst_6 {dimension_numbers = #tpu.dot_dimension_numbers<[1], [0], [0], [1], [0, 0, 1, 1], [], []>} : vector<12x256xbf16>, vector<256x32xbf16>, vector<12x32xf32> -> vector<12x32xf32>
    %c0_7 = arith.constant 0 : index
    %c0_8 = arith.constant 0 : index
    %21 = vector.load %arg5[%c0_7, %c0_8] : memref<1x32xf32, #tpu.memory_space<vmem>>, vector<1x32xf32>
    %22 = vector.broadcast %21 : vector<1x32xf32> to vector<12x32xf32>
    %23 = arith.addf %20, %22 : vector<12x32xf32>
    %c0_9 = arith.constant 0 : index
    %c0_10 = arith.constant 0 : index
    %24 = vector.load %arg1[%c0_9, %c0_10] : memref<12x32xf32, #tpu.memory_space<vmem>>, vector<12x32xf32>
    %cst_11 = arith.constant 1.000000e+00 : f32
    %25 = vector.broadcast %cst_11 : f32 to vector<12x32xf32>
    %26 = arith.subf %25, %14 : vector<12x32xf32>
    %27 = arith.mulf %26, %24 : vector<12x32xf32>
    %28 = arith.mulf %14, %23 : vector<12x32xf32>
    %29 = arith.addf %27, %28 : vector<12x32xf32>
    %30 = arith.select %16, %29, %23 : vector<12x32xi1>, vector<12x32xf32>
    %31 = arith.subf %23, %24 : vector<12x32xf32>
    %c0_12 = arith.constant 0 : index
    %c0_13 = arith.constant 0 : index
    %32 = vector.load %arg3[%c0_12, %c0_13] : memref<2x36xf32, #tpu.memory_space<vmem>>, vector<2x36xf32>
    %c0_14 = arith.constant 0 : index
    %c0_15 = arith.constant 0 : index
    %33 = vector.load %arg6[%c0_14, %c0_15] : memref<36x64xbf16, #tpu.memory_space<vmem>>, vector<36x64xbf16>
    %34 = arith.truncf %32 : vector<2x36xf32> to vector<2x36xbf16>
    %cst_16 = arith.constant dense<0.000000e+00> : vector<2x64xf32>
    %35 = tpu.matmul %34, %33, %cst_16 {dimension_numbers = #tpu.dot_dimension_numbers<[1], [0], [0], [1], [0, 0, 1, 1], [], []>} : vector<2x36xbf16>, vector<36x64xbf16>, vector<2x64xf32> -> vector<2x64xf32>
    %c0_17 = arith.constant 0 : index
    %c0_18 = arith.constant 0 : index
    %36 = vector.load %arg7[%c0_17, %c0_18] : memref<1x64xf32, #tpu.memory_space<vmem>>, vector<1x64xf32>
    %37 = vector.broadcast %36 : vector<1x64xf32> to vector<2x64xf32>
    %38 = arith.addf %35, %37 : vector<2x64xf32>
    %c0_19 = arith.constant 0 : index
    %c0_20 = arith.constant 0 : index
    %39 = vector.load %arg8[%c0_19, %c0_20] : memref<32x64xbf16, #tpu.memory_space<vmem>>, vector<32x64xbf16>
    %40 = arith.truncf %30 : vector<12x32xf32> to vector<12x32xbf16>
    %cst_21 = arith.constant dense<0.000000e+00> : vector<12x64xf32>
    %41 = tpu.matmul %40, %39, %cst_21 {dimension_numbers = #tpu.dot_dimension_numbers<[1], [0], [0], [1], [0, 0, 1, 1], [], []>} : vector<12x32xbf16>, vector<32x64xbf16>, vector<12x64xf32> -> vector<12x64xf32>
    %c0_22 = arith.constant 0 : index
    %c0_23 = arith.constant 0 : index
    %42 = vector.load %arg9[%c0_22, %c0_23] : memref<1x64xf32, #tpu.memory_space<vmem>>, vector<1x64xf32>
    %43 = vector.broadcast %42 : vector<1x64xf32> to vector<12x64xf32>
    %44 = arith.addf %41, %43 : vector<12x64xf32>
    %45 = vector.shape_cast %44 : vector<12x64xf32> to vector<2x6x64xf32>
    %c0_24 = arith.constant 0 : index
    %c0_25 = arith.constant 0 : index
    %46 = vector.load %arg10[%c0_24, %c0_25] : memref<6x64xf32, #tpu.memory_space<vmem>>, vector<6x64xf32>
    %47 = vector.shape_cast %46 : vector<6x64xf32> to vector<1x6x64xf32>
    %48 = vector.broadcast %47 : vector<1x6x64xf32> to vector<2x6x64xf32>
    %49 = arith.addf %45, %48 : vector<2x6x64xf32>
    %50 = vector.shape_cast %38 : vector<2x64xf32> to vector<2x1x64xf32>
    %51 = vector.broadcast %50 : vector<2x1x64xf32> to vector<2x6x64xf32>
    %52 = arith.addf %49, %51 : vector<2x6x64xf32>
    %53 = vector.shape_cast %52 : vector<2x6x64xf32> to vector<12x64xf32>
    %54 = tpu.iota {dimensions = array<i32: 0>} : vector<6x6xi32>
    %55 = tpu.iota {dimensions = array<i32: 1>} : vector<6x6xi32>
    %56 = arith.subi %54, %55 : vector<6x6xi32>
    %57 = math.absi %56 : vector<6x6xi32>
    %c3_i32 = arith.constant 3 : i32
    %58 = vector.broadcast %c3_i32 : i32 to vector<6x6xi32>
    %59 = arith.cmpi sle, %57, %58 : vector<6x6xi32>
    %cst_26 = arith.constant 0.000000e+00 : f32
    %cst_27 = arith.constant -1.000000e+30 : f32
    %60 = vector.broadcast %cst_26 : f32 to vector<6x6xf32>
    %61 = vector.broadcast %cst_27 : f32 to vector<6x6xf32>
    %62 = arith.select %59, %60, %61 : vector<6x6xi1>, vector<6x6xf32>
    %63 = tpu.iota {dimensions = array<i32: 1>} : vector<6x64xi32>
    %c0_i32 = arith.constant 0 : i32
    %64 = vector.broadcast %c0_i32 : i32 to vector<6x64xi32>
    %65 = arith.cmpi sge, %63, %64 : vector<6x64xi32>
    %c32_i32 = arith.constant 32 : i32
    %66 = vector.broadcast %c32_i32 : i32 to vector<6x64xi32>
    %67 = arith.cmpi slt, %63, %66 : vector<6x64xi32>
    %68 = arith.andi %65, %67 : vector<6x64xi1>
    %69 = arith.extui %68 : vector<6x64xi1> to vector<6x64xi32>
    %70 = arith.sitofp %69 : vector<6x64xi32> to vector<6x64xf32>
    %71 = vector.shape_cast %70 : vector<6x64xf32> to vector<1x6x64xf32>
    %c32_i32_28 = arith.constant 32 : i32
    %72 = vector.broadcast %c32_i32_28 : i32 to vector<6x64xi32>
    %73 = arith.cmpi sge, %63, %72 : vector<6x64xi32>
    %c64_i32 = arith.constant 64 : i32
    %74 = vector.broadcast %c64_i32 : i32 to vector<6x64xi32>
    %75 = arith.cmpi slt, %63, %74 : vector<6x64xi32>
    %76 = arith.andi %73, %75 : vector<6x64xi1>
    %77 = arith.extui %76 : vector<6x64xi1> to vector<6x64xi32>
    %78 = arith.sitofp %77 : vector<6x64xi32> to vector<6x64xf32>
    %79 = vector.shape_cast %78 : vector<6x64xf32> to vector<1x6x64xf32>
    %c0_29 = arith.constant 0 : index
    %c0_30 = arith.constant 0 : index
    %c0_31 = arith.constant 0 : index
    %80 = vector.load %arg11[%c0_29, %c0_30, %c0_31] : memref<2x1x64xf32, #tpu.memory_space<vmem>>, vector<1x1x64xf32>
    %81 = vector.shape_cast %80 : vector<1x1x64xf32> to vector<1x64xf32>
    %c0_32 = arith.constant 0 : index
    %c0_33 = arith.constant 0 : index
    %c0_34 = arith.constant 0 : index
    %82 = vector.load %arg12[%c0_32, %c0_33, %c0_34] : memref<2x1x64xf32, #tpu.memory_space<vmem>>, vector<1x1x64xf32>
    %83 = vector.shape_cast %82 : vector<1x1x64xf32> to vector<1x64xf32>
    %cst_35 = arith.constant dense<0.000000e+00> : vector<12xf32>
    %84 = vector.multi_reduction <add>, %53, %cst_35 [1] : vector<12x64xf32> to vector<12xf32>
    %85 = vector.shape_cast %84 : vector<12xf32> to vector<12x1xf32>
    %cst_36 = arith.constant 6.400000e+01 : f32
    %86 = vector.broadcast %cst_36 : f32 to vector<12x1xf32>
    %87 = arith.divf %85, %86 : vector<12x1xf32>
    %88 = vector.broadcast %87 : vector<12x1xf32> to vector<12x64xf32>
    %89 = arith.subf %53, %88 : vector<12x64xf32>
    %90 = arith.mulf %89, %89 : vector<12x64xf32>
    %cst_37 = arith.constant dense<0.000000e+00> : vector<12xf32>
    %91 = vector.multi_reduction <add>, %90, %cst_37 [1] : vector<12x64xf32> to vector<12xf32>
    %92 = vector.shape_cast %91 : vector<12xf32> to vector<12x1xf32>
    %cst_38 = arith.constant 6.400000e+01 : f32
    %93 = vector.broadcast %cst_38 : f32 to vector<12x1xf32>
    %94 = arith.divf %92, %93 : vector<12x1xf32>
    %95 = vector.broadcast %87 : vector<12x1xf32> to vector<12x64xf32>
    %96 = arith.subf %53, %95 : vector<12x64xf32>
    %cst_39 = arith.constant 9.99999974E-6 : f32
    %97 = vector.broadcast %cst_39 : f32 to vector<12x1xf32>
    %98 = arith.addf %94, %97 : vector<12x1xf32>
    %99 = math.rsqrt %98 : vector<12x1xf32>
    %100 = vector.broadcast %99 : vector<12x1xf32> to vector<12x64xf32>
    %101 = arith.mulf %96, %100 : vector<12x64xf32>
    %102 = vector.broadcast %81 : vector<1x64xf32> to vector<12x64xf32>
    %103 = arith.mulf %101, %102 : vector<12x64xf32>
    %104 = vector.broadcast %83 : vector<1x64xf32> to vector<12x64xf32>
    %105 = arith.addf %103, %104 : vector<12x64xf32>
    %c0_40 = arith.constant 0 : index
    %c0_41 = arith.constant 0 : index
    %c0_42 = arith.constant 0 : index
    %106 = vector.load %arg13[%c0_40, %c0_41, %c0_42] : memref<2x64x192xbf16, #tpu.memory_space<vmem>>, vector<1x64x192xbf16>
    %107 = vector.shape_cast %106 : vector<1x64x192xbf16> to vector<64x192xbf16>
    %108 = arith.truncf %105 : vector<12x64xf32> to vector<12x64xbf16>
    %cst_43 = arith.constant dense<0.000000e+00> : vector<12x192xf32>
    %109 = tpu.matmul %108, %107, %cst_43 {dimension_numbers = #tpu.dot_dimension_numbers<[1], [0], [0], [1], [0, 0, 1, 1], [], []>} : vector<12x64xbf16>, vector<64x192xbf16>, vector<12x192xf32> -> vector<12x192xf32>
    %c0_44 = arith.constant 0 : index
    %c0_45 = arith.constant 0 : index
    %c0_46 = arith.constant 0 : index
    %110 = vector.load %arg14[%c0_44, %c0_45, %c0_46] : memref<2x1x192xf32, #tpu.memory_space<vmem>>, vector<1x1x192xf32>
    %111 = vector.shape_cast %110 : vector<1x1x192xf32> to vector<1x192xf32>
    %112 = vector.broadcast %111 : vector<1x192xf32> to vector<12x192xf32>
    %113 = arith.addf %109, %112 : vector<12x192xf32>
    %114 = vector.shape_cast %113 : vector<12x192xf32> to vector<2x6x192xf32>
    %115 = vector.extract_strided_slice %114 {offsets = [0, 0, 0], sizes = [2, 6, 64], strides = [1, 1, 1]} : vector<2x6x192xf32> to vector<2x6x64xf32>
    %cst_47 = arith.constant 0.176776692 : f32
    %116 = vector.broadcast %cst_47 : f32 to vector<2x6x64xf32>
    %117 = arith.mulf %115, %116 : vector<2x6x64xf32>
    %118 = vector.extract_strided_slice %114 {offsets = [0, 0, 64], sizes = [2, 6, 64], strides = [1, 1, 1]} : vector<2x6x192xf32> to vector<2x6x64xf32>
    %119 = arith.truncf %118 : vector<2x6x64xf32> to vector<2x6x64xbf16>
    %120 = vector.extract_strided_slice %114 {offsets = [0, 0, 128], sizes = [2, 6, 64], strides = [1, 1, 1]} : vector<2x6x192xf32> to vector<2x6x64xf32>
    %121 = arith.truncf %120 : vector<2x6x64xf32> to vector<2x6x64xbf16>
    %cst_48 = arith.constant 0.000000e+00 : f32
    %122 = vector.broadcast %cst_48 : f32 to vector<2x6x64xf32>
    %123 = vector.broadcast %71 : vector<1x6x64xf32> to vector<2x6x64xf32>
    %124 = arith.mulf %117, %123 : vector<2x6x64xf32>
    %125 = arith.truncf %124 : vector<2x6x64xf32> to vector<2x6x64xbf16>
    "tpu.trace_start"() <{level = 10 : i32, message = "bqd,bkd->bqk"}> : () -> ()
    %cst_49 = arith.constant dense<0.000000e+00> : vector<2x6x6xf32>
    %126 = tpu.matmul %125, %119, %cst_49 {dimension_numbers = #tpu.dot_dimension_numbers<[2], [2], [1], [1], [0, 0, 0, 1, 1, 1], [0], [0]>} : vector<2x6x64xbf16>, vector<2x6x64xbf16>, vector<2x6x6xf32> -> vector<2x6x6xf32>
    "tpu.trace_stop"() : () -> ()
    %127 = vector.shape_cast %62 : vector<6x6xf32> to vector<1x6x6xf32>
    %128 = vector.broadcast %127 : vector<1x6x6xf32> to vector<2x6x6xf32>
    %129 = arith.addf %126, %128 : vector<2x6x6xf32>
    %cst_50 = arith.constant dense<0xFF800000> : vector<2x6xf32>
    %130 = vector.multi_reduction <maximumf>, %129, %cst_50 [2] : vector<2x6x6xf32> to vector<2x6xf32>
    %131 = vector.shape_cast %130 : vector<2x6xf32> to vector<2x6x1xf32>
    %132 = vector.broadcast %131 : vector<2x6x1xf32> to vector<2x6x6xf32>
    %133 = arith.subf %129, %132 : vector<2x6x6xf32>
    %134 = math.exp %133 : vector<2x6x6xf32>
    %cst_51 = arith.constant dense<0.000000e+00> : vector<2x6xf32>
    %135 = vector.multi_reduction <add>, %134, %cst_51 [2] : vector<2x6x6xf32> to vector<2x6xf32>
    %136 = vector.shape_cast %135 : vector<2x6xf32> to vector<2x6x1xf32>
    %137 = tpu.reciprocal %136 {approx = true} : vector<2x6x1xf32> -> vector<2x6x1xf32>
    %138 = vector.broadcast %137 : vector<2x6x1xf32> to vector<2x6x6xf32>
    %139 = arith.mulf %134, %138 : vector<2x6x6xf32>
    %140 = arith.truncf %139 : vector<2x6x6xf32> to vector<2x6x6xbf16>
    "tpu.trace_start"() <{level = 10 : i32, message = "bqk,bkd->bqd"}> : () -> ()
    %cst_52 = arith.constant dense<0.000000e+00> : vector<2x6x64xf32>
    %141 = tpu.matmul %140, %121, %cst_52 {dimension_numbers = #tpu.dot_dimension_numbers<[2], [1], [1], [2], [0, 0, 0, 1, 1, 2], [0], [0]>} : vector<2x6x6xbf16>, vector<2x6x64xbf16>, vector<2x6x64xf32> -> vector<2x6x64xf32>
    "tpu.trace_stop"() : () -> ()
    %142 = vector.broadcast %71 : vector<1x6x64xf32> to vector<2x6x64xf32>
    %143 = arith.mulf %141, %142 : vector<2x6x64xf32>
    %144 = arith.addf %122, %143 : vector<2x6x64xf32>
    %145 = vector.broadcast %79 : vector<1x6x64xf32> to vector<2x6x64xf32>
    %146 = arith.mulf %117, %145 : vector<2x6x64xf32>
    %147 = arith.truncf %146 : vector<2x6x64xf32> to vector<2x6x64xbf16>
    "tpu.trace_start"() <{level = 10 : i32, message = "bqd,bkd->bqk"}> : () -> ()
    %cst_53 = arith.constant dense<0.000000e+00> : vector<2x6x6xf32>
    %148 = tpu.matmul %147, %119, %cst_53 {dimension_numbers = #tpu.dot_dimension_numbers<[2], [2], [1], [1], [0, 0, 0, 1, 1, 1], [0], [0]>} : vector<2x6x64xbf16>, vector<2x6x64xbf16>, vector<2x6x6xf32> -> vector<2x6x6xf32>
    "tpu.trace_stop"() : () -> ()
    %149 = vector.shape_cast %62 : vector<6x6xf32> to vector<1x6x6xf32>
    %150 = vector.broadcast %149 : vector<1x6x6xf32> to vector<2x6x6xf32>
    %151 = arith.addf %148, %150 : vector<2x6x6xf32>
    %cst_54 = arith.constant dense<0xFF800000> : vector<2x6xf32>
    %152 = vector.multi_reduction <maximumf>, %151, %cst_54 [2] : vector<2x6x6xf32> to vector<2x6xf32>
    %153 = vector.shape_cast %152 : vector<2x6xf32> to vector<2x6x1xf32>
    %154 = vector.broadcast %153 : vector<2x6x1xf32> to vector<2x6x6xf32>
    %155 = arith.subf %151, %154 : vector<2x6x6xf32>
    %156 = math.exp %155 : vector<2x6x6xf32>
    %cst_55 = arith.constant dense<0.000000e+00> : vector<2x6xf32>
    %157 = vector.multi_reduction <add>, %156, %cst_55 [2] : vector<2x6x6xf32> to vector<2x6xf32>
    %158 = vector.shape_cast %157 : vector<2x6xf32> to vector<2x6x1xf32>
    %159 = tpu.reciprocal %158 {approx = true} : vector<2x6x1xf32> -> vector<2x6x1xf32>
    %160 = vector.broadcast %159 : vector<2x6x1xf32> to vector<2x6x6xf32>
    %161 = arith.mulf %156, %160 : vector<2x6x6xf32>
    %162 = arith.truncf %161 : vector<2x6x6xf32> to vector<2x6x6xbf16>
    "tpu.trace_start"() <{level = 10 : i32, message = "bqk,bkd->bqd"}> : () -> ()
    %cst_56 = arith.constant dense<0.000000e+00> : vector<2x6x64xf32>
    %163 = tpu.matmul %162, %121, %cst_56 {dimension_numbers = #tpu.dot_dimension_numbers<[2], [1], [1], [2], [0, 0, 0, 1, 1, 2], [0], [0]>} : vector<2x6x6xbf16>, vector<2x6x64xbf16>, vector<2x6x64xf32> -> vector<2x6x64xf32>
    "tpu.trace_stop"() : () -> ()
    %164 = vector.broadcast %79 : vector<1x6x64xf32> to vector<2x6x64xf32>
    %165 = arith.mulf %163, %164 : vector<2x6x64xf32>
    %166 = arith.addf %144, %165 : vector<2x6x64xf32>
    %167 = vector.shape_cast %166 : vector<2x6x64xf32> to vector<12x64xf32>
    %c0_57 = arith.constant 0 : index
    %c0_58 = arith.constant 0 : index
    %c0_59 = arith.constant 0 : index
    %168 = vector.load %arg15[%c0_57, %c0_58, %c0_59] : memref<2x64x64xbf16, #tpu.memory_space<vmem>>, vector<1x64x64xbf16>
    %169 = vector.shape_cast %168 : vector<1x64x64xbf16> to vector<64x64xbf16>
    %170 = arith.truncf %167 : vector<12x64xf32> to vector<12x64xbf16>
    %cst_60 = arith.constant dense<0.000000e+00> : vector<12x64xf32>
    %171 = tpu.matmul %170, %169, %cst_60 {dimension_numbers = #tpu.dot_dimension_numbers<[1], [0], [0], [1], [0, 0, 1, 1], [], []>} : vector<12x64xbf16>, vector<64x64xbf16>, vector<12x64xf32> -> vector<12x64xf32>
    %172 = arith.addf %53, %171 : vector<12x64xf32>
    %c0_61 = arith.constant 0 : index
    %c0_62 = arith.constant 0 : index
    %c0_63 = arith.constant 0 : index
    %173 = vector.load %arg16[%c0_61, %c0_62, %c0_63] : memref<2x1x64xf32, #tpu.memory_space<vmem>>, vector<1x1x64xf32>
    %174 = vector.shape_cast %173 : vector<1x1x64xf32> to vector<1x64xf32>
    %175 = vector.broadcast %174 : vector<1x64xf32> to vector<12x64xf32>
    %176 = arith.addf %172, %175 : vector<12x64xf32>
    %c0_64 = arith.constant 0 : index
    %c0_65 = arith.constant 0 : index
    %c0_66 = arith.constant 0 : index
    %177 = vector.load %arg17[%c0_64, %c0_65, %c0_66] : memref<2x1x64xf32, #tpu.memory_space<vmem>>, vector<1x1x64xf32>
    %178 = vector.shape_cast %177 : vector<1x1x64xf32> to vector<1x64xf32>
    %c0_67 = arith.constant 0 : index
    %c0_68 = arith.constant 0 : index
    %c0_69 = arith.constant 0 : index
    %179 = vector.load %arg18[%c0_67, %c0_68, %c0_69] : memref<2x1x64xf32, #tpu.memory_space<vmem>>, vector<1x1x64xf32>
    %180 = vector.shape_cast %179 : vector<1x1x64xf32> to vector<1x64xf32>
    %cst_70 = arith.constant dense<0.000000e+00> : vector<12xf32>
    %181 = vector.multi_reduction <add>, %176, %cst_70 [1] : vector<12x64xf32> to vector<12xf32>
    %182 = vector.shape_cast %181 : vector<12xf32> to vector<12x1xf32>
    %cst_71 = arith.constant 6.400000e+01 : f32
    %183 = vector.broadcast %cst_71 : f32 to vector<12x1xf32>
    %184 = arith.divf %182, %183 : vector<12x1xf32>
    %185 = vector.broadcast %184 : vector<12x1xf32> to vector<12x64xf32>
    %186 = arith.subf %176, %185 : vector<12x64xf32>
    %187 = arith.mulf %186, %186 : vector<12x64xf32>
    %cst_72 = arith.constant dense<0.000000e+00> : vector<12xf32>
    %188 = vector.multi_reduction <add>, %187, %cst_72 [1] : vector<12x64xf32> to vector<12xf32>
    %189 = vector.shape_cast %188 : vector<12xf32> to vector<12x1xf32>
    %cst_73 = arith.constant 6.400000e+01 : f32
    %190 = vector.broadcast %cst_73 : f32 to vector<12x1xf32>
    %191 = arith.divf %189, %190 : vector<12x1xf32>
    %192 = vector.broadcast %184 : vector<12x1xf32> to vector<12x64xf32>
    %193 = arith.subf %176, %192 : vector<12x64xf32>
    %cst_74 = arith.constant 9.99999974E-6 : f32
    %194 = vector.broadcast %cst_74 : f32 to vector<12x1xf32>
    %195 = arith.addf %191, %194 : vector<12x1xf32>
    %196 = math.rsqrt %195 : vector<12x1xf32>
    %197 = vector.broadcast %196 : vector<12x1xf32> to vector<12x64xf32>
    %198 = arith.mulf %193, %197 : vector<12x64xf32>
    %199 = vector.broadcast %178 : vector<1x64xf32> to vector<12x64xf32>
    %200 = arith.mulf %198, %199 : vector<12x64xf32>
    %201 = vector.broadcast %180 : vector<1x64xf32> to vector<12x64xf32>
    %202 = arith.addf %200, %201 : vector<12x64xf32>
    %c0_75 = arith.constant 0 : index
    %c0_76 = arith.constant 0 : index
    %c0_77 = arith.constant 0 : index
    %203 = vector.load %arg19[%c0_75, %c0_76, %c0_77] : memref<2x64x128xbf16, #tpu.memory_space<vmem>>, vector<1x64x128xbf16>
    %204 = vector.shape_cast %203 : vector<1x64x128xbf16> to vector<64x128xbf16>
    %205 = arith.truncf %202 : vector<12x64xf32> to vector<12x64xbf16>
    %cst_78 = arith.constant dense<0.000000e+00> : vector<12x128xf32>
    %206 = tpu.matmul %205, %204, %cst_78 {dimension_numbers = #tpu.dot_dimension_numbers<[1], [0], [0], [1], [0, 0, 1, 1], [], []>} : vector<12x64xbf16>, vector<64x128xbf16>, vector<12x128xf32> -> vector<12x128xf32>
    %c0_79 = arith.constant 0 : index
    %c0_80 = arith.constant 0 : index
    %c0_81 = arith.constant 0 : index
    %207 = vector.load %arg20[%c0_79, %c0_80, %c0_81] : memref<2x1x128xf32, #tpu.memory_space<vmem>>, vector<1x1x128xf32>
    %208 = vector.shape_cast %207 : vector<1x1x128xf32> to vector<1x128xf32>
    %209 = vector.broadcast %208 : vector<1x128xf32> to vector<12x128xf32>
    %210 = arith.addf %206, %209 : vector<12x128xf32>
    %cst_82 = arith.constant 5.000000e-01 : f32
    %211 = vector.broadcast %cst_82 : f32 to vector<12x128xf32>
    %212 = arith.mulf %211, %210 : vector<12x128xf32>
    %cst_83 = arith.constant 4.471500e-02 : f32
    %213 = vector.broadcast %cst_83 : f32 to vector<12x128xf32>
    %214 = arith.mulf %213, %210 : vector<12x128xf32>
    %215 = arith.mulf %214, %210 : vector<12x128xf32>
    %216 = arith.mulf %215, %210 : vector<12x128xf32>
    %217 = arith.addf %210, %216 : vector<12x128xf32>
    %cst_84 = arith.constant 0.797884583 : f32
    %218 = vector.broadcast %cst_84 : f32 to vector<12x128xf32>
    %219 = arith.mulf %218, %217 : vector<12x128xf32>
    %220 = math.tanh %219 : vector<12x128xf32>
    %cst_85 = arith.constant 1.000000e+00 : f32
    %221 = vector.broadcast %cst_85 : f32 to vector<12x128xf32>
    %222 = arith.addf %221, %220 : vector<12x128xf32>
    %223 = arith.mulf %212, %222 : vector<12x128xf32>
    %c0_86 = arith.constant 0 : index
    %c0_87 = arith.constant 0 : index
    %c0_88 = arith.constant 0 : index
    %224 = vector.load %arg21[%c0_86, %c0_87, %c0_88] : memref<2x128x64xbf16, #tpu.memory_space<vmem>>, vector<1x128x64xbf16>
    %225 = vector.shape_cast %224 : vector<1x128x64xbf16> to vector<128x64xbf16>
    %226 = arith.truncf %223 : vector<12x128xf32> to vector<12x128xbf16>
    %cst_89 = arith.constant dense<0.000000e+00> : vector<12x64xf32>
    %227 = tpu.matmul %226, %225, %cst_89 {dimension_numbers = #tpu.dot_dimension_numbers<[1], [0], [0], [1], [0, 0, 1, 1], [], []>} : vector<12x128xbf16>, vector<128x64xbf16>, vector<12x64xf32> -> vector<12x64xf32>
    %228 = arith.addf %176, %227 : vector<12x64xf32>
    %c0_90 = arith.constant 0 : index
    %c0_91 = arith.constant 0 : index
    %c0_92 = arith.constant 0 : index
    %229 = vector.load %arg22[%c0_90, %c0_91, %c0_92] : memref<2x1x64xf32, #tpu.memory_space<vmem>>, vector<1x1x64xf32>
    %230 = vector.shape_cast %229 : vector<1x1x64xf32> to vector<1x64xf32>
    %231 = vector.broadcast %230 : vector<1x64xf32> to vector<12x64xf32>
    %232 = arith.addf %228, %231 : vector<12x64xf32>
    %c1_93 = arith.constant 1 : index
    %c0_94 = arith.constant 0 : index
    %c0_95 = arith.constant 0 : index
    %233 = vector.load %arg11[%c1_93, %c0_94, %c0_95] : memref<2x1x64xf32, #tpu.memory_space<vmem>>, vector<1x1x64xf32>
    %234 = vector.shape_cast %233 : vector<1x1x64xf32> to vector<1x64xf32>
    %c1_96 = arith.constant 1 : index
    %c0_97 = arith.constant 0 : index
    %c0_98 = arith.constant 0 : index
    %235 = vector.load %arg12[%c1_96, %c0_97, %c0_98] : memref<2x1x64xf32, #tpu.memory_space<vmem>>, vector<1x1x64xf32>
    %236 = vector.shape_cast %235 : vector<1x1x64xf32> to vector<1x64xf32>
    %cst_99 = arith.constant dense<0.000000e+00> : vector<12xf32>
    %237 = vector.multi_reduction <add>, %232, %cst_99 [1] : vector<12x64xf32> to vector<12xf32>
    %238 = vector.shape_cast %237 : vector<12xf32> to vector<12x1xf32>
    %cst_100 = arith.constant 6.400000e+01 : f32
    %239 = vector.broadcast %cst_100 : f32 to vector<12x1xf32>
    %240 = arith.divf %238, %239 : vector<12x1xf32>
    %241 = vector.broadcast %240 : vector<12x1xf32> to vector<12x64xf32>
    %242 = arith.subf %232, %241 : vector<12x64xf32>
    %243 = arith.mulf %242, %242 : vector<12x64xf32>
    %cst_101 = arith.constant dense<0.000000e+00> : vector<12xf32>
    %244 = vector.multi_reduction <add>, %243, %cst_101 [1] : vector<12x64xf32> to vector<12xf32>
    %245 = vector.shape_cast %244 : vector<12xf32> to vector<12x1xf32>
    %cst_102 = arith.constant 6.400000e+01 : f32
    %246 = vector.broadcast %cst_102 : f32 to vector<12x1xf32>
    %247 = arith.divf %245, %246 : vector<12x1xf32>
    %248 = vector.broadcast %240 : vector<12x1xf32> to vector<12x64xf32>
    %249 = arith.subf %232, %248 : vector<12x64xf32>
    %cst_103 = arith.constant 9.99999974E-6 : f32
    %250 = vector.broadcast %cst_103 : f32 to vector<12x1xf32>
    %251 = arith.addf %247, %250 : vector<12x1xf32>
    %252 = math.rsqrt %251 : vector<12x1xf32>
    %253 = vector.broadcast %252 : vector<12x1xf32> to vector<12x64xf32>
    %254 = arith.mulf %249, %253 : vector<12x64xf32>
    %255 = vector.broadcast %234 : vector<1x64xf32> to vector<12x64xf32>
    %256 = arith.mulf %254, %255 : vector<12x64xf32>
    %257 = vector.broadcast %236 : vector<1x64xf32> to vector<12x64xf32>
    %258 = arith.addf %256, %257 : vector<12x64xf32>
    %c1_104 = arith.constant 1 : index
    %c0_105 = arith.constant 0 : index
    %c0_106 = arith.constant 0 : index
    %259 = vector.load %arg13[%c1_104, %c0_105, %c0_106] : memref<2x64x192xbf16, #tpu.memory_space<vmem>>, vector<1x64x192xbf16>
    %260 = vector.shape_cast %259 : vector<1x64x192xbf16> to vector<64x192xbf16>
    %261 = arith.truncf %258 : vector<12x64xf32> to vector<12x64xbf16>
    %cst_107 = arith.constant dense<0.000000e+00> : vector<12x192xf32>
    %262 = tpu.matmul %261, %260, %cst_107 {dimension_numbers = #tpu.dot_dimension_numbers<[1], [0], [0], [1], [0, 0, 1, 1], [], []>} : vector<12x64xbf16>, vector<64x192xbf16>, vector<12x192xf32> -> vector<12x192xf32>
    %c1_108 = arith.constant 1 : index
    %c0_109 = arith.constant 0 : index
    %c0_110 = arith.constant 0 : index
    %263 = vector.load %arg14[%c1_108, %c0_109, %c0_110] : memref<2x1x192xf32, #tpu.memory_space<vmem>>, vector<1x1x192xf32>
    %264 = vector.shape_cast %263 : vector<1x1x192xf32> to vector<1x192xf32>
    %265 = vector.broadcast %264 : vector<1x192xf32> to vector<12x192xf32>
    %266 = arith.addf %262, %265 : vector<12x192xf32>
    %267 = vector.shape_cast %266 : vector<12x192xf32> to vector<2x6x192xf32>
    %268 = vector.extract_strided_slice %267 {offsets = [0, 0, 0], sizes = [2, 6, 64], strides = [1, 1, 1]} : vector<2x6x192xf32> to vector<2x6x64xf32>
    %cst_111 = arith.constant 0.176776692 : f32
    %269 = vector.broadcast %cst_111 : f32 to vector<2x6x64xf32>
    %270 = arith.mulf %268, %269 : vector<2x6x64xf32>
    %271 = vector.extract_strided_slice %267 {offsets = [0, 0, 64], sizes = [2, 6, 64], strides = [1, 1, 1]} : vector<2x6x192xf32> to vector<2x6x64xf32>
    %272 = arith.truncf %271 : vector<2x6x64xf32> to vector<2x6x64xbf16>
    %273 = vector.extract_strided_slice %267 {offsets = [0, 0, 128], sizes = [2, 6, 64], strides = [1, 1, 1]} : vector<2x6x192xf32> to vector<2x6x64xf32>
    %274 = arith.truncf %273 : vector<2x6x64xf32> to vector<2x6x64xbf16>
    %cst_112 = arith.constant 0.000000e+00 : f32
    %275 = vector.broadcast %cst_112 : f32 to vector<2x6x64xf32>
    %276 = vector.broadcast %71 : vector<1x6x64xf32> to vector<2x6x64xf32>
    %277 = arith.mulf %270, %276 : vector<2x6x64xf32>
    %278 = arith.truncf %277 : vector<2x6x64xf32> to vector<2x6x64xbf16>
    "tpu.trace_start"() <{level = 10 : i32, message = "bqd,bkd->bqk"}> : () -> ()
    %cst_113 = arith.constant dense<0.000000e+00> : vector<2x6x6xf32>
    %279 = tpu.matmul %278, %272, %cst_113 {dimension_numbers = #tpu.dot_dimension_numbers<[2], [2], [1], [1], [0, 0, 0, 1, 1, 1], [0], [0]>} : vector<2x6x64xbf16>, vector<2x6x64xbf16>, vector<2x6x6xf32> -> vector<2x6x6xf32>
    "tpu.trace_stop"() : () -> ()
    %280 = vector.shape_cast %62 : vector<6x6xf32> to vector<1x6x6xf32>
    %281 = vector.broadcast %280 : vector<1x6x6xf32> to vector<2x6x6xf32>
    %282 = arith.addf %279, %281 : vector<2x6x6xf32>
    %cst_114 = arith.constant dense<0xFF800000> : vector<2x6xf32>
    %283 = vector.multi_reduction <maximumf>, %282, %cst_114 [2] : vector<2x6x6xf32> to vector<2x6xf32>
    %284 = vector.shape_cast %283 : vector<2x6xf32> to vector<2x6x1xf32>
    %285 = vector.broadcast %284 : vector<2x6x1xf32> to vector<2x6x6xf32>
    %286 = arith.subf %282, %285 : vector<2x6x6xf32>
    %287 = math.exp %286 : vector<2x6x6xf32>
    %cst_115 = arith.constant dense<0.000000e+00> : vector<2x6xf32>
    %288 = vector.multi_reduction <add>, %287, %cst_115 [2] : vector<2x6x6xf32> to vector<2x6xf32>
    %289 = vector.shape_cast %288 : vector<2x6xf32> to vector<2x6x1xf32>
    %290 = tpu.reciprocal %289 {approx = true} : vector<2x6x1xf32> -> vector<2x6x1xf32>
    %291 = vector.broadcast %290 : vector<2x6x1xf32> to vector<2x6x6xf32>
    %292 = arith.mulf %287, %291 : vector<2x6x6xf32>
    %293 = arith.truncf %292 : vector<2x6x6xf32> to vector<2x6x6xbf16>
    "tpu.trace_start"() <{level = 10 : i32, message = "bqk,bkd->bqd"}> : () -> ()
    %cst_116 = arith.constant dense<0.000000e+00> : vector<2x6x64xf32>
    %294 = tpu.matmul %293, %274, %cst_116 {dimension_numbers = #tpu.dot_dimension_numbers<[2], [1], [1], [2], [0, 0, 0, 1, 1, 2], [0], [0]>} : vector<2x6x6xbf16>, vector<2x6x64xbf16>, vector<2x6x64xf32> -> vector<2x6x64xf32>
    "tpu.trace_stop"() : () -> ()
    %295 = vector.broadcast %71 : vector<1x6x64xf32> to vector<2x6x64xf32>
    %296 = arith.mulf %294, %295 : vector<2x6x64xf32>
    %297 = arith.addf %275, %296 : vector<2x6x64xf32>
    %298 = vector.broadcast %79 : vector<1x6x64xf32> to vector<2x6x64xf32>
    %299 = arith.mulf %270, %298 : vector<2x6x64xf32>
    %300 = arith.truncf %299 : vector<2x6x64xf32> to vector<2x6x64xbf16>
    "tpu.trace_start"() <{level = 10 : i32, message = "bqd,bkd->bqk"}> : () -> ()
    %cst_117 = arith.constant dense<0.000000e+00> : vector<2x6x6xf32>
    %301 = tpu.matmul %300, %272, %cst_117 {dimension_numbers = #tpu.dot_dimension_numbers<[2], [2], [1], [1], [0, 0, 0, 1, 1, 1], [0], [0]>} : vector<2x6x64xbf16>, vector<2x6x64xbf16>, vector<2x6x6xf32> -> vector<2x6x6xf32>
    "tpu.trace_stop"() : () -> ()
    %302 = vector.shape_cast %62 : vector<6x6xf32> to vector<1x6x6xf32>
    %303 = vector.broadcast %302 : vector<1x6x6xf32> to vector<2x6x6xf32>
    %304 = arith.addf %301, %303 : vector<2x6x6xf32>
    %cst_118 = arith.constant dense<0xFF800000> : vector<2x6xf32>
    %305 = vector.multi_reduction <maximumf>, %304, %cst_118 [2] : vector<2x6x6xf32> to vector<2x6xf32>
    %306 = vector.shape_cast %305 : vector<2x6xf32> to vector<2x6x1xf32>
    %307 = vector.broadcast %306 : vector<2x6x1xf32> to vector<2x6x6xf32>
    %308 = arith.subf %304, %307 : vector<2x6x6xf32>
    %309 = math.exp %308 : vector<2x6x6xf32>
    %cst_119 = arith.constant dense<0.000000e+00> : vector<2x6xf32>
    %310 = vector.multi_reduction <add>, %309, %cst_119 [2] : vector<2x6x6xf32> to vector<2x6xf32>
    %311 = vector.shape_cast %310 : vector<2x6xf32> to vector<2x6x1xf32>
    %312 = tpu.reciprocal %311 {approx = true} : vector<2x6x1xf32> -> vector<2x6x1xf32>
    %313 = vector.broadcast %312 : vector<2x6x1xf32> to vector<2x6x6xf32>
    %314 = arith.mulf %309, %313 : vector<2x6x6xf32>
    %315 = arith.truncf %314 : vector<2x6x6xf32> to vector<2x6x6xbf16>
    "tpu.trace_start"() <{level = 10 : i32, message = "bqk,bkd->bqd"}> : () -> ()
    %cst_120 = arith.constant dense<0.000000e+00> : vector<2x6x64xf32>
    %316 = tpu.matmul %315, %274, %cst_120 {dimension_numbers = #tpu.dot_dimension_numbers<[2], [1], [1], [2], [0, 0, 0, 1, 1, 2], [0], [0]>} : vector<2x6x6xbf16>, vector<2x6x64xbf16>, vector<2x6x64xf32> -> vector<2x6x64xf32>
    "tpu.trace_stop"() : () -> ()
    %317 = vector.broadcast %79 : vector<1x6x64xf32> to vector<2x6x64xf32>
    %318 = arith.mulf %316, %317 : vector<2x6x64xf32>
    %319 = arith.addf %297, %318 : vector<2x6x64xf32>
    %320 = vector.shape_cast %319 : vector<2x6x64xf32> to vector<12x64xf32>
    %c1_121 = arith.constant 1 : index
    %c0_122 = arith.constant 0 : index
    %c0_123 = arith.constant 0 : index
    %321 = vector.load %arg15[%c1_121, %c0_122, %c0_123] : memref<2x64x64xbf16, #tpu.memory_space<vmem>>, vector<1x64x64xbf16>
    %322 = vector.shape_cast %321 : vector<1x64x64xbf16> to vector<64x64xbf16>
    %323 = arith.truncf %320 : vector<12x64xf32> to vector<12x64xbf16>
    %cst_124 = arith.constant dense<0.000000e+00> : vector<12x64xf32>
    %324 = tpu.matmul %323, %322, %cst_124 {dimension_numbers = #tpu.dot_dimension_numbers<[1], [0], [0], [1], [0, 0, 1, 1], [], []>} : vector<12x64xbf16>, vector<64x64xbf16>, vector<12x64xf32> -> vector<12x64xf32>
    %325 = arith.addf %232, %324 : vector<12x64xf32>
    %c1_125 = arith.constant 1 : index
    %c0_126 = arith.constant 0 : index
    %c0_127 = arith.constant 0 : index
    %326 = vector.load %arg16[%c1_125, %c0_126, %c0_127] : memref<2x1x64xf32, #tpu.memory_space<vmem>>, vector<1x1x64xf32>
    %327 = vector.shape_cast %326 : vector<1x1x64xf32> to vector<1x64xf32>
    %328 = vector.broadcast %327 : vector<1x64xf32> to vector<12x64xf32>
    %329 = arith.addf %325, %328 : vector<12x64xf32>
    %c1_128 = arith.constant 1 : index
    %c0_129 = arith.constant 0 : index
    %c0_130 = arith.constant 0 : index
    %330 = vector.load %arg17[%c1_128, %c0_129, %c0_130] : memref<2x1x64xf32, #tpu.memory_space<vmem>>, vector<1x1x64xf32>
    %331 = vector.shape_cast %330 : vector<1x1x64xf32> to vector<1x64xf32>
    %c1_131 = arith.constant 1 : index
    %c0_132 = arith.constant 0 : index
    %c0_133 = arith.constant 0 : index
    %332 = vector.load %arg18[%c1_131, %c0_132, %c0_133] : memref<2x1x64xf32, #tpu.memory_space<vmem>>, vector<1x1x64xf32>
    %333 = vector.shape_cast %332 : vector<1x1x64xf32> to vector<1x64xf32>
    %cst_134 = arith.constant dense<0.000000e+00> : vector<12xf32>
    %334 = vector.multi_reduction <add>, %329, %cst_134 [1] : vector<12x64xf32> to vector<12xf32>
    %335 = vector.shape_cast %334 : vector<12xf32> to vector<12x1xf32>
    %cst_135 = arith.constant 6.400000e+01 : f32
    %336 = vector.broadcast %cst_135 : f32 to vector<12x1xf32>
    %337 = arith.divf %335, %336 : vector<12x1xf32>
    %338 = vector.broadcast %337 : vector<12x1xf32> to vector<12x64xf32>
    %339 = arith.subf %329, %338 : vector<12x64xf32>
    %340 = arith.mulf %339, %339 : vector<12x64xf32>
    %cst_136 = arith.constant dense<0.000000e+00> : vector<12xf32>
    %341 = vector.multi_reduction <add>, %340, %cst_136 [1] : vector<12x64xf32> to vector<12xf32>
    %342 = vector.shape_cast %341 : vector<12xf32> to vector<12x1xf32>
    %cst_137 = arith.constant 6.400000e+01 : f32
    %343 = vector.broadcast %cst_137 : f32 to vector<12x1xf32>
    %344 = arith.divf %342, %343 : vector<12x1xf32>
    %345 = vector.broadcast %337 : vector<12x1xf32> to vector<12x64xf32>
    %346 = arith.subf %329, %345 : vector<12x64xf32>
    %cst_138 = arith.constant 9.99999974E-6 : f32
    %347 = vector.broadcast %cst_138 : f32 to vector<12x1xf32>
    %348 = arith.addf %344, %347 : vector<12x1xf32>
    %349 = math.rsqrt %348 : vector<12x1xf32>
    %350 = vector.broadcast %349 : vector<12x1xf32> to vector<12x64xf32>
    %351 = arith.mulf %346, %350 : vector<12x64xf32>
    %352 = vector.broadcast %331 : vector<1x64xf32> to vector<12x64xf32>
    %353 = arith.mulf %351, %352 : vector<12x64xf32>
    %354 = vector.broadcast %333 : vector<1x64xf32> to vector<12x64xf32>
    %355 = arith.addf %353, %354 : vector<12x64xf32>
    %c1_139 = arith.constant 1 : index
    %c0_140 = arith.constant 0 : index
    %c0_141 = arith.constant 0 : index
    %356 = vector.load %arg19[%c1_139, %c0_140, %c0_141] : memref<2x64x128xbf16, #tpu.memory_space<vmem>>, vector<1x64x128xbf16>
    %357 = vector.shape_cast %356 : vector<1x64x128xbf16> to vector<64x128xbf16>
    %358 = arith.truncf %355 : vector<12x64xf32> to vector<12x64xbf16>
    %cst_142 = arith.constant dense<0.000000e+00> : vector<12x128xf32>
    %359 = tpu.matmul %358, %357, %cst_142 {dimension_numbers = #tpu.dot_dimension_numbers<[1], [0], [0], [1], [0, 0, 1, 1], [], []>} : vector<12x64xbf16>, vector<64x128xbf16>, vector<12x128xf32> -> vector<12x128xf32>
    %c1_143 = arith.constant 1 : index
    %c0_144 = arith.constant 0 : index
    %c0_145 = arith.constant 0 : index
    %360 = vector.load %arg20[%c1_143, %c0_144, %c0_145] : memref<2x1x128xf32, #tpu.memory_space<vmem>>, vector<1x1x128xf32>
    %361 = vector.shape_cast %360 : vector<1x1x128xf32> to vector<1x128xf32>
    %362 = vector.broadcast %361 : vector<1x128xf32> to vector<12x128xf32>
    %363 = arith.addf %359, %362 : vector<12x128xf32>
    %cst_146 = arith.constant 5.000000e-01 : f32
    %364 = vector.broadcast %cst_146 : f32 to vector<12x128xf32>
    %365 = arith.mulf %364, %363 : vector<12x128xf32>
    %cst_147 = arith.constant 4.471500e-02 : f32
    %366 = vector.broadcast %cst_147 : f32 to vector<12x128xf32>
    %367 = arith.mulf %366, %363 : vector<12x128xf32>
    %368 = arith.mulf %367, %363 : vector<12x128xf32>
    %369 = arith.mulf %368, %363 : vector<12x128xf32>
    %370 = arith.addf %363, %369 : vector<12x128xf32>
    %cst_148 = arith.constant 0.797884583 : f32
    %371 = vector.broadcast %cst_148 : f32 to vector<12x128xf32>
    %372 = arith.mulf %371, %370 : vector<12x128xf32>
    %373 = math.tanh %372 : vector<12x128xf32>
    %cst_149 = arith.constant 1.000000e+00 : f32
    %374 = vector.broadcast %cst_149 : f32 to vector<12x128xf32>
    %375 = arith.addf %374, %373 : vector<12x128xf32>
    %376 = arith.mulf %365, %375 : vector<12x128xf32>
    %c1_150 = arith.constant 1 : index
    %c0_151 = arith.constant 0 : index
    %c0_152 = arith.constant 0 : index
    %377 = vector.load %arg21[%c1_150, %c0_151, %c0_152] : memref<2x128x64xbf16, #tpu.memory_space<vmem>>, vector<1x128x64xbf16>
    %378 = vector.shape_cast %377 : vector<1x128x64xbf16> to vector<128x64xbf16>
    %379 = arith.truncf %376 : vector<12x128xf32> to vector<12x128xbf16>
    %cst_153 = arith.constant dense<0.000000e+00> : vector<12x64xf32>
    %380 = tpu.matmul %379, %378, %cst_153 {dimension_numbers = #tpu.dot_dimension_numbers<[1], [0], [0], [1], [0, 0, 1, 1], [], []>} : vector<12x128xbf16>, vector<128x64xbf16>, vector<12x64xf32> -> vector<12x64xf32>
    %381 = arith.addf %329, %380 : vector<12x64xf32>
    %c1_154 = arith.constant 1 : index
    %c0_155 = arith.constant 0 : index
    %c0_156 = arith.constant 0 : index
    %382 = vector.load %arg22[%c1_154, %c0_155, %c0_156] : memref<2x1x64xf32, #tpu.memory_space<vmem>>, vector<1x1x64xf32>
    %383 = vector.shape_cast %382 : vector<1x1x64xf32> to vector<1x64xf32>
    %384 = vector.broadcast %383 : vector<1x64xf32> to vector<12x64xf32>
    %385 = arith.addf %381, %384 : vector<12x64xf32>
    %c0_157 = arith.constant 0 : index
    %c0_158 = arith.constant 0 : index
    %386 = vector.load %arg23[%c0_157, %c0_158] : memref<1x64xf32, #tpu.memory_space<vmem>>, vector<1x64xf32>
    %c0_159 = arith.constant 0 : index
    %c0_160 = arith.constant 0 : index
    %387 = vector.load %arg24[%c0_159, %c0_160] : memref<1x64xf32, #tpu.memory_space<vmem>>, vector<1x64xf32>
    %cst_161 = arith.constant dense<0.000000e+00> : vector<12xf32>
    %388 = vector.multi_reduction <add>, %385, %cst_161 [1] : vector<12x64xf32> to vector<12xf32>
    %389 = vector.shape_cast %388 : vector<12xf32> to vector<12x1xf32>
    %cst_162 = arith.constant 6.400000e+01 : f32
    %390 = vector.broadcast %cst_162 : f32 to vector<12x1xf32>
    %391 = arith.divf %389, %390 : vector<12x1xf32>
    %392 = vector.broadcast %391 : vector<12x1xf32> to vector<12x64xf32>
    %393 = arith.subf %385, %392 : vector<12x64xf32>
    %394 = arith.mulf %393, %393 : vector<12x64xf32>
    %cst_163 = arith.constant dense<0.000000e+00> : vector<12xf32>
    %395 = vector.multi_reduction <add>, %394, %cst_163 [1] : vector<12x64xf32> to vector<12xf32>
    %396 = vector.shape_cast %395 : vector<12xf32> to vector<12x1xf32>
    %cst_164 = arith.constant 6.400000e+01 : f32
    %397 = vector.broadcast %cst_164 : f32 to vector<12x1xf32>
    %398 = arith.divf %396, %397 : vector<12x1xf32>
    %399 = vector.broadcast %391 : vector<12x1xf32> to vector<12x64xf32>
    %400 = arith.subf %385, %399 : vector<12x64xf32>
    %cst_165 = arith.constant 9.99999974E-6 : f32
    %401 = vector.broadcast %cst_165 : f32 to vector<12x1xf32>
    %402 = arith.addf %398, %401 : vector<12x1xf32>
    %403 = math.rsqrt %402 : vector<12x1xf32>
    %404 = vector.broadcast %403 : vector<12x1xf32> to vector<12x64xf32>
    %405 = arith.mulf %400, %404 : vector<12x64xf32>
    %406 = vector.broadcast %386 : vector<1x64xf32> to vector<12x64xf32>
    %407 = arith.mulf %405, %406 : vector<12x64xf32>
    %408 = vector.broadcast %387 : vector<1x64xf32> to vector<12x64xf32>
    %409 = arith.addf %407, %408 : vector<12x64xf32>
    %c0_166 = arith.constant 0 : index
    %c0_167 = arith.constant 0 : index
    %410 = vector.load %arg25[%c0_166, %c0_167] : memref<64x32xbf16, #tpu.memory_space<vmem>>, vector<64x32xbf16>
    %411 = arith.truncf %409 : vector<12x64xf32> to vector<12x64xbf16>
    %cst_168 = arith.constant dense<0.000000e+00> : vector<12x32xf32>
    %412 = tpu.matmul %411, %410, %cst_168 {dimension_numbers = #tpu.dot_dimension_numbers<[1], [0], [0], [1], [0, 0, 1, 1], [], []>} : vector<12x64xbf16>, vector<64x32xbf16>, vector<12x32xf32> -> vector<12x32xf32>
    %c0_169 = arith.constant 0 : index
    %c0_170 = arith.constant 0 : index
    %413 = vector.load %arg26[%c0_169, %c0_170] : memref<1x32xf32, #tpu.memory_space<vmem>>, vector<1x32xf32>
    %414 = vector.broadcast %413 : vector<1x32xf32> to vector<12x32xf32>
    %415 = arith.addf %412, %414 : vector<12x32xf32>
    %416 = arith.subf %415, %31 : vector<12x32xf32>
    %417 = arith.mulf %416, %416 : vector<12x32xf32>
    %cst_171 = arith.constant -1.000000e+01 : f32
    %418 = vector.broadcast %cst_171 : f32 to vector<12x32xf32>
    %419 = arith.mulf %418, %417 : vector<12x32xf32>
    %420 = math.exp %419 : vector<12x32xf32>
    %cst_172 = arith.constant 1.000000e+00 : f32
    %421 = vector.broadcast %cst_172 : f32 to vector<12x32xf32>
    %422 = arith.subf %421, %420 : vector<12x32xf32>
    %cst_173 = arith.constant 2.000000e+00 : f32
    %423 = vector.broadcast %cst_173 : f32 to vector<12x32xf32>
    %424 = math.powf %422, %423 : vector<12x32xf32>
    %425 = arith.mulf %424, %417 : vector<12x32xf32>
    %cst_174 = arith.constant 0.000000e+00 : f32
    %426 = vector.broadcast %cst_174 : f32 to vector<12x32xf32>
    %427 = arith.select %16, %425, %426 : vector<12x32xi1>, vector<12x32xf32>
    %428 = vector.shape_cast %427 : vector<12x32xf32> to vector<1x12x32xf32>
    %cst_175 = arith.constant dense<0.000000e+00> : vector<1xf32>
    %429 = vector.multi_reduction <add>, %428, %cst_175 [1, 2] : vector<1x12x32xf32> to vector<1xf32>
    %430 = vector.shape_cast %429 : vector<1xf32> to vector<1x1x1xf32>
    %431 = vector.extract %430[0, 0, 0] : f32 from vector<1x1x1xf32>
    %cst_176 = arith.constant 2.560000e+02 : f32
    %432 = arith.divf %431, %cst_176 : f32
    %c0_177 = arith.constant 0 : index
    %c0_178 = arith.constant 0 : index
    %433 = memref.load %arg27[%c0_177, %c0_178] : memref<1x1xf32, #tpu.memory_space<smem>>
    memref.store %432, %arg27[%c0_177, %c0_178] : memref<1x1xf32, #tpu.memory_space<smem>>
    return
  }
}

</mosaic_0001>

<llo_original>
// kernel: tpu_custom_call.1
$region0: #{tpu_custom_call.1}
  #allocation0 [shape = 'u32[]', space=smem, size = 0x4, offset = 0x4, fixed_abs, tag = 'smem constant byte address 0x4 - core index']
  #allocation1 [shape = 'u32[144,128]{1,0:T(1,128)}', space=vmem, size = 0x12000, scoped, tag = 'internal scratch']
  %s0 = inlined_call_operand.vmem [shape: f32[12,256], index: 0, kind: input, shape index: {}]
  %s1 = inlined_call_operand.hbm [shape: f32[12,32], index: 1, kind: input, shape index: {}]
  %s2 = inlined_call_operand.hbm [shape: f32[2], index: 2, kind: input, shape index: {}]
  %s3 = inlined_call_operand.vmem [shape: f32[2,36], index: 3, kind: input, shape index: {}]
  %s4 = inlined_call_operand.vmem [shape: bf16[256,32], index: 4, kind: input, shape index: {}]
  %s5 = inlined_call_operand.hbm [shape: f32[1,32], index: 5, kind: input, shape index: {}]
  %s6 = inlined_call_operand.vmem [shape: bf16[36,64], index: 6, kind: input, shape index: {}]
  %s7 = inlined_call_operand.hbm [shape: f32[1,64], index: 7, kind: input, shape index: {}]
  %s8 = inlined_call_operand.hbm [shape: bf16[32,64], index: 8, kind: input, shape index: {}]
  %s9 = inlined_call_operand.hbm [shape: f32[1,64], index: 9, kind: input, shape index: {}]
  %s10 = inlined_call_operand.vmem [shape: f32[6,64], index: 10, kind: input, shape index: {}]
  %s11 = inlined_call_operand.vmem [shape: f32[2,1,64], index: 11, kind: input, shape index: {}]
  %s12 = inlined_call_operand.vmem [shape: f32[2,1,64], index: 12, kind: input, shape index: {}]
  %s13 = inlined_call_operand.vmem [shape: bf16[2,64,192], index: 13, kind: input, shape index: {}]
  %s14 = inlined_call_operand.vmem [shape: f32[2,1,192], index: 14, kind: input, shape index: {}]
  %s15 = inlined_call_operand.vmem [shape: bf16[2,64,64], index: 15, kind: input, shape index: {}]
  %s16 = inlined_call_operand.vmem [shape: f32[2,1,64], index: 16, kind: input, shape index: {}]
  %s17 = inlined_call_operand.vmem [shape: f32[2,1,64], index: 17, kind: input, shape index: {}]
  %s18 = inlined_call_operand.vmem [shape: f32[2,1,64], index: 18, kind: input, shape index: {}]
  %s19 = inlined_call_operand.vmem [shape: bf16[2,64,128], index: 19, kind: input, shape index: {}]
  %s20 = inlined_call_operand.vmem [shape: f32[2,1,128], index: 20, kind: input, shape index: {}]
  %s21 = inlined_call_operand.vmem [shape: bf16[2,128,64], index: 21, kind: input, shape index: {}]
  %s22 = inlined_call_operand.vmem [shape: f32[2,1,64], index: 22, kind: input, shape index: {}]
  %s23 = inlined_call_operand.vmem [shape: f32[1,64], index: 23, kind: input, shape index: {}]
  %s24 = inlined_call_operand.vmem [shape: f32[1,64], index: 24, kind: input, shape index: {}]
  %s25 = inlined_call_operand.vmem [shape: bf16[64,32], index: 25, kind: input, shape index: {}]
  %s26 = inlined_call_operand.vmem [shape: f32[1,32], index: 26, kind: input, shape index: {}]
  %s27 = inlined_call_operand.hbm [shape: f32[1,1], index: 27, kind: output, shape index: {}]
  %s28 = sld [smem:[#allocation0]]
  $region142: #{tpu_custom_call.1} parent=0
    _
  %s30 = ssub.s32 1, %s28
  %s31 = scalar_select 0, %s30, %s28
  $region1: #{tpu_custom_call.1} parent=0
    #allocation2 [shape = 'u8[8192]{0}', space=vmem, size = 0x2000, scoped, tag = 'input window, operand 1, single buffered']
    #allocation3 [shape = 's32[1]{0}', space=sflag, size = 0x4, scoped, tag = 'scoped memory for tpu_custom_call.1']
    #allocation4 [shape = 's32[1]{0}', space=sflag, size = 0x4, scoped, tag = 'scoped memory for tpu_custom_call.1']
    #allocation5 [shape = 's32[1]{0}', space=sflag, size = 0x4, scoped, tag = 'scoped memory for tpu_custom_call.1']
    #allocation6 [shape = 'u8[512]{0}', space=smem, size = 0x200, scoped, tag = 'input window, operand 2, single buffered']
    #allocation7 [shape = 'u8[512]{0}', space=vmem, size = 0x400, scoped, tag = 'input window, operand 5, single buffered']
    #allocation8 [shape = 's32[1]{0}', space=sflag, size = 0x4, scoped, tag = 'scoped memory for tpu_custom_call.1']
    #allocation9 [shape = 'u8[512]{0}', space=vmem, size = 0x400, scoped, tag = 'input window, operand 7, single buffered']
    #allocation10 [shape = 'u8[8192]{0}', space=vmem, size = 0x2000, scoped, tag = 'input window, operand 8, single buffered']
    #allocation11 [shape = 's32[1]{0}', space=sflag, size = 0x4, scoped, tag = 'scoped memory for tpu_custom_call.1']
    #allocation12 [shape = 'u8[512]{0}', space=vmem, size = 0x400, scoped, tag = 'input window, operand 9, single buffered']
    #allocation13 [shape = 'u8[512]{0}', space=smem, size = 0x200, scoped, tag = 'output window, operand 0, single buffered']
    %32 = vsyncpa [#allocation3], 0
    %33 = vsyncpa [#allocation4], 0
    %34 = vsyncpa [#allocation8], 0
    %35 = vsyncpa [#allocation11], 0
    %36 = vsyncpa [#allocation5], 0
    // Predicated region
    $region2: #{tpu_custom_call.1} parent=1 // pred_check
      _
    $region3: #{tpu_custom_call.1} parent=1 // pred_check_branch
      %38 = sbr.rel (0) target = $region5
    $region4: #{tpu_custom_call.1} parent=1 // pred_region
      _
    $region5: #{tpu_custom_call.1} parent=1 // pred_fallthru
      _
    // Predicated region
    $region6: #{tpu_custom_call.1} parent=1 // pred_check
      _
    $region7: #{tpu_custom_call.1} parent=1 // pred_check_branch
      %40 = sbr.rel (0) target = $region9
    $region8: #{tpu_custom_call.1} parent=1 // pred_region
      %s42 = ssub.s32 256, 256
      %43 = vsyncadd [#allocation3], %s42
      %s44 = sshll.u32 [#allocation2], 4
      %s45 = int_to_ptr.vmem [resolvable:$true] %s44
      %50 = dma.hbm_to_vmem [thread:$0]  %s1, 256, %s45, [#allocation3], 128, 128, 8
    $region9: #{tpu_custom_call.1} parent=1 // pred_fallthru
      _
    // Predicated region
    $region10: #{tpu_custom_call.1} parent=1 // pred_check
      _
    $region11: #{tpu_custom_call.1} parent=1 // pred_check_branch
      %52 = sbr.rel (0) target = $region13
    $region12: #{tpu_custom_call.1} parent=1 // pred_region
      %s54 = ssub.s32 16, 16
      %55 = vsyncadd [#allocation4], %s54
      %58 = dma.hbm_to_smem %s2, 16, [#allocation6], [#allocation4]
    $region13: #{tpu_custom_call.1} parent=1 // pred_fallthru
      _
    // Predicated region
    $region14: #{tpu_custom_call.1} parent=1 // pred_check
      _
    $region15: #{tpu_custom_call.1} parent=1 // pred_check_branch
      %60 = sbr.rel (0) target = $region17
    $region16: #{tpu_custom_call.1} parent=1 // pred_region
      _
    $region17: #{tpu_custom_call.1} parent=1 // pred_fallthru
      _
    // Predicated region
    $region18: #{tpu_custom_call.1} parent=1 // pred_check
      _
    $region19: #{tpu_custom_call.1} parent=1 // pred_check_branch
      %62 = sbr.rel (0) target = $region21
    $region20: #{tpu_custom_call.1} parent=1 // pred_region
      _
    $region21: #{tpu_custom_call.1} parent=1 // pred_fallthru
      _
    // Predicated region
    $region22: #{tpu_custom_call.1} parent=1 // pred_check
      _
    $region23: #{tpu_custom_call.1} parent=1 // pred_check_branch
      %64 = sbr.rel (0) target = $region25
    $region24: #{tpu_custom_call.1} parent=1 // pred_region
      %s66 = ssub.s32 16, 16
      %67 = vsyncadd [#allocation8], %s66
      %s69 = sshll.u32 [#allocation7], 4
      %s70 = int_to_ptr.vmem [resolvable:$true] %s69
      %72 = dma.hbm_to_vmem [thread:$0]  %s5, 16, %s70, [#allocation8]
    $region25: #{tpu_custom_call.1} parent=1 // pred_fallthru
      _
    // Predicated region
    $region26: #{tpu_custom_call.1} parent=1 // pred_check
      _
    $region27: #{tpu_custom_call.1} parent=1 // pred_check_branch
      %74 = sbr.rel (0) target = $region29
    $region28: #{tpu_custom_call.1} parent=1 // pred_region
      _
    $region29: #{tpu_custom_call.1} parent=1 // pred_fallthru
      _
    // Predicated region
    $region30: #{tpu_custom_call.1} parent=1 // pred_check
      _
    $region31: #{tpu_custom_call.1} parent=1 // pred_check_branch
      %76 = sbr.rel (0) target = $region33
    $region32: #{tpu_custom_call.1} parent=1 // pred_region
      %s78 = ssub.s32 16, 16
      %79 = vsyncadd [#allocation8], %s78
      %s81 = sshll.u32 [#allocation9], 4
      %s82 = int_to_ptr.vmem [resolvable:$true] %s81
      %84 = dma.hbm_to_vmem [thread:$0]  %s7, 16, %s82, [#allocation8]
    $region33: #{tpu_custom_call.1} parent=1 // pred_fallthru
      _
    // Predicated region
    $region34: #{tpu_custom_call.1} parent=1 // pred_check
      _
    $region35: #{tpu_custom_call.1} parent=1 // pred_check_branch
      %86 = sbr.rel (0) target = $region37
    $region36: #{tpu_custom_call.1} parent=1 // pred_region
      %s88 = ssub.s32 256, 256
      %89 = vsyncadd [#allocation11], %s88
      %s90 = sshll.u32 [#allocation10], 4
      %s91 = int_to_ptr.vmem [resolvable:$true] %s90
      %96 = dma.hbm_to_vmem [thread:$0]  %s8, 256, %s91, [#allocation11], 64, 64, 4
    $region37: #{tpu_custom_call.1} parent=1 // pred_fallthru
      _
    // Predicated region
    $region38: #{tpu_custom_call.1} parent=1 // pred_check
      _
    $region39: #{tpu_custom_call.1} parent=1 // pred_check_branch
      %98 = sbr.rel (0) target = $region41
    $region40: #{tpu_custom_call.1} parent=1 // pred_region
      %s100 = ssub.s32 16, 16
      %101 = vsyncadd [#allocation11], %s100
      %s103 = sshll.u32 [#allocation12], 4
      %s104 = int_to_ptr.vmem [resolvable:$true] %s103
      %106 = dma.hbm_to_vmem [thread:$0]  %s9, 16, %s104, [#allocation11]
    $region41: #{tpu_custom_call.1} parent=1 // pred_fallthru
      _
    // Predicated region
    $region42: #{tpu_custom_call.1} parent=1 // pred_check
      _
    $region43: #{tpu_custom_call.1} parent=1 // pred_check_branch
      %108 = sbr.rel (0) target = $region45
    $region44: #{tpu_custom_call.1} parent=1 // pred_region
      _
    $region45: #{tpu_custom_call.1} parent=1 // pred_fallthru
      _
    // Predicated region
    $region46: #{tpu_custom_call.1} parent=1 // pred_check
      _
    $region47: #{tpu_custom_call.1} parent=1 // pred_check_branch
      %110 = sbr.rel (0) target = $region49
    $region48: #{tpu_custom_call.1} parent=1 // pred_region
      _
    $region49: #{tpu_custom_call.1} parent=1 // pred_fallthru
      _
    // Predicated region
    $region50: #{tpu_custom_call.1} parent=1 // pred_check
      _
    $region51: #{tpu_custom_call.1} parent=1 // pred_check_branch
      %112 = sbr.rel (0) target = $region53
    $region52: #{tpu_custom_call.1} parent=1 // pred_region
      _
    $region53: #{tpu_custom_call.1} parent=1 // pred_fallthru
      _
    // Predicated region
    $region54: #{tpu_custom_call.1} parent=1 // pred_check
      _
    $region55: #{tpu_custom_call.1} parent=1 // pred_check_branch
      %114 = sbr.rel (0) target = $region57
    $region56: #{tpu_custom_call.1} parent=1 // pred_region
      _
    $region57: #{tpu_custom_call.1} parent=1 // pred_fallthru
      _
    // Predicated region
    $region58: #{tpu_custom_call.1} parent=1 // pred_check
      _
    $region59: #{tpu_custom_call.1} parent=1 // pred_check_branch
      %116 = sbr.rel (0) target = $region61
    $region60: #{tpu_custom_call.1} parent=1 // pred_region
      _
    $region61: #{tpu_custom_call.1} parent=1 // pred_fallthru
      _
    // Predicated region
    $region62: #{tpu_custom_call.1} parent=1 // pred_check
      _
    $region63: #{tpu_custom_call.1} parent=1 // pred_check_branch
      %118 = sbr.rel (0) target = $region65
    $region64: #{tpu_custom_call.1} parent=1 // pred_region
      _
    $region65: #{tpu_custom_call.1} parent=1 // pred_fallthru
      _
    // Predicated region
    $region66: #{tpu_custom_call.1} parent=1 // pred_check
      _
    $region67: #{tpu_custom_call.1} parent=1 // pred_check_branch
      %120 = sbr.rel (0) target = $region69
    $region68: #{tpu_custom_call.1} parent=1 // pred_region
      _
    $region69: #{tpu_custom_call.1} parent=1 // pred_fallthru
      _
    // Predicated region
    $region70: #{tpu_custom_call.1} parent=1 // pred_check
      _
    $region71: #{tpu_custom_call.1} parent=1 // pred_check_branch
      %122 = sbr.rel (0) target = $region73
    $region72: #{tpu_custom_call.1} parent=1 // pred_region
      _
    $region73: #{tpu_custom_call.1} parent=1 // pred_fallthru
      _
    // Predicated region
    $region74: #{tpu_custom_call.1} parent=1 // pred_check
      _
    $region75: #{tpu_custom_call.1} parent=1 // pred_check_branch
      %124 = sbr.rel (0) target = $region77
    $region76: #{tpu_custom_call.1} parent=1 // pred_region
      _
    $region77: #{tpu_custom_call.1} parent=1 // pred_fallthru
      _
    // Predicated region
    $region78: #{tpu_custom_call.1} parent=1 // pred_check
      _
    $region79: #{tpu_custom_call.1} parent=1 // pred_check_branch
      %126 = sbr.rel (0) target = $region81
    $region80: #{tpu_custom_call.1} parent=1 // pred_region
      _
    $region81: #{tpu_custom_call.1} parent=1 // pred_fallthru
      _
    // Predicated region
    $region82: #{tpu_custom_call.1} parent=1 // pred_check
      _
    $region83: #{tpu_custom_call.1} parent=1 // pred_check_branch
      %128 = sbr.rel (0) target = $region85
    $region84: #{tpu_custom_call.1} parent=1 // pred_region
      _
    $region85: #{tpu_custom_call.1} parent=1 // pred_fallthru
      _
    // Predicated region
    $region86: #{tpu_custom_call.1} parent=1 // pred_check
      _
    $region87: #{tpu_custom_call.1} parent=1 // pred_check_branch
      %130 = sbr.rel (0) target = $region89
    $region88: #{tpu_custom_call.1} parent=1 // pred_region
      _
    $region89: #{tpu_custom_call.1} parent=1 // pred_fallthru
      _
    // Predicated region
    $region90: #{tpu_custom_call.1} parent=1 // pred_check
      _
    $region91: #{tpu_custom_call.1} parent=1 // pred_check_branch
      %132 = sbr.rel (0) target = $region93
    $region92: #{tpu_custom_call.1} parent=1 // pred_region
      _
    $region93: #{tpu_custom_call.1} parent=1 // pred_fallthru
      _
    // Predicated region
    $region94: #{tpu_custom_call.1} parent=1 // pred_check
      _
    $region95: #{tpu_custom_call.1} parent=1 // pred_check_branch
      %134 = sbr.rel (0) target = $region97
    $region96: #{tpu_custom_call.1} parent=1 // pred_region
      _
    $region97: #{tpu_custom_call.1} parent=1 // pred_fallthru
      _
    // Predicated region
    $region98: #{tpu_custom_call.1} parent=1 // pred_check
      _
    $region99: #{tpu_custom_call.1} parent=1 // pred_check_branch
      %136 = sbr.rel (0) target = $region101
    $region100: #{tpu_custom_call.1} parent=1 // pred_region
      _
    $region101: #{tpu_custom_call.1} parent=1 // pred_fallthru
      _
    // Predicated region
    $region102: #{tpu_custom_call.1} parent=1 // pred_check
      _
    $region103: #{tpu_custom_call.1} parent=1 // pred_check_branch
      %138 = sbr.rel (0) target = $region105
    $region104: #{tpu_custom_call.1} parent=1 // pred_region
      _
    $region105: #{tpu_custom_call.1} parent=1 // pred_fallthru
      _
    // Predicated region
    $region106: #{tpu_custom_call.1} parent=1 // pred_check
      _
    $region107: #{tpu_custom_call.1} parent=1 // pred_check_branch
      %140 = sbr.rel (0) target = $region109
    $region108: #{tpu_custom_call.1} parent=1 // pred_region
      _
    $region109: #{tpu_custom_call.1} parent=1 // pred_fallthru
      _
    // Predicated region
    $region110: #{tpu_custom_call.1} parent=1 // pred_check
      _
    $region111: #{tpu_custom_call.1} parent=1 // pred_check_branch
      %142 = sbr.rel (0) target = $region113
    $region112: #{tpu_custom_call.1} parent=1 // pred_region
      %143 = dma.done [#allocation3], 256
    $region113: #{tpu_custom_call.1} parent=1 // pred_fallthru
      _
    // Predicated region
    $region114: #{tpu_custom_call.1} parent=1 // pred_check
      _
    $region115: #{tpu_custom_call.1} parent=1 // pred_check_branch
      %145 = sbr.rel (0) target = $region117
    $region116: #{tpu_custom_call.1} parent=1 // pred_region
      %146 = dma.done [#allocation4], 16
    $region117: #{tpu_custom_call.1} parent=1 // pred_fallthru
      _
    // Predicated region
    $region118: #{tpu_custom_call.1} parent=1 // pred_check
      _
    $region119: #{tpu_custom_call.1} parent=1 // pred_check_branch
      %148 = sbr.rel (0) target = $region121
    $region120: #{tpu_custom_call.1} parent=1 // pred_region
      %149 = dma.done [#allocation8], 16
    $region121: #{tpu_custom_call.1} parent=1 // pred_fallthru
      _
    // Predicated region
    $region122: #{tpu_custom_call.1} parent=1 // pred_check
      _
    $region123: #{tpu_custom_call.1} parent=1 // pred_check_branch
      %151 = sbr.rel (0) target = $region125
    $region124: #{tpu_custom_call.1} parent=1 // pred_region
      %152 = dma.done [#allocation8], 16
    $region125: #{tpu_custom_call.1} parent=1 // pred_fallthru
      _
    // Predicated region
    $region126: #{tpu_custom_call.1} parent=1 // pred_check
      _
    $region127: #{tpu_custom_call.1} parent=1 // pred_check_branch
      %154 = sbr.rel (0) target = $region129
    $region128: #{tpu_custom_call.1} parent=1 // pred_region
      %155 = dma.done [#allocation11], 256
    $region129: #{tpu_custom_call.1} parent=1 // pred_fallthru
      _
    // Predicated region
    $region130: #{tpu_custom_call.1} parent=1 // pred_check
      _
    $region131: #{tpu_custom_call.1} parent=1 // pred_check_branch
      %157 = sbr.rel (0) target = $region133
    $region132: #{tpu_custom_call.1} parent=1 // pred_region
      %158 = dma.done [#allocation11], 16
    $region133: #{tpu_custom_call.1} parent=1 // pred_fallthru
      _
    %159 = sfence
    %v161 = vlaneseq
    %v162 = vshrl.u32 %v161, 7
    %v163 = vadd.s32 %v162, 8
    %s164 = sld [smem:[#allocation6]]
    %v165 = vstv %s164
    %v166 = vadd.f32 %v165, 0.0
    %vm167 = vcmp.ge.s32.totalorder %v162, 6
    %vm168 = vcmp.ge.s32.totalorder %v163, 6
    %v169 = vsub.s32 %v162, 6
    %v170 = vsub.s32 %v163, 6
    %v171 = vsel %vm167, %v169, %v162
    %v172 = vsel %vm168, %v170, %v163
    %s173 = sld [smem:[#allocation6 + $0x1]]
    %v174 = vstv %s173
    %v175 = vsel %vm167, %v174, %v166
    %v176 = vsel %vm168, %v174, %v166
    %vm177 = vcmp.ge.s32.totalorder %v171, 2
    %vm178 = vcmp.ge.s32.totalorder %v172, 2
    %v179 = vld [vmem:[%s0] sm:$0xff]
    %v180 = vld [vmem:[%s0 + $0x8] sm:$0xff]
    %v181 = vld [vmem:[%s0 + $0x10] sm:$0xf]
    %v182 = vld [vmem:[%s0 + $0x18] sm:$0xf]
    %v183 = vld [vmem:[%s4] sm:$0xf]
    %v184 = vld [vmem:[%s4 + $0x4] sm:$0xf]
    %v185 = vld [vmem:[%s4 + $0x8] sm:$0xf]
    %v186 = vld [vmem:[%s4 + $0xc] sm:$0xf]
    %v187 = vld [vmem:[%s4 + $0x10] sm:$0xf]
    %v188 = vld [vmem:[%s4 + $0x14] sm:$0xf]
    %v189 = vld [vmem:[%s4 + $0x18] sm:$0xf]
    %v190 = vld [vmem:[%s4 + $0x1c] sm:$0xf]
    %v191 = vld [vmem:[%s4 + $0x20] sm:$0xf]
    %v192 = vld [vmem:[%s4 + $0x24] sm:$0xf]
    %v193 = vld [vmem:[%s4 + $0x28] sm:$0xf]
    %v194 = vld [vmem:[%s4 + $0x2c] sm:$0xf]
    %v195 = vld [vmem:[%s4 + $0x30] sm:$0xf]
    %v196 = vld [vmem:[%s4 + $0x34] sm:$0xf]
    %v197 = vld [vmem:[%s4 + $0x38] sm:$0xf]
    %v198 = vld [vmem:[%s4 + $0x3c] sm:$0xf]
    %v199 = vld [vmem:[%s4 + $0x40] sm:$0xf]
    %v200 = vld [vmem:[%s4 + $0x44] sm:$0xf]
    %v201 = vld [vmem:[%s4 + $0x48] sm:$0xf]
    %v202 = vld [vmem:[%s4 + $0x4c] sm:$0xf]
    %v203 = vld [vmem:[%s4 + $0x50] sm:$0xf]
    %v204 = vld [vmem:[%s4 + $0x54] sm:$0xf]
    %v205 = vld [vmem:[%s4 + $0x58] sm:$0xf]
    %v206 = vld [vmem:[%s4 + $0x5c] sm:$0xf]
    %v207 = vld [vmem:[%s4 + $0x60] sm:$0xf]
    %v208 = vld [vmem:[%s4 + $0x64] sm:$0xf]
    %v209 = vld [vmem:[%s4 + $0x68] sm:$0xf]
    %v210 = vld [vmem:[%s4 + $0x6c] sm:$0xf]
    %v211 = vld [vmem:[%s4 + $0x70] sm:$0xf]
    %v212 = vld [vmem:[%s4 + $0x74] sm:$0xf]
    %v213 = vld [vmem:[%s4 + $0x78] sm:$0xf]
    %v214 = vld [vmem:[%s4 + $0x7c] sm:$0xf]
    %v215 = vpack.c.bf16 %v181, %v179
    %v216 = vpack.c.bf16 %v182, %v180
    %v217 = vld [vmem:[#allocation7] sm:$0x1]
    %v219 = vlaneseq
    %v220 = vshrl.u32 %v219, 7
    %v221 = vsub.s32 0, %v220
    %v222 = vrot.slane %v217, %v221
    %v256 = vunpack.c.l.b16 %v183
    %v257 = vunpack.c.l.b16 %v184
    %v258 = vunpack.c.l.b16 %v185
    %v259 = vunpack.c.l.b16 %v186
    %v260 = vunpack.c.l.b16 %v187
    %v261 = vunpack.c.l.b16 %v188
    %v262 = vunpack.c.l.b16 %v189
    %v263 = vunpack.c.l.b16 %v190
    %v264 = vunpack.c.l.b16 %v191
    %v265 = vunpack.c.l.b16 %v192
    %v266 = vunpack.c.l.b16 %v193
    %v267 = vunpack.c.l.b16 %v194
    %v268 = vunpack.c.l.b16 %v195
    %v269 = vunpack.c.l.b16 %v196
    %v270 = vunpack.c.l.b16 %v197
    %v271 = vunpack.c.l.b16 %v198
    %v272 = vunpack.c.l.b16 %v199
    %v273 = vunpack.c.l.b16 %v200
    %v274 = vunpack.c.l.b16 %v201
    %v275 = vunpack.c.l.b16 %v202
    %v276 = vunpack.c.l.b16 %v203
    %v277 = vunpack.c.l.b16 %v204
    %v278 = vunpack.c.l.b16 %v205
    %v279 = vunpack.c.l.b16 %v206
    %v280 = vunpack.c.l.b16 %v207
    %v281 = vunpack.c.l.b16 %v208
    %v282 = vunpack.c.l.b16 %v209
    %v283 = vunpack.c.l.b16 %v210
    %v284 = vunpack.c.l.b16 %v211
    %v285 = vunpack.c.l.b16 %v212
    %v286 = vunpack.c.l.b16 %v213
    %v287 = vunpack.c.l.b16 %v214
    %v288 = vpack.c.b16 %v257, %v256
    %v289 = vpack.c.b16 %v259, %v258
    %v290 = vpack.c.b16 %v261, %v260
    %v291 = vpack.c.b16 %v263, %v262
    %v292 = vpack.c.b16 %v265, %v264
    %v293 = vpack.c.b16 %v267, %v266
    %v294 = vpack.c.b16 %v269, %v268
    %v295 = vpack.c.b16 %v271, %v270
    %v296 = vpack.c.b16 %v273, %v272
    %v297 = vpack.c.b16 %v275, %v274
    %v298 = vpack.c.b16 %v277, %v276
    %v299 = vpack.c.b16 %v279, %v278
    %v300 = vpack.c.b16 %v281, %v280
    %v301 = vpack.c.b16 %v283, %v282
    %v302 = vpack.c.b16 %v285, %v284
    %v303 = vpack.c.b16 %v287, %v286
    %320 = vmatprep.subr.bf16.mxu0 0
    %321 = vmatpush1.bf16.msra.mxu0 %v288
    %322 = vmatprep.subr.bf16.mxu0 0
    %323 = vmatpush1.bf16.msra.mxu0 %v289
    %324 = vmatprep.subr.bf16.mxu0 0
    %325 = vmatpush1.bf16.msra.mxu0 %v290
    %326 = vmatprep.subr.bf16.mxu0 0
    %327 = vmatpush1.bf16.msra.mxu0 %v291
    %328 = vmatprep.subr.bf16.mxu0 0
    %329 = vmatpush1.bf16.msra.mxu0 %v292
    %330 = vmatprep.subr.bf16.mxu0 0
    %331 = vmatpush1.bf16.msra.mxu0 %v293
    %332 = vmatprep.subr.bf16.mxu0 0
    %333 = vmatpush1.bf16.msra.mxu0 %v294
    %334 = vmatprep.subr.bf16.mxu0 0
    %335 = vmatpush1.bf16.msra.mxu0 %v295
    %336 = vmatprep.subr.bf16.mxu0 0
    %337 = vmatpush1.bf16.msra.mxu0 %v296
    %338 = vmatprep.subr.bf16.mxu0 0
    %339 = vmatpush1.bf16.msra.mxu0 %v297
    %340 = vmatprep.subr.bf16.mxu0 0
    %341 = vmatpush1.bf16.msra.mxu0 %v298
    %342 = vmatprep.subr.bf16.mxu0 0
    %343 = vmatpush1.bf16.msra.mxu0 %v299
    %344 = vmatprep.subr.bf16.mxu0 0
    %345 = vmatpush1.bf16.msra.mxu0 %v300
    %346 = vmatprep.subr.bf16.mxu0 0
    %347 = vmatpush1.bf16.msra.mxu0 %v301
    %348 = vmatprep.subr.bf16.mxu0 0
    %349 = vmatpush1.bf16.msra.mxu0 %v302
    %350 = vmatprep.subr.bf16.mxu0 0
    %351 = vmatpush1.bf16.msra.mxu0 %v303
    %352 = vmatprep.mubr.bf16.mxu0 %v216
    %353 = vmatmul.mubr.bf16.gmra.mrb[0].mxu0 %v215
    %v354 = vpop.f32.mrb[0].mxu0
    %v355 = vadd.f32 %v222, %v354
    %v356 = vpop.f32.mrb[0].mxu0
    %v357 = vpop.f32.mrb[0].mxu0
    %v358 = vadd.f32 %v222, %v357
    %v359 = vpop.f32.mrb[0].mxu0
    %360 = vdwg.mxu0
    %v361 = vld [vmem:[#allocation2] sm:$0xff]
    %v362 = vld [vmem:[#allocation2 + $0x8] sm:$0xf]
    %v363 = vsub.f32 1.0, %v175
    %v364 = vsub.f32 1.0, %v176
    %v365 = vmul.f32 %v363, %v361
    %v366 = vmul.f32 %v364, %v362
    %v367 = vmul.f32 %v175, %v355
    %v368 = vmul.f32 %v176, %v358
    %v369 = vadd.f32 %v365, %v367
    %v370 = vadd.f32 %v366, %v368
    %v371 = vsel %vm177, %v369, %v355
    %v372 = vsel %vm178, %v370, %v358
    %v373 = vsub.f32 %v355, %v361
    %v374 = vsub.f32 %v358, %v362
    %v375 = vld [vmem:[%s3] sm:$0x3]
    %v376 = vld [vmem:[%s6] sm:$0xf]
    %v377 = vld [vmem:[%s6 + $0x4] sm:$0xf]
    %v378 = vld [vmem:[%s6 + $0x8] sm:$0xf]
    %v379 = vld [vmem:[%s6 + $0xc] sm:$0xf]
    %v380 = vld [vmem:[%s6 + $0x10] sm:$0x3]
    %v381 = vpack.c.bf16 %v375, %v375
    %v382 = vld [vmem:[#allocation9] sm:$0x1]
    %v384 = vlaneseq
    %v385 = vshrl.u32 %v384, 7
    %v386 = vsub.s32 0, %v385
    %v387 = vrot.slane %v382, %v386
    %v394 = vunpack.c.l.b16 %v376
    %v395 = vunpack.c.l.b16 %v377
    %v396 = vunpack.c.l.b16 %v378
    %v397 = vunpack.c.l.b16 %v379
    %v398 = vunpack.c.l.b16 %v380
    %v399 = vpack.c.b16 %v395, %v394
    %v400 = vpack.c.b16 %v397, %v396
    %v401 = vpack.c.b16 %v398, %v398
    %vm404 = vcmask 293888
    %v406 = vsel %vm404, %v381, 0
    %vm408 = vcmask 1041408
    %v410 = vsel %vm408, %v401, 0
    %412 = vmatprep.subr.bf16.mxu0 0
    %413 = vmatpush1.bf16.msra.mxu0 %v399
    %414 = vmatprep.subr.bf16.mxu0 0
    %415 = vmatpush1.bf16.msra.mxu0 %v400
    %416 = vmatprep.subr.bf16.mxu0 0
    %417 = vmatpush1.bf16.msra.mxu0 %v410
    %418 = vmatprep.subr.bf16.mxu0 0
    %419 = vmatpush1.bf16.msra.mxu0 0
    %420 = vmatprep.subr.bf16.mxu0 0
    %421 = vmatpush1.bf16.msra.mxu0 0
    %422 = vmatprep.subr.bf16.mxu0 0
    %423 = vmatpush1.bf16.msra.mxu0 0
    %424 = vmatprep.subr.bf16.mxu0 0
    %425 = vmatpush1.bf16.msra.mxu0 0
    %426 = vmatprep.subr.bf16.mxu0 0
    %427 = vmatpush1.bf16.msra.mxu0 0
    %428 = vmatprep.subr.bf16.mxu0 0
    %429 = vmatpush1.bf16.msra.mxu0 0
    %430 = vmatprep.subr.bf16.mxu0 0
    %431 = vmatpush1.bf16.msra.mxu0 0
    %432 = vmatprep.subr.bf16.mxu0 0
    %433 = vmatpush1.bf16.msra.mxu0 0
    %434 = vmatprep.subr.bf16.mxu0 0
    %435 = vmatpush1.bf16.msra.mxu0 0
    %436 = vmatprep.subr.bf16.mxu0 0
    %437 = vmatpush1.bf16.msra.mxu0 0
    %438 = vmatprep.subr.bf16.mxu0 0
    %439 = vmatpush1.bf16.msra.mxu0 0
    %440 = vmatprep.subr.bf16.mxu0 0
    %441 = vmatpush1.bf16.msra.mxu0 0
    %442 = vmatprep.subr.bf16.mxu0 0
    %443 = vmatpush1.bf16.msra.mxu0 0
    %444 = vmatprep.mubr.bf16.mxu0 0
    %445 = vmatmul.mubr.bf16.gmra.mrb[0].mxu0 %v406
    %v446 = vpop.f32.mrb[0].mxu0
    %v447 = vadd.f32 %v387, %v446
    %v448 = vpop.f32.mrb[0].mxu0
    %v449 = vpop.f32.mrb[0].mxu0
    %v450 = vpop.f32.mrb[0].mxu0
    %451 = vdwg.mxu0
    %v452 = vld [vmem:[#allocation10] sm:$0xf]
    %v453 = vld [vmem:[#allocation10 + $0x4] sm:$0xf]
    %v454 = vld [vmem:[#allocation10 + $0x8] sm:$0xf]
    %v455 = vld [vmem:[#allocation10 + $0xc] sm:$0xf]
    %v456 = vpack.c.bf16 %v372, %v371
    %v457 = vld [vmem:[#allocation12] sm:$0x1]
    %v459 = vlaneseq
    %v460 = vshrl.u32 %v459, 7
    %v461 = vsub.s32 0, %v460
    %v462 = vrot.slane %v457, %v461
    %v468 = vunpack.c.l.b16 %v452
    %v469 = vunpack.c.l.b16 %v453
    %v470 = vunpack.c.l.b16 %v454
    %v471 = vunpack.c.l.b16 %v455
    %v472 = vpack.c.b16 %v469, %v468
    %v473 = vpack.c.b16 %v471, %v470
    %vm476 = vcmask 261120
    %v478 = vsel %vm476, %v456, 0
    %480 = vmatprep.subr.bf16.mxu0 0
    %481 = vmatpush1.bf16.msra.mxu0 %v472
    %482 = vmatprep.subr.bf16.mxu0 0
    %483 = vmatpush1.bf16.msra.mxu0 %v473
    %484 = vmatprep.subr.bf16.mxu0 0
    %485 = vmatpush1.bf16.msra.mxu0 0
    %486 = vmatprep.subr.bf16.mxu0 0
    %487 = vmatpush1.bf16.msra.mxu0 0
    %488 = vmatprep.subr.bf16.mxu0 0
    %489 = vmatpush1.bf16.msra.mxu0 0
    %490 = vmatprep.subr.bf16.mxu0 0
    %491 = vmatpush1.bf16.msra.mxu0 0
    %492 = vmatprep.subr.bf16.mxu0 0
    %493 = vmatpush1.bf16.msra.mxu0 0
    %494 = vmatprep.subr.bf16.mxu0 0
    %495 = vmatpush1.bf16.msra.mxu0 0
    %496 = vmatprep.subr.bf16.mxu0 0
    %497 = vmatpush1.bf16.msra.mxu0 0
    %498 = vmatprep.subr.bf16.mxu0 0
    %499 = vmatpush1.bf16.msra.mxu0 0
    %500 = vmatprep.subr.bf16.mxu0 0
    %501 = vmatpush1.bf16.msra.mxu0 0
    %502 = vmatprep.subr.bf16.mxu0 0
    %503 = vmatpush1.bf16.msra.mxu0 0
    %504 = vmatprep.subr.bf16.mxu0 0
    %505 = vmatpush1.bf16.msra.mxu0 0
    %506 = vmatprep.subr.bf16.mxu0 0
    %507 = vmatpush1.bf16.msra.mxu0 0
    %508 = vmatprep.subr.bf16.mxu0 0
    %509 = vmatpush1.bf16.msra.mxu0 0
    %510 = vmatprep.subr.bf16.mxu0 0
    %511 = vmatpush1.bf16.msra.mxu0 0
    %512 = vmatprep.mubr.bf16.mxu0 0
    %513 = vmatmul.mubr.bf16.gmra.mrb[0].mxu0 %v478
    %v514 = vpop.f32.mrb[0].mxu0
    %v515 = vadd.f32 %v462, %v514
    %v516 = vpop.f32.mrb[0].mxu0
    %v517 = vpop.f32.mrb[0].mxu0
    %v518 = vadd.f32 %v462, %v517
    %v519 = vpop.f32.mrb[0].mxu0
    %520 = vdwg.mxu0
    %v523 = vcombine.high %v515, %v515
    %v525 = vunpack.c.l.s4 1983009808
    %v526 = vunpack.c.0.s8 %v525
    %v527 = vlaneseq
    %v528 = vshrl.u32 %v527, 7
    %v529 = vsub.s32 %v526, %v528
    %v530 = vrot.slane %v515, %v529
    %v532 = vunpack.c.l.s4 1983009808
    %v533 = vunpack.c.0.s8 %v532
    %v534 = vlaneseq
    %v535 = vshrl.u32 %v534, 7
    %v536 = vsub.s32 %v533, %v535
    %v537 = vrot.slane %v523, %v536
    %v538 = vcombine.high %v530, %v530
    %v539 = vcombine.high %v537, %v537
    %v541 = vunpack.c.l.s4 1983009808
    %v542 = vunpack.c.0.s8 %v541
    %v543 = vlaneseq
    %v544 = vshrl.u32 %v543, 7
    %v545 = vsub.s32 %v542, %v544
    %v546 = vrot.slane %v518, %v545
    %v547 = vcombine.high %v546, %v546
    %v554 = vld [vmem:[%s10] sm:$0x3f]
    %v556 = vcombine.high %v554, %v554
    %v558 = vunpack.c.l.s4 1983009808
    %v559 = vunpack.c.0.s8 %v558
    %v560 = vlaneseq
    %v561 = vshrl.u32 %v560, 7
    %v562 = vsub.s32 %v559, %v561
    %v563 = vrot.slane %v554, %v562
    %v565 = vunpack.c.l.s4 1983009808
    %v566 = vunpack.c.0.s8 %v565
    %v567 = vlaneseq
    %v568 = vshrl.u32 %v567, 7
    %v569 = vsub.s32 %v566, %v568
    %v570 = vrot.slane %v556, %v569
    %v571 = vcombine.high %v563, %v563
    %v575 = vadd.f32 %v530, %v563
    %v576 = vadd.f32 %v538, %v571
    %v577 = vadd.f32 %v537, %v570
    %v578 = vadd.f32 %v539, %v563
    %v579 = vadd.f32 %v546, %v571
    %v580 = vadd.f32 %v547, %v570
    %v583 = vunpack.c.l.s4 1966171168
    %v584 = vunpack.c.0.s8 %v583
    %v585 = vlaneseq
    %v586 = vshrl.u32 %v585, 7
    %v587 = vsub.s32 %v584, %v586
    %v588 = vrot.slane %v447, %v587
    %v589 = vcombine.high %v588, %v588
    %v591 = vunpack.c.l.s4 1966171168
    %v592 = vunpack.c.0.s8 %v591
    %v593 = vlaneseq
    %v594 = vshrl.u32 %v593, 7
    %v595 = vsub.s32 %v592, %v594
    %v596 = vrot.slane %v588, %v595
    %v598 = vunpack.c.l.s4 1966171168
    %v599 = vunpack.c.0.s8 %v598
    %v600 = vlaneseq
    %v601 = vshrl.u32 %v600, 7
    %v602 = vsub.s32 %v599, %v601
    %v603 = vrot.slane %v589, %v602
    %v604 = vlaneseq
    %v605 = vshrl.u32 %v604, 7
    %v606 = vsub.s32 0, %v605
    %v607 = vrot.slane %v596, %v606
    %v608 = vlaneseq
    %v609 = vshrl.u32 %v608, 7
    %v610 = vsub.s32 0, %v609
    %v611 = vrot.slane %v603, %v610
    %v612 = vcombine.high %v607, %v607
    %v614 = vunpack.c.l.s4 1983009808
    %v615 = vunpack.c.0.s8 %v614
    %v616 = vlaneseq
    %v617 = vshrl.u32 %v616, 7
    %v618 = vsub.s32 %v615, %v617
    %v619 = vrot.slane %v607, %v618
    %v621 = vunpack.c.l.s4 1983009808
    %v622 = vunpack.c.0.s8 %v621
    %v623 = vlaneseq
    %v624 = vshrl.u32 %v623, 7
    %v625 = vsub.s32 %v622, %v624
    %v626 = vrot.slane %v612, %v625
    %v627 = vcombine.high %v619, %v619
    %v628 = vcombine.high %v611, %v611
    %v630 = vunpack.c.l.s4 1983009808
    %v631 = vunpack.c.0.s8 %v630
    %v632 = vlaneseq
    %v633 = vshrl.u32 %v632, 7
    %v634 = vsub.s32 %v631, %v633
    %v635 = vrot.slane %v611, %v634
    %v637 = vunpack.c.l.s4 1983009808
    %v638 = vunpack.c.0.s8 %v637
    %v639 = vlaneseq
    %v640 = vshrl.u32 %v639, 7
    %v641 = vsub.s32 %v638, %v640
    %v642 = vrot.slane %v628, %v641
    %v643 = vcombine.high %v635, %v635
    %v650 = vadd.f32 %v575, %v619
    %v651 = vadd.f32 %v576, %v627
    %v652 = vadd.f32 %v577, %v626
    %v653 = vadd.f32 %v578, %v635
    %v654 = vadd.f32 %v579, %v643
    %v655 = vadd.f32 %v580, %v642
    %v656 = vlaneseq
    %v657 = vand.u32 %v656, 127
    %v658 = vsub.s32 %v162, %v657
    %vm659 = vcmp.lt.s32.totalorder %v658, 0
    %v660 = vsub.s32 0, %v658
    %v661 = vsel %vm659, %v660, %v658
    %vm662 = vcmp.le.s32.totalorder %v661, 3
    %v663 = vsel %vm662, 0.0, -1e+30
    %vm664 = vcmp.ge.s32.totalorder %v657, 0
    %vm665 = vcmp.lt.s32.totalorder %v657, 32
    %vm666 = vmand %vm664, %vm665
    %v667 = vsel %vm666, 1, 0
    %v668 = vcvt.s32.f32 %v667
    %vm669 = vcmp.ge.s32.totalorder %v657, 32
    %vm670 = vcmp.lt.s32.totalorder %v657, 64
    %vm671 = vmand %vm669, %vm670
    %v672 = vsel %vm671, 1, 0
    %v673 = vcvt.s32.f32 %v672
    %v674 = vld [vmem:[%s11] sm:$0x1]
    %v675 = vld [vmem:[%s12] sm:$0x1]
    %v682 = vcombine.low %v650, %v651
    %v683 = vcombine.low %v652, %v653
    %v685 = vunpack.c.l.s4 1983009808
    %v686 = vunpack.c.0.s8 %v685
    %v687 = vlaneseq
    %v688 = vshrl.u32 %v687, 7
    %v689 = vsub.s32 %v686, %v688
    %v690 = vrot.slane %v682, %v689
    %v692 = vunpack.c.l.s4 1983009808
    %v693 = vunpack.c.0.s8 %v692
    %v694 = vlaneseq
    %v695 = vshrl.u32 %v694, 7
    %v696 = vsub.s32 %v693, %v695
    %v697 = vrot.slane %v683, %v696
    %v698 = vcombine.low %v690, %v697
    %v699 = vcombine.low %v654, %v655
    %v701 = vunpack.c.l.s4 1983009808
    %v702 = vunpack.c.0.s8 %v701
    %v703 = vlaneseq
    %v704 = vshrl.u32 %v703, 7
    %v705 = vsub.s32 %v702, %v704
    %v706 = vrot.slane %v699, %v705
    %vm709 = vcmask 523264
    %v710 = vsel %vm709, %v698, 0.0
    %711 = vadd.xlane.f32.xlu0 %v710
    %v712 = vpop.xlane.xlu0 %711
    %vm713 = vcmask 519168
    %v714 = vsel %vm713, %v706, 0.0
    %715 = vadd.xlane.f32.xlu0 %v714
    %v716 = vpop.xlane.xlu0 %715
    %v717 = vrcp.pop 64.0
    %v718 = vmul.f32 %v712, %v717
    %v719 = vmul.f32 %v716, %v717
    %v723 = vunpack.c.l.s4 269488144
    %v724 = vunpack.c.0.s8 %v723
    %v725 = vlaneseq
    %v726 = vshrl.u32 %v725, 7
    %v727 = vsub.s32 %v724, %v726
    %v728 = vrot.slane %v718, %v727
    %v730 = vunpack.c.l.s4 842150450
    %v731 = vunpack.c.0.s8 %v730
    %v732 = vlaneseq
    %v733 = vshrl.u32 %v732, 7
    %v734 = vsub.s32 %v731, %v733
    %v735 = vrot.slane %v718, %v734
    %v737 = vunpack.c.l.s4 1414812756
    %v738 = vunpack.c.0.s8 %v737
    %v739 = vlaneseq
    %v740 = vshrl.u32 %v739, 7
    %v741 = vsub.s32 %v738, %v740
    %v742 = vrot.slane %v718, %v741
    %v744 = vunpack.c.l.s4 1987475062
    %v745 = vunpack.c.0.s8 %v744
    %v746 = vlaneseq
    %v747 = vshrl.u32 %v746, 7
    %v748 = vsub.s32 %v745, %v747
    %v749 = vrot.slane %v718, %v748
    %v751 = vunpack.c.l.s4 269488144
    %v752 = vunpack.c.0.s8 %v751
    %v753 = vlaneseq
    %v754 = vshrl.u32 %v753, 7
    %v755 = vsub.s32 %v752, %v754
    %v756 = vrot.slane %v719, %v755
    %v758 = vunpack.c.l.s4 842150450
    %v759 = vunpack.c.0.s8 %v758
    %v760 = vlaneseq
    %v761 = vshrl.u32 %v760, 7
    %v762 = vsub.s32 %v759, %v761
    %v763 = vrot.slane %v719, %v762
    %v770 = vsub.f32 %v650, %v728
    %v771 = vsub.f32 %v651, %v735
    %v772 = vsub.f32 %v652, %v742
    %v773 = vsub.f32 %v653, %v749
    %v774 = vsub.f32 %v654, %v756
    %v775 = vsub.f32 %v655, %v763
    %v776 = vmul.f32 %v770, %v770
    %v777 = vmul.f32 %v771, %v771
    %v778 = vmul.f32 %v772, %v772
    %v779 = vmul.f32 %v773, %v773
    %v780 = vmul.f32 %v774, %v774
    %v781 = vmul.f32 %v775, %v775
    %v788 = vcombine.low %v776, %v777
    %v789 = vcombine.low %v778, %v779
    %v791 = vunpack.c.l.s4 1983009808
    %v792 = vunpack.c.0.s8 %v791
    %v793 = vlaneseq
    %v794 = vshrl.u32 %v793, 7
    %v795 = vsub.s32 %v792, %v794
    %v796 = vrot.slane %v788, %v795
    %v798 = vunpack.c.l.s4 1983009808
    %v799 = vunpack.c.0.s8 %v798
    %v800 = vlaneseq
    %v801 = vshrl.u32 %v800, 7
    %v802 = vsub.s32 %v799, %v801
    %v803 = vrot.slane %v789, %v802
    %v804 = vcombine.low %v796, %v803
    %v805 = vcombine.low %v780, %v781
    %v807 = vunpack.c.l.s4 1983009808
    %v808 = vunpack.c.0.s8 %v807
    %v809 = vlaneseq
    %v810 = vshrl.u32 %v809, 7
    %v811 = vsub.s32 %v808, %v810
    %v812 = vrot.slane %v805, %v811
    %v815 = vsel %vm709, %v804, 0.0
    %816 = vadd.xlane.f32.xlu0 %v815
    %v817 = vpop.xlane.xlu0 %816
    %v818 = vsel %vm713, %v812, 0.0
    %819 = vadd.xlane.f32.xlu0 %v818
    %v820 = vpop.xlane.xlu0 %819
    %v821 = vmul.f32 %v817, %v717
    %v822 = vmul.f32 %v820, %v717
    %v823 = vadd.f32 %v821, 1e-05
    %v824 = vadd.f32 %v822, 1e-05
    %v825 = vrsqrt.pop %v823
    %v826 = vrsqrt.pop %v824
    %v830 = vunpack.c.l.s4 269488144
    %v831 = vunpack.c.0.s8 %v830
    %v832 = vlaneseq
    %v833 = vshrl.u32 %v832, 7
    %v834 = vsub.s32 %v831, %v833
    %v835 = vrot.slane %v825, %v834
    %v837 = vunpack.c.l.s4 842150450
    %v838 = vunpack.c.0.s8 %v837
    %v839 = vlaneseq
    %v840 = vshrl.u32 %v839, 7
    %v841 = vsub.s32 %v838, %v840
    %v842 = vrot.slane %v825, %v841
    %v844 = vunpack.c.l.s4 1414812756
    %v845 = vunpack.c.0.s8 %v844
    %v846 = vlaneseq
    %v847 = vshrl.u32 %v846, 7
    %v848 = vsub.s32 %v845, %v847
    %v849 = vrot.slane %v825, %v848
    %v851 = vunpack.c.l.s4 1987475062
    %v852 = vunpack.c.0.s8 %v851
    %v853 = vlaneseq
    %v854 = vshrl.u32 %v853, 7
    %v855 = vsub.s32 %v852, %v854
    %v856 = vrot.slane %v825, %v855
    %v858 = vunpack.c.l.s4 269488144
    %v859 = vunpack.c.0.s8 %v858
    %v860 = vlaneseq
    %v861 = vshrl.u32 %v860, 7
    %v862 = vsub.s32 %v859, %v861
    %v863 = vrot.slane %v826, %v862
    %v865 = vunpack.c.l.s4 842150450
    %v866 = vunpack.c.0.s8 %v865
    %v867 = vlaneseq
    %v868 = vshrl.u32 %v867, 7
    %v869 = vsub.s32 %v866, %v868
    %v870 = vrot.slane %v826, %v869
    %v877 = vmul.f32 %v770, %v835
    %v878 = vmul.f32 %v771, %v842
    %v879 = vmul.f32 %v772, %v849
    %v880 = vmul.f32 %v773, %v856
    %v881 = vmul.f32 %v774, %v863
    %v882 = vmul.f32 %v775, %v870
    %v884 = vlaneseq
    %v885 = vshrl.u32 %v884, 7
    %v886 = vsub.s32 0, %v885
    %v887 = vrot.slane %v674, %v886
    %v888 = vcombine.high %v887, %v887
    %v890 = vunpack.c.l.s4 1983009808
    %v891 = vunpack.c.0.s8 %v890
    %v892 = vlaneseq
    %v893 = vshrl.u32 %v892, 7
    %v894 = vsub.s32 %v891, %v893
    %v895 = vrot.slane %v887, %v894
    %v897 = vunpack.c.l.s4 1983009808
    %v898 = vunpack.c.0.s8 %v897
    %v899 = vlaneseq
    %v900 = vshrl.u32 %v899, 7
    %v901 = vsub.s32 %v898, %v900
    %v902 = vrot.slane %v888, %v901
    %v903 = vcombine.high %v895, %v895
    %v904 = vcombine.high %v902, %v902
    %v909 = vmul.f32 %v877, %v895
    %v910 = vmul.f32 %v878, %v903
    %v911 = vmul.f32 %v879, %v902
    %v912 = vmul.f32 %v880, %v904
    %v913 = vmul.f32 %v881, %v895
    %v914 = vmul.f32 %v882, %v903
    %v916 = vlaneseq
    %v917 = vshrl.u32 %v916, 7
    %v918 = vsub.s32 0, %v917
    %v919 = vrot.slane %v675, %v918
    %v920 = vcombine.high %v919, %v919
    %v922 = vunpack.c.l.s4 1983009808
    %v923 = vunpack.c.0.s8 %v922
    %v924 = vlaneseq
    %v925 = vshrl.u32 %v924, 7
    %v926 = vsub.s32 %v923, %v925
    %v927 = vrot.slane %v919, %v926
    %v929 = vunpack.c.l.s4 1983009808
    %v930 = vunpack.c.0.s8 %v929
    %v931 = vlaneseq
    %v932 = vshrl.u32 %v931, 7
    %v933 = vsub.s32 %v930, %v932
    %v934 = vrot.slane %v920, %v933
    %v935 = vcombine.high %v927, %v927
    %v936 = vcombine.high %v934, %v934
    %v941 = vadd.f32 %v909, %v927
    %v942 = vadd.f32 %v910, %v935
    %v943 = vadd.f32 %v911, %v934
    %v944 = vadd.f32 %v912, %v936
    %v945 = vadd.f32 %v913, %v927
    %v946 = vadd.f32 %v914, %v935
    %v947 = vld [vmem:[%s13] sm:$0xff]
    %v948 = vld [vmem:[%s13 + $0x8] sm:$0xff]
    %v949 = vld [vmem:[%s13 + $0x10] sm:$0xff]
    %v950 = vld [vmem:[%s13 + $0x18] sm:$0xff]
    %v951 = vld [vmem:[%s13 + $0x20] sm:$0xff]
    %v952 = vld [vmem:[%s13 + $0x28] sm:$0xff]
    %v953 = vld [vmem:[%s13 + $0x30] sm:$0xff]
    %v954 = vld [vmem:[%s13 + $0x38] sm:$0xff]
    %v961 = vcombine.low %v941, %v942
    %v962 = vcombine.low %v943, %v944
    %v964 = vunpack.c.l.s4 1983009808
    %v965 = vunpack.c.0.s8 %v964
    %v966 = vlaneseq
    %v967 = vshrl.u32 %v966, 7
    %v968 = vsub.s32 %v965, %v967
    %v969 = vrot.slane %v961, %v968
    %v971 = vunpack.c.l.s4 1983009808
    %v972 = vunpack.c.0.s8 %v971
    %v973 = vlaneseq
    %v974 = vshrl.u32 %v973, 7
    %v975 = vsub.s32 %v972, %v974
    %v976 = vrot.slane %v962, %v975
    %v977 = vcombine.low %v969, %v976
    %v978 = vcombine.low %v945, %v946
    %v980 = vunpack.c.l.s4 1983009808
    %v981 = vunpack.c.0.s8 %v980
    %v982 = vlaneseq
    %v983 = vshrl.u32 %v982, 7
    %v984 = vsub.s32 %v981, %v983
    %v985 = vrot.slane %v978, %v984
    %v988 = vpack.c.bf16 %v985, %v977
    %v989 = vld [vmem:[%s14] sm:$0x3]
    %v991 = vlaneseq
    %v992 = vshrl.u32 %v991, 7
    %v993 = vsub.s32 0, %v992
    %v994 = vrot.slane %v989, %v993
    %v995 = vlaneseq
    %v996 = vshrl.u32 %v995, 7
    %v997 = vsub.s32 1, %v996
    %v998 = vrot.slane %v989, %v997
    %v1009 = vunpack.c.l.b16 %v947
    %v1010 = vunpack.c.h.b16 %v947
    %v1011 = vunpack.c.l.b16 %v948
    %v1012 = vunpack.c.h.b16 %v948
    %v1013 = vunpack.c.l.b16 %v949
    %v1014 = vunpack.c.h.b16 %v949
    %v1015 = vunpack.c.l.b16 %v950
    %v1016 = vunpack.c.h.b16 %v950
    %v1017 = vunpack.c.l.b16 %v951
    %v1018 = vunpack.c.h.b16 %v951
    %v1019 = vunpack.c.l.b16 %v952
    %v1020 = vunpack.c.h.b16 %v952
    %v1021 = vunpack.c.l.b16 %v953
    %v1022 = vunpack.c.h.b16 %v953
    %v1023 = vunpack.c.l.b16 %v954
    %v1024 = vunpack.c.h.b16 %v954
    %v1025 = vpack.c.b16 %v1011, %v1009
    %v1026 = vpack.c.b16 %v1012, %v1010
    %v1027 = vpack.c.b16 %v1015, %v1013
    %v1028 = vpack.c.b16 %v1016, %v1014
    %v1029 = vpack.c.b16 %v1019, %v1017
    %v1030 = vpack.c.b16 %v1020, %v1018
    %v1031 = vpack.c.b16 %v1023, %v1021
    %v1032 = vpack.c.b16 %v1024, %v1022
    %v1042 = vsel %vm709, %v988, 0
    %1044 = vmatprep.subr.bf16.mxu0 %v1026
    %1045 = vmatpush1.bf16.msra.mxu0 %v1025
    %1046 = vmatprep.subr.bf16.mxu0 %v1028
    %1047 = vmatpush1.bf16.msra.mxu0 %v1027
    %1048 = vmatprep.subr.bf16.mxu0 %v1030
    %1049 = vmatpush1.bf16.msra.mxu0 %v1029
    %1050 = vmatprep.subr.bf16.mxu0 %v1032
    %1051 = vmatpush1.bf16.msra.mxu0 %v1031
    %1052 = vmatprep.subr.bf16.mxu0 0
    %1053 = vmatpush1.bf16.msra.mxu0 0
    %1054 = vmatprep.subr.bf16.mxu0 0
    %1055 = vmatpush1.bf16.msra.mxu0 0
    %1056 = vmatprep.subr.bf16.mxu0 0
    %1057 = vmatpush1.bf16.msra.mxu0 0
    %1058 = vmatprep.subr.bf16.mxu0 0
    %1059 = vmatpush1.bf16.msra.mxu0 0
    %1060 = vmatprep.subr.bf16.mxu0 0
    %1061 = vmatpush1.bf16.msra.mxu0 0
    %1062 = vmatprep.subr.bf16.mxu0 0
    %1063 = vmatpush1.bf16.msra.mxu0 0
    %1064 = vmatprep.subr.bf16.mxu0 0
    %1065 = vmatpush1.bf16.msra.mxu0 0
    %1066 = vmatprep.subr.bf16.mxu0 0
    %1067 = vmatpush1.bf16.msra.mxu0 0
    %1068 = vmatprep.subr.bf16.mxu0 0
    %1069 = vmatpush1.bf16.msra.mxu0 0
    %1070 = vmatprep.subr.bf16.mxu0 0
    %1071 = vmatpush1.bf16.msra.mxu0 0
    %1072 = vmatprep.subr.bf16.mxu0 0
    %1073 = vmatpush1.bf16.msra.mxu0 0
    %1074 = vmatprep.subr.bf16.mxu0 0
    %1075 = vmatpush1.bf16.msra.mxu0 0
    %1076 = vmatprep.mubr.bf16.mxu0 0
    %1077 = vmatmul.mubr.bf16.gmra.mrb[0].mxu0 %v1042
    %v1078 = vpop.f32.mrb[0].mxu0
    %v1079 = vadd.f32 %v994, %v1078
    %v1080 = vpop.f32.mrb[0].mxu0
    %v1081 = vadd.f32 %v998, %v1080
    %v1082 = vpop.f32.mrb[0].mxu0
    %v1083 = vadd.f32 %v994, %v1082
    %v1084 = vpop.f32.mrb[0].mxu0
    %v1085 = vadd.f32 %v998, %v1084
    %1086 = vdwg.mxu0
    %v1091 = vcombine.low %v1079, %v1081
    %v1092 = vcombine.high %v1079, %v1081
    %v1094 = vunpack.c.l.s4 1983009808
    %v1095 = vunpack.c.0.s8 %v1094
    %v1096 = vlaneseq
    %v1097 = vshrl.u32 %v1096, 7
    %v1098 = vsub.s32 %v1095, %v1097
    %v1099 = vrot.slane %v1091, %v1098
    %v1101 = vunpack.c.l.s4 1983009808
    %v1102 = vunpack.c.0.s8 %v1101
    %v1103 = vlaneseq
    %v1104 = vshrl.u32 %v1103, 7
    %v1105 = vsub.s32 %v1102, %v1104
    %v1106 = vrot.slane %v1092, %v1105
    %v1107 = vcombine.high %v1099, %v1099
    %v1108 = vcombine.high %v1106, %v1106
    %v1109 = vcombine.low %v1083, %v1085
    %v1111 = vunpack.c.l.s4 1983009808
    %v1112 = vunpack.c.0.s8 %v1111
    %v1113 = vlaneseq
    %v1114 = vshrl.u32 %v1113, 7
    %v1115 = vsub.s32 %v1112, %v1114
    %v1116 = vrot.slane %v1109, %v1115
    %v1117 = vcombine.high %v1116, %v1116
    %v1124 = vmul.f32 %v1099, 0.17677669
    %v1125 = vmul.f32 %v1107, 0.17677669
    %v1126 = vmul.f32 %v1106, 0.17677669
    %v1127 = vmul.f32 %v1108, 0.17677669
    %v1128 = vmul.f32 %v1116, 0.17677669
    %v1129 = vmul.f32 %v1117, 0.17677669
    %v1130 = vcombine.low %v1099, %v1107
    %v1132 = vunpack.c.l.s4 1983009808
    %v1133 = vunpack.c.0.s8 %v1132
    %v1134 = vlaneseq
    %v1135 = vshrl.u32 %v1134, 7
    %v1136 = vsub.s32 %v1133, %v1135
    %v1137 = vrot.slane %v1130, %v1136
    %v1139 = vunpack.c.l.s4 1983009808
    %v1140 = vunpack.c.0.s8 %v1139
    %v1141 = vlaneseq
    %v1142 = vshrl.u32 %v1141, 7
    %v1143 = vsub.s32 %v1140, %v1142
    %v1144 = vrot.slane %v1106, %v1143
    %v1145 = vcombine.low %v1137, %v1144
    %v1146 = vcombine.low %v1108, %v1116
    %v1148 = vunpack.c.l.s4 1983009808
    %v1149 = vunpack.c.0.s8 %v1148
    %v1150 = vlaneseq
    %v1151 = vshrl.u32 %v1150, 7
    %v1152 = vsub.s32 %v1149, %v1151
    %v1153 = vrot.slane %v1146, %v1152
    %v1155 = vunpack.c.l.s4 1983009808
    %v1156 = vunpack.c.0.s8 %v1155
    %v1157 = vlaneseq
    %v1158 = vshrl.u32 %v1157, 7
    %v1159 = vsub.s32 %v1156, %v1158
    %v1160 = vrot.slane %v1117, %v1159
    %v1161 = vcombine.low %v1153, %v1160
    %v1164 = vpack.c.bf16 %v1145, %v1145
    %v1165 = vpack.c.bf16 %v1161, %v1161
    %v1166 = vcombine.high %v1137, %v1144
    %v1167 = vcombine.high %v1153, %v1160
    %v1170 = vpack.c.bf16 %v1166, %v1166
    %v1171 = vpack.c.bf16 %v1167, %v1167
    %v1173 = vcombine.high %v668, %v668
    %v1175 = vunpack.c.l.s4 1983009808
    %v1176 = vunpack.c.0.s8 %v1175
    %v1177 = vlaneseq
    %v1178 = vshrl.u32 %v1177, 7
    %v1179 = vsub.s32 %v1176, %v1178
    %v1180 = vrot.slane %v668, %v1179
    %v1182 = vunpack.c.l.s4 1983009808
    %v1183 = vunpack.c.0.s8 %v1182
    %v1184 = vlaneseq
    %v1185 = vshrl.u32 %v1184, 7
    %v1186 = vsub.s32 %v1183, %v1185
    %v1187 = vrot.slane %v1173, %v1186
    %v1188 = vcombine.high %v1180, %v1180
    %v1192 = vmul.f32 %v1124, %v1180
    %v1193 = vmul.f32 %v1125, %v1188
    %v1194 = vmul.f32 %v1126, %v1187
    %v1195 = vmul.f32 %v1127, %v1180
    %v1196 = vmul.f32 %v1128, %v1188
    %v1197 = vmul.f32 %v1129, %v1187
    %v1204 = vcombine.low %v1192, %v1193
    %v1206 = vunpack.c.l.s4 1983009808
    %v1207 = vunpack.c.0.s8 %v1206
    %v1208 = vlaneseq
    %v1209 = vshrl.u32 %v1208, 7
    %v1210 = vsub.s32 %v1207, %v1209
    %v1211 = vrot.slane %v1204, %v1210
    %v1213 = vunpack.c.l.s4 1983009808
    %v1214 = vunpack.c.0.s8 %v1213
    %v1215 = vlaneseq
    %v1216 = vshrl.u32 %v1215, 7
    %v1217 = vsub.s32 %v1214, %v1216
    %v1218 = vrot.slane %v1194, %v1217
    %v1219 = vcombine.low %v1211, %v1218
    %v1220 = vcombine.low %v1195, %v1196
    %v1222 = vunpack.c.l.s4 1983009808
    %v1223 = vunpack.c.0.s8 %v1222
    %v1224 = vlaneseq
    %v1225 = vshrl.u32 %v1224, 7
    %v1226 = vsub.s32 %v1223, %v1225
    %v1227 = vrot.slane %v1220, %v1226
    %v1229 = vunpack.c.l.s4 1983009808
    %v1230 = vunpack.c.0.s8 %v1229
    %v1231 = vlaneseq
    %v1232 = vshrl.u32 %v1231, 7
    %v1233 = vsub.s32 %v1230, %v1232
    %v1234 = vrot.slane %v1197, %v1233
    %v1235 = vcombine.low %v1227, %v1234
    %v1238 = vpack.c.bf16 %v1219, %v1219
    %v1239 = vpack.c.bf16 %v1235, %v1235
    %1241 = vrot.lane.b32.xlu0 %v1164, 64
    %v1242 = vpop.permute.xlu0 %1241
    %v1244 = vsel %vm709, %v1238, 0
    %v1247 = vsel %vm709, %v1242, 0
    %1249 = vmatprep.subr.bf16.mxu0 0
    %1250 = vmatpush1.bf16.xpose.msra.mxu0 %v1247
    %1251 = vmatprep.subr.bf16.mxu0 0
    %1252 = vmatpush1.bf16.xpose.msra.mxu0 0
    %1253 = vmatprep.subr.bf16.mxu0 0
    %1254 = vmatpush1.bf16.xpose.msra.mxu0 0
    %1255 = vmatprep.subr.bf16.mxu0 0
    %1256 = vmatpush1.bf16.xpose.msra.mxu0 0
    %1257 = vmatprep.subr.bf16.mxu0 0
    %1258 = vmatpush1.bf16.xpose.msra.mxu0 0
    %1259 = vmatprep.subr.bf16.mxu0 0
    %1260 = vmatpush1.bf16.xpose.msra.mxu0 0
    %1261 = vmatprep.subr.bf16.mxu0 0
    %1262 = vmatpush1.bf16.xpose.msra.mxu0 0
    %1263 = vmatprep.subr.bf16.mxu0 0
    %1264 = vmatpush1.bf16.xpose.msra.mxu0 0
    %1265 = vmatprep.subr.bf16.mxu0 0
    %1266 = vmatpush1.bf16.xpose.msra.mxu0 0
    %1267 = vmatprep.subr.bf16.mxu0 0
    %1268 = vmatpush1.bf16.xpose.msra.mxu0 0
    %1269 = vmatprep.subr.bf16.mxu0 0
    %1270 = vmatpush1.bf16.xpose.msra.mxu0 0
    %1271 = vmatprep.subr.bf16.mxu0 0
    %1272 = vmatpush1.bf16.xpose.msra.mxu0 0
    %1273 = vmatprep.subr.bf16.mxu0 0
    %1274 = vmatpush1.bf16.xpose.msra.mxu0 0
    %1275 = vmatprep.subr.bf16.mxu0 0
    %1276 = vmatpush1.bf16.xpose.msra.mxu0 0
    %1277 = vmatprep.subr.bf16.mxu0 0
    %1278 = vmatpush1.bf16.xpose.msra.mxu0 0
    %1279 = vmatprep.subr.bf16.mxu0 0
    %1280 = vmatpush1.bf16.xpose.msra.mxu0 0
    %1281 = vmatprep.mubr.bf16.mxu0 0
    %1282 = vmatmul.mubr.bf16.gmra.mrb[0].mxu0 %v1244
    %v1283 = vpop.f32.mrb[0].mxu0
    %v1284 = vadd.f32 %v663, %v1283
    %v1285 = vpop.f32.mrb[0].mxu0
    %v1286 = vpop.f32.mrb[0].mxu0
    %v1287 = vpop.f32.mrb[0].mxu0
    %1288 = vdwg.mxu0
    %1290 = vrot.lane.b32.xlu0 %v1165, 64
    %v1291 = vpop.permute.xlu0 %1290
    %v1293 = vsel %vm709, %v1239, 0
    %v1296 = vsel %vm709, %v1291, 0
    %1298 = vmatprep.subr.bf16.mxu0 0
    %1299 = vmatpush1.bf16.xpose.msra.mxu0 %v1296
    %1300 = vmatprep.subr.bf16.mxu0 0
    %1301 = vmatpush1.bf16.xpose.msra.mxu0 0
    %1302 = vmatprep.subr.bf16.mxu0 0
    %1303 = vmatpush1.bf16.xpose.msra.mxu0 0
    %1304 = vmatprep.subr.bf16.mxu0 0
    %1305 = vmatpush1.bf16.xpose.msra.mxu0 0
    %1306 = vmatprep.subr.bf16.mxu0 0
    %1307 = vmatpush1.bf16.xpose.msra.mxu0 0
    %1308 = vmatprep.subr.bf16.mxu0 0
    %1309 = vmatpush1.bf16.xpose.msra.mxu0 0
    %1310 = vmatprep.subr.bf16.mxu0 0
    %1311 = vmatpush1.bf16.xpose.msra.mxu0 0
    %1312 = vmatprep.subr.bf16.mxu0 0
    %1313 = vmatpush1.bf16.xpose.msra.mxu0 0
    %1314 = vmatprep.subr.bf16.mxu0 0
    %1315 = vmatpush1.bf16.xpose.msra.mxu0 0
    %1316 = vmatprep.subr.bf16.mxu0 0
    %1317 = vmatpush1.bf16.xpose.msra.mxu0 0
    %1318 = vmatprep.subr.bf16.mxu0 0
    %1319 = vmatpush1.bf16.xpose.msra.mxu0 0
    %1320 = vmatprep.subr.bf16.mxu0 0
    %1321 = vmatpush1.bf16.xpose.msra.mxu0 0
    %1322 = vmatprep.subr.bf16.mxu0 0
    %1323 = vmatpush1.bf16.xpose.msra.mxu0 0
    %1324 = vmatprep.subr.bf16.mxu0 0
    %1325 = vmatpush1.bf16.xpose.msra.mxu0 0
    %1326 = vmatprep.subr.bf16.mxu0 0
    %1327 = vmatpush1.bf16.xpose.msra.mxu0 0
    %1328 = vmatprep.subr.bf16.mxu0 0
    %1329 = vmatpush1.bf16.xpose.msra.mxu0 0
    %1330 = vmatprep.mubr.bf16.mxu0 0
    %1331 = vmatmul.mubr.bf16.gmra.mrb[0].mxu0 %v1293
    %v1332 = vpop.f32.mrb[0].mxu0
    %v1333 = vadd.f32 %v663, %v1332
    %v1334 = vpop.f32.mrb[0].mxu0
    %v1335 = vpop.f32.mrb[0].mxu0
    %v1336 = vpop.f32.mrb[0].mxu0
    %1337 = vdwg.mxu0
    %vm1338 = vcmask 46080
    %v1339 = vsel %vm1338, %v1284, -inf
    %1340 = vmax.xlane.f32.xlu0 %v1339
    %v1341 = vpop.xlane.xlu0 %1340
    %v1342 = vsel %vm1338, %v1333, -inf
    %1343 = vmax.xlane.f32.xlu0 %v1342
    %v1344 = vpop.xlane.xlu0 %1343
    %v1345 = vsub.f32 %v1284, %v1341
    %v1346 = vsub.f32 %v1333, %v1344
    %v1347 = vmul.f32 %v1345, 1.442695
    %v1348 = vpow.pop %v1347
    %v1349 = vmul.f32 %v1346, 1.442695
    %v1350 = vpow.pop %v1349
    %v1351 = vsel %vm1338, %v1348, 0.0
    %1352 = vadd.xlane.f32.xlu0 %v1351
    %v1353 = vpop.xlane.xlu0 %1352
    %v1354 = vsel %vm1338, %v1350, 0.0
    %1355 = vadd.xlane.f32.xlu0 %v1354
    %v1356 = vpop.xlane.xlu0 %1355
    %v1357 = vrcp.pop %v1353
    %v1358 = vrcp.pop %v1356
    %v1359 = vmul.f32 %v1348, %v1357
    %v1360 = vmul.f32 %v1350, %v1358
    %v1361 = vpack.c.bf16 %v1359, %v1359
    %v1362 = vpack.c.bf16 %v1360, %v1360
    %vm1363 = vcmask 48128
    %v1365 = vsel %vm1363, %v1361, 0
    %vm1367 = vcmask 1042432
    %v1369 = vsel %vm1367, %v1170, 0
    %1371 = vmatprep.subr.bf16.mxu0 0
    %1372 = vmatpush1.bf16.msra.mxu0 %v1369
    %1373 = vmatprep.subr.bf16.mxu0 0
    %1374 = vmatpush1.bf16.msra.mxu0 0
    %1375 = vmatprep.subr.bf16.mxu0 0
    %1376 = vmatpush1.bf16.msra.mxu0 0
    %1377 = vmatprep.subr.bf16.mxu0 0
    %1378 = vmatpush1.bf16.msra.mxu0 0
    %1379 = vmatprep.subr.bf16.mxu0 0
    %1380 = vmatpush1.bf16.msra.mxu0 0
    %1381 = vmatprep.subr.bf16.mxu0 0
    %1382 = vmatpush1.bf16.msra.mxu0 0
    %1383 = vmatprep.subr.bf16.mxu0 0
    %1384 = vmatpush1.bf16.msra.mxu0 0
    %1385 = vmatprep.subr.bf16.mxu0 0
    %1386 = vmatpush1.bf16.msra.mxu0 0
    %1387 = vmatprep.subr.bf16.mxu0 0
    %1388 = vmatpush1.bf16.msra.mxu0 0
    %1389 = vmatprep.subr.bf16.mxu0 0
    %1390 = vmatpush1.bf16.msra.mxu0 0
    %1391 = vmatprep.subr.bf16.mxu0 0
    %1392 = vmatpush1.bf16.msra.mxu0 0
    %1393 = vmatprep.subr.bf16.mxu0 0
    %1394 = vmatpush1.bf16.msra.mxu0 0
    %1395 = vmatprep.subr.bf16.mxu0 0
    %1396 = vmatpush1.bf16.msra.mxu0 0
    %1397 = vmatprep.subr.bf16.mxu0 0
    %1398 = vmatpush1.bf16.msra.mxu0 0
    %1399 = vmatprep.subr.bf16.mxu0 0
    %1400 = vmatpush1.bf16.msra.mxu0 0
    %1401 = vmatprep.subr.bf16.mxu0 0
    %1402 = vmatpush1.bf16.msra.mxu0 0
    %1403 = vmatprep.mubr.bf16.mxu0 0
    %1404 = vmatmul.mubr.bf16.gmra.mrb[0].mxu0 %v1365
    %v1405 = vpop.f32.mrb[0].mxu0
    %v1406 = vadd.f32 0.0, %v1405
    %v1407 = vpop.f32.mrb[0].mxu0
    %v1408 = vpop.f32.mrb[0].mxu0
    %v1409 = vpop.f32.mrb[0].mxu0
    %1410 = vdwg.mxu0
    %v1412 = vsel %vm1363, %v1362, 0
    %v1415 = vsel %vm1367, %v1171, 0
    %1417 = vmatprep.subr.bf16.mxu0 0
    %1418 = vmatpush1.bf16.msra.mxu0 %v1415
    %1419 = vmatprep.subr.bf16.mxu0 0
    %1420 = vmatpush1.bf16.msra.mxu0 0
    %1421 = vmatprep.subr.bf16.mxu0 0
    %1422 = vmatpush1.bf16.msra.mxu0 0
    %1423 = vmatprep.subr.bf16.mxu0 0
    %1424 = vmatpush1.bf16.msra.mxu0 0
    %1425 = vmatprep.subr.bf16.mxu0 0
    %1426 = vmatpush1.bf16.msra.mxu0 0
    %1427 = vmatprep.subr.bf16.mxu0 0
    %1428 = vmatpush1.bf16.msra.mxu0 0
    %1429 = vmatprep.subr.bf16.mxu0 0
    %1430 = vmatpush1.bf16.msra.mxu0 0
    %1431 = vmatprep.subr.bf16.mxu0 0
    %1432 = vmatpush1.bf16.msra.mxu0 0
    %1433 = vmatprep.subr.bf16.mxu0 0
    %1434 = vmatpush1.bf16.msra.mxu0 0
    %1435 = vmatprep.subr.bf16.mxu0 0
    %1436 = vmatpush1.bf16.msra.mxu0 0
    %1437 = vmatprep.subr.bf16.mxu0 0
    %1438 = vmatpush1.bf16.msra.mxu0 0
    %1439 = vmatprep.subr.bf16.mxu0 0
    %1440 = vmatpush1.bf16.msra.mxu0 0
    %1441 = vmatprep.subr.bf16.mxu0 0
    %1442 = vmatpush1.bf16.msra.mxu0 0
    %1443 = vmatprep.subr.bf16.mxu0 0
    %1444 = vmatpush1.bf16.msra.mxu0 0
    %1445 = vmatprep.subr.bf16.mxu0 0
    %1446 = vmatpush1.bf16.msra.mxu0 0
    %1447 = vmatprep.subr.bf16.mxu0 0
    %1448 = vmatpush1.bf16.msra.mxu0 0
    %1449 = vmatprep.mubr.bf16.mxu0 0
    %1450 = vmatmul.mubr.bf16.gmra.mrb[0].mxu0 %v1412
    %v1451 = vpop.f32.mrb[0].mxu0
    %v1452 = vadd.f32 0.0, %v1451
    %v1453 = vpop.f32.mrb[0].mxu0
    %v1454 = vpop.f32.mrb[0].mxu0
    %v1455 = vpop.f32.mrb[0].mxu0
    %1456 = vdwg.mxu0
    %v1457 = vmul.f32 %v1406, %v668
    %v1458 = vmul.f32 %v1452, %v668
    %v1459 = vadd.f32 %v1457, 0.0
    %v1460 = vadd.f32 %v1458, 0.0
    %v1462 = vcombine.high %v673, %v673
    %v1464 = vunpack.c.l.s4 1983009808
    %v1465 = vunpack.c.0.s8 %v1464
    %v1466 = vlaneseq
    %v1467 = vshrl.u32 %v1466, 7
    %v1468 = vsub.s32 %v1465, %v1467
    %v1469 = vrot.slane %v673, %v1468
    %v1471 = vunpack.c.l.s4 1983009808
    %v1472 = vunpack.c.0.s8 %v1471
    %v1473 = vlaneseq
    %v1474 = vshrl.u32 %v1473, 7
    %v1475 = vsub.s32 %v1472, %v1474
    %v1476 = vrot.slane %v1462, %v1475
    %v1477 = vcombine.high %v1469, %v1469
    %v1481 = vmul.f32 %v1124, %v1469
    %v1482 = vmul.f32 %v1125, %v1477
    %v1483 = vmul.f32 %v1126, %v1476
    %v1484 = vmul.f32 %v1127, %v1469
    %v1485 = vmul.f32 %v1128, %v1477
    %v1486 = vmul.f32 %v1129, %v1476
    %v1493 = vcombine.low %v1481, %v1482
    %v1495 = vunpack.c.l.s4 1983009808
    %v1496 = vunpack.c.0.s8 %v1495
    %v1497 = vlaneseq
    %v1498 = vshrl.u32 %v1497, 7
    %v1499 = vsub.s32 %v1496, %v1498
    %v1500 = vrot.slane %v1493, %v1499
    %v1502 = vunpack.c.l.s4 1983009808
    %v1503 = vunpack.c.0.s8 %v1502
    %v1504 = vlaneseq
    %v1505 = vshrl.u32 %v1504, 7
    %v1506 = vsub.s32 %v1503, %v1505
    %v1507 = vrot.slane %v1483, %v1506
    %v1508 = vcombine.low %v1500, %v1507
    %v1509 = vcombine.low %v1484, %v1485
    %v1511 = vunpack.c.l.s4 1983009808
    %v1512 = vunpack.c.0.s8 %v1511
    %v1513 = vlaneseq
    %v1514 = vshrl.u32 %v1513, 7
    %v1515 = vsub.s32 %v1512, %v1514
    %v1516 = vrot.slane %v1509, %v1515
    %v1518 = vunpack.c.l.s4 1983009808
    %v1519 = vunpack.c.0.s8 %v1518
    %v1520 = vlaneseq
    %v1521 = vshrl.u32 %v1520, 7
    %v1522 = vsub.s32 %v1519, %v1521
    %v1523 = vrot.slane %v1486, %v1522
    %v1524 = vcombine.low %v1516, %v1523
    %v1527 = vpack.c.bf16 %v1508, %v1508
    %v1528 = vpack.c.bf16 %v1524, %v1524
    %v1530 = vsel %vm709, %v1527, 0
    %1532 = vmatprep.subr.bf16.mxu0 0
    %1533 = vmatpush1.bf16.xpose.msra.mxu0 %v1247
    %1534 = vmatprep.subr.bf16.mxu0 0
    %1535 = vmatpush1.bf16.xpose.msra.mxu0 0
    %1536 = vmatprep.subr.bf16.mxu0 0
    %1537 = vmatpush1.bf16.xpose.msra.mxu0 0
    %1538 = vmatprep.subr.bf16.mxu0 0
    %1539 = vmatpush1.bf16.xpose.msra.mxu0 0
    %1540 = vmatprep.subr.bf16.mxu0 0
    %1541 = vmatpush1.bf16.xpose.msra.mxu0 0
    %1542 = vmatprep.subr.bf16.mxu0 0
    %1543 = vmatpush1.bf16.xpose.msra.mxu0 0
    %1544 = vmatprep.subr.bf16.mxu0 0
    %1545 = vmatpush1.bf16.xpose.msra.mxu0 0
    %1546 = vmatprep.subr.bf16.mxu0 0
    %1547 = vmatpush1.bf16.xpose.msra.mxu0 0
    %1548 = vmatprep.subr.bf16.mxu0 0
    %1549 = vmatpush1.bf16.xpose.msra.mxu0 0
    %1550 = vmatprep.subr.bf16.mxu0 0
    %1551 = vmatpush1.bf16.xpose.msra.mxu0 0
    %1552 = vmatprep.subr.bf16.mxu0 0
    %1553 = vmatpush1.bf16.xpose.msra.mxu0 0
    %1554 = vmatprep.subr.bf16.mxu0 0
    %1555 = vmatpush1.bf16.xpose.msra.mxu0 0
    %1556 = vmatprep.subr.bf16.mxu0 0
    %1557 = vmatpush1.bf16.xpose.msra.mxu0 0
    %1558 = vmatprep.subr.bf16.mxu0 0
    %1559 = vmatpush1.bf16.xpose.msra.mxu0 0
    %1560 = vmatprep.subr.bf16.mxu0 0
    %1561 = vmatpush1.bf16.xpose.msra.mxu0 0
    %1562 = vmatprep.subr.bf16.mxu0 0
    %1563 = vmatpush1.bf16.xpose.msra.mxu0 0
    %1564 = vmatprep.mubr.bf16.mxu0 0
    %1565 = vmatmul.mubr.bf16.gmra.mrb[0].mxu0 %v1530
    %v1566 = vpop.f32.mrb[0].mxu0
    %v1567 = vadd.f32 %v663, %v1566
    %v1568 = vpop.f32.mrb[0].mxu0
    %v1569 = vpop.f32.mrb[0].mxu0
    %v1570 = vpop.f32.mrb[0].mxu0
    %1571 = vdwg.mxu0
    %v1573 = vsel %vm709, %v1528, 0
    %1575 = vmatprep.subr.bf16.mxu0 0
    %1576 = vmatpush1.bf16.xpose.msra.mxu0 %v1296
    %1577 = vmatprep.subr.bf16.mxu0 0
    %1578 = vmatpush1.bf16.xpose.msra.mxu0 0
    %1579 = vmatprep.subr.bf16.mxu0 0
    %1580 = vmatpush1.bf16.xpose.msra.mxu0 0
    %1581 = vmatprep.subr.bf16.mxu0 0
    %1582 = vmatpush1.bf16.xpose.msra.mxu0 0
    %1583 = vmatprep.subr.bf16.mxu0 0
    %1584 = vmatpush1.bf16.xpose.msra.mxu0 0
    %1585 = vmatprep.subr.bf16.mxu0 0
    %1586 = vmatpush1.bf16.xpose.msra.mxu0 0
    %1587 = vmatprep.subr.bf16.mxu0 0
    %1588 = vmatpush1.bf16.xpose.msra.mxu0 0
    %1589 = vmatprep.subr.bf16.mxu0 0
    %1590 = vmatpush1.bf16.xpose.msra.mxu0 0
    %1591 = vmatprep.subr.bf16.mxu0 0
    %1592 = vmatpush1.bf16.xpose.msra.mxu0 0
    %1593 = vmatprep.subr.bf16.mxu0 0
    %1594 = vmatpush1.bf16.xpose.msra.mxu0 0
    %1595 = vmatprep.subr.bf16.mxu0 0
    %1596 = vmatpush1.bf16.xpose.msra.mxu0 0
    %1597 = vmatprep.subr.bf16.mxu0 0
    %1598 = vmatpush1.bf16.xpose.msra.mxu0 0
    %1599 = vmatprep.subr.bf16.mxu0 0
    %1600 = vmatpush1.bf16.xpose.msra.mxu0 0
    %1601 = vmatprep.subr.bf16.mxu0 0
    %1602 = vmatpush1.bf16.xpose.msra.mxu0 0
    %1603 = vmatprep.subr.bf16.mxu0 0
    %1604 = vmatpush1.bf16.xpose.msra.mxu0 0
    %1605 = vmatprep.subr.bf16.mxu0 0
    %1606 = vmatpush1.bf16.xpose.msra.mxu0 0
    %1607 = vmatprep.mubr.bf16.mxu0 0
    %1608 = vmatmul.mubr.bf16.gmra.mrb[0].mxu0 %v1573
    %v1609 = vpop.f32.mrb[0].mxu0
    %v1610 = vadd.f32 %v663, %v1609
    %v1611 = vpop.f32.mrb[0].mxu0
    %v1612 = vpop.f32.mrb[0].mxu0
    %v1613 = vpop.f32.mrb[0].mxu0
    %1614 = vdwg.mxu0
    %v1615 = vsel %vm1338, %v1567, -inf
    %1616 = vmax.xlane.f32.xlu0 %v1615
    %v1617 = vpop.xlane.xlu0 %1616
    %v1618 = vsel %vm1338, %v1610, -inf
    %1619 = vmax.xlane.f32.xlu0 %v1618
    %v1620 = vpop.xlane.xlu0 %1619
    %v1621 = vsub.f32 %v1567, %v1617
    %v1622 = vsub.f32 %v1610, %v1620
    %v1623 = vmul.f32 %v1621, 1.442695
    %v1624 = vpow.pop %v1623
    %v1625 = vmul.f32 %v1622, 1.442695
    %v1626 = vpow.pop %v1625
    %v1627 = vsel %vm1338, %v1624, 0.0
    %1628 = vadd.xlane.f32.xlu0 %v1627
    %v1629 = vpop.xlane.xlu0 %1628
    %v1630 = vsel %vm1338, %v1626, 0.0
    %1631 = vadd.xlane.f32.xlu0 %v1630
    %v1632 = vpop.xlane.xlu0 %1631
    %v1633 = vrcp.pop %v1629
    %v1634 = vrcp.pop %v1632
    %v1635 = vmul.f32 %v1624, %v1633
    %v1636 = vmul.f32 %v1626, %v1634
    %v1637 = vpack.c.bf16 %v1635, %v1635
    %v1638 = vpack.c.bf16 %v1636, %v1636
    %v1640 = vsel %vm1363, %v1637, 0
    %1642 = vmatprep.subr.bf16.mxu0 0
    %1643 = vmatpush1.bf16.msra.mxu0 %v1369
    %1644 = vmatprep.subr.bf16.mxu0 0
    %1645 = vmatpush1.bf16.msra.mxu0 0
    %1646 = vmatprep.subr.bf16.mxu0 0
    %1647 = vmatpush1.bf16.msra.mxu0 0
    %1648 = vmatprep.subr.bf16.mxu0 0
    %1649 = vmatpush1.bf16.msra.mxu0 0
    %1650 = vmatprep.subr.bf16.mxu0 0
    %1651 = vmatpush1.bf16.msra.mxu0 0
    %1652 = vmatprep.subr.bf16.mxu0 0
    %1653 = vmatpush1.bf16.msra.mxu0 0
    %1654 = vmatprep.subr.bf16.mxu0 0
    %1655 = vmatpush1.bf16.msra.mxu0 0
    %1656 = vmatprep.subr.bf16.mxu0 0
    %1657 = vmatpush1.bf16.msra.mxu0 0
    %1658 = vmatprep.subr.bf16.mxu0 0
    %1659 = vmatpush1.bf16.msra.mxu0 0
    %1660 = vmatprep.subr.bf16.mxu0 0
    %1661 = vmatpush1.bf16.msra.mxu0 0
    %1662 = vmatprep.subr.bf16.mxu0 0
    %1663 = vmatpush1.bf16.msra.mxu0 0
    %1664 = vmatprep.subr.bf16.mxu0 0
    %1665 = vmatpush1.bf16.msra.mxu0 0
    %1666 = vmatprep.subr.bf16.mxu0 0
    %1667 = vmatpush1.bf16.msra.mxu0 0
    %1668 = vmatprep.subr.bf16.mxu0 0
    %1669 = vmatpush1.bf16.msra.mxu0 0
    %1670 = vmatprep.subr.bf16.mxu0 0
    %1671 = vmatpush1.bf16.msra.mxu0 0
    %1672 = vmatprep.subr.bf16.mxu0 0
    %1673 = vmatpush1.bf16.msra.mxu0 0
    %1674 = vmatprep.mubr.bf16.mxu0 0
    %1675 = vmatmul.mubr.bf16.gmra.mrb[0].mxu0 %v1640
    %v1676 = vpop.f32.mrb[0].mxu0
    %v1677 = vadd.f32 0.0, %v1676
    %v1678 = vpop.f32.mrb[0].mxu0
    %v1679 = vpop.f32.mrb[0].mxu0
    %v1680 = vpop.f32.mrb[0].mxu0
    %1681 = vdwg.mxu0
    %v1683 = vsel %vm1363, %v1638, 0
    %1685 = vmatprep.subr.bf16.mxu0 0
    %1686 = vmatpush1.bf16.msra.mxu0 %v1415
    %1687 = vmatprep.subr.bf16.mxu0 0
    %1688 = vmatpush1.bf16.msra.mxu0 0
    %1689 = vmatprep.subr.bf16.mxu0 0
    %1690 = vmatpush1.bf16.msra.mxu0 0
    %1691 = vmatprep.subr.bf16.mxu0 0
    %1692 = vmatpush1.bf16.msra.mxu0 0
    %1693 = vmatprep.subr.bf16.mxu0 0
    %1694 = vmatpush1.bf16.msra.mxu0 0
    %1695 = vmatprep.subr.bf16.mxu0 0
    %1696 = vmatpush1.bf16.msra.mxu0 0
    %1697 = vmatprep.subr.bf16.mxu0 0
    %1698 = vmatpush1.bf16.msra.mxu0 0
    %1699 = vmatprep.subr.bf16.mxu0 0
    %1700 = vmatpush1.bf16.msra.mxu0 0
    %1701 = vmatprep.subr.bf16.mxu0 0
    %1702 = vmatpush1.bf16.msra.mxu0 0
    %1703 = vmatprep.subr.bf16.mxu0 0
    %1704 = vmatpush1.bf16.msra.mxu0 0
    %1705 = vmatprep.subr.bf16.mxu0 0
    %1706 = vmatpush1.bf16.msra.mxu0 0
    %1707 = vmatprep.subr.bf16.mxu0 0
    %1708 = vmatpush1.bf16.msra.mxu0 0
    %1709 = vmatprep.subr.bf16.mxu0 0
    %1710 = vmatpush1.bf16.msra.mxu0 0
    %1711 = vmatprep.subr.bf16.mxu0 0
    %1712 = vmatpush1.bf16.msra.mxu0 0
    %1713 = vmatprep.subr.bf16.mxu0 0
    %1714 = vmatpush1.bf16.msra.mxu0 0
    %1715 = vmatprep.subr.bf16.mxu0 0
    %1716 = vmatpush1.bf16.msra.mxu0 0
    %1717 = vmatprep.mubr.bf16.mxu0 0
    %1718 = vmatmul.mubr.bf16.gmra.mrb[0].mxu0 %v1683
    %v1719 = vpop.f32.mrb[0].mxu0
    %v1720 = vadd.f32 0.0, %v1719
    %v1721 = vpop.f32.mrb[0].mxu0
    %v1722 = vpop.f32.mrb[0].mxu0
    %v1723 = vpop.f32.mrb[0].mxu0
    %1724 = vdwg.mxu0
    %v1725 = vmul.f32 %v1677, %v673
    %v1726 = vmul.f32 %v1720, %v673
    %v1727 = vadd.f32 %v1459, %v1725
    %v1728 = vadd.f32 %v1460, %v1726
    %v1731 = vcombine.high %v1727, %v1727
    %v1733 = vunpack.c.l.s4 1983009808
    %v1734 = vunpack.c.0.s8 %v1733
    %v1735 = vlaneseq
    %v1736 = vshrl.u32 %v1735, 7
    %v1737 = vsub.s32 %v1734, %v1736
    %v1738 = vrot.slane %v1727, %v1737
    %v1740 = vunpack.c.l.s4 1983009808
    %v1741 = vunpack.c.0.s8 %v1740
    %v1742 = vlaneseq
    %v1743 = vshrl.u32 %v1742, 7
    %v1744 = vsub.s32 %v1741, %v1743
    %v1745 = vrot.slane %v1731, %v1744
    %v1746 = vcombine.high %v1738, %v1738
    %v1747 = vcombine.high %v1728, %v1728
    %v1749 = vunpack.c.l.s4 1983009808
    %v1750 = vunpack.c.0.s8 %v1749
    %v1751 = vlaneseq
    %v1752 = vshrl.u32 %v1751, 7
    %v1753 = vsub.s32 %v1750, %v1752
    %v1754 = vrot.slane %v1728, %v1753
    %v1756 = vunpack.c.l.s4 1983009808
    %v1757 = vunpack.c.0.s8 %v1756
    %v1758 = vlaneseq
    %v1759 = vshrl.u32 %v1758, 7
    %v1760 = vsub.s32 %v1757, %v1759
    %v1761 = vrot.slane %v1747, %v1760
    %v1762 = vcombine.high %v1754, %v1754
    %v1763 = vld [vmem:[%s15] sm:$0xf]
    %v1764 = vld [vmem:[%s15 + $0x4] sm:$0xf]
    %v1765 = vld [vmem:[%s15 + $0x8] sm:$0xf]
    %v1766 = vld [vmem:[%s15 + $0xc] sm:$0xf]
    %v1767 = vld [vmem:[%s15 + $0x10] sm:$0xf]
    %v1768 = vld [vmem:[%s15 + $0x14] sm:$0xf]
    %v1769 = vld [vmem:[%s15 + $0x18] sm:$0xf]
    %v1770 = vld [vmem:[%s15 + $0x1c] sm:$0xf]
    %v1771 = vcombine.low %v1738, %v1746
    %v1772 = vcombine.low %v1745, %v1754
    %v1774 = vunpack.c.l.s4 1983009808
    %v1775 = vunpack.c.0.s8 %v1774
    %v1776 = vlaneseq
    %v1777 = vshrl.u32 %v1776, 7
    %v1778 = vsub.s32 %v1775, %v1777
    %v1779 = vrot.slane %v1771, %v1778
    %v1781 = vunpack.c.l.s4 1983009808
    %v1782 = vunpack.c.0.s8 %v1781
    %v1783 = vlaneseq
    %v1784 = vshrl.u32 %v1783, 7
    %v1785 = vsub.s32 %v1782, %v1784
    %v1786 = vrot.slane %v1772, %v1785
    %v1787 = vcombine.low %v1779, %v1786
    %v1788 = vcombine.low %v1762, %v1761
    %v1790 = vunpack.c.l.s4 1983009808
    %v1791 = vunpack.c.0.s8 %v1790
    %v1792 = vlaneseq
    %v1793 = vshrl.u32 %v1792, 7
    %v1794 = vsub.s32 %v1791, %v1793
    %v1795 = vrot.slane %v1788, %v1794
    %v1798 = vpack.c.bf16 %v1795, %v1787
    %v1807 = vunpack.c.l.b16 %v1763
    %v1808 = vunpack.c.l.b16 %v1764
    %v1809 = vunpack.c.l.b16 %v1765
    %v1810 = vunpack.c.l.b16 %v1766
    %v1811 = vunpack.c.l.b16 %v1767
    %v1812 = vunpack.c.l.b16 %v1768
    %v1813 = vunpack.c.l.b16 %v1769
    %v1814 = vunpack.c.l.b16 %v1770
    %v1815 = vpack.c.b16 %v1808, %v1807
    %v1816 = vpack.c.b16 %v1810, %v1809
    %v1817 = vpack.c.b16 %v1812, %v1811
    %v1818 = vpack.c.b16 %v1814, %v1813
    %v1824 = vsel %vm709, %v1798, 0
    %1826 = vmatprep.subr.bf16.mxu0 0
    %1827 = vmatpush1.bf16.msra.mxu0 %v1815
    %1828 = vmatprep.subr.bf16.mxu0 0
    %1829 = vmatpush1.bf16.msra.mxu0 %v1816
    %1830 = vmatprep.subr.bf16.mxu0 0
    %1831 = vmatpush1.bf16.msra.mxu0 %v1817
    %1832 = vmatprep.subr.bf16.mxu0 0
    %1833 = vmatpush1.bf16.msra.mxu0 %v1818
    %1834 = vmatprep.subr.bf16.mxu0 0
    %1835 = vmatpush1.bf16.msra.mxu0 0
    %1836 = vmatprep.subr.bf16.mxu0 0
    %1837 = vmatpush1.bf16.msra.mxu0 0
    %1838 = vmatprep.subr.bf16.mxu0 0
    %1839 = vmatpush1.bf16.msra.mxu0 0
    %1840 = vmatprep.subr.bf16.mxu0 0
    %1841 = vmatpush1.bf16.msra.mxu0 0
    %1842 = vmatprep.subr.bf16.mxu0 0
    %1843 = vmatpush1.bf16.msra.mxu0 0
    %1844 = vmatprep.subr.bf16.mxu0 0
    %1845 = vmatpush1.bf16.msra.mxu0 0
    %1846 = vmatprep.subr.bf16.mxu0 0
    %1847 = vmatpush1.bf16.msra.mxu0 0
    %1848 = vmatprep.subr.bf16.mxu0 0
    %1849 = vmatpush1.bf16.msra.mxu0 0
    %1850 = vmatprep.subr.bf16.mxu0 0
    %1851 = vmatpush1.bf16.msra.mxu0 0
    %1852 = vmatprep.subr.bf16.mxu0 0
    %1853 = vmatpush1.bf16.msra.mxu0 0
    %1854 = vmatprep.subr.bf16.mxu0 0
    %1855 = vmatpush1.bf16.msra.mxu0 0
    %1856 = vmatprep.subr.bf16.mxu0 0
    %1857 = vmatpush1.bf16.msra.mxu0 0
    %1858 = vmatprep.mubr.bf16.mxu0 0
    %1859 = vmatmul.mubr.bf16.gmra.mrb[0].mxu0 %v1824
    %v1860 = vpop.f32.mrb[0].mxu0
    %v1861 = vadd.f32 0.0, %v1860
    %v1862 = vpop.f32.mrb[0].mxu0
    %v1863 = vpop.f32.mrb[0].mxu0
    %v1864 = vadd.f32 0.0, %v1863
    %v1865 = vpop.f32.mrb[0].mxu0
    %1866 = vdwg.mxu0
    %v1869 = vcombine.high %v1861, %v1861
    %v1871 = vunpack.c.l.s4 1983009808
    %v1872 = vunpack.c.0.s8 %v1871
    %v1873 = vlaneseq
    %v1874 = vshrl.u32 %v1873, 7
    %v1875 = vsub.s32 %v1872, %v1874
    %v1876 = vrot.slane %v1861, %v1875
    %v1878 = vunpack.c.l.s4 1983009808
    %v1879 = vunpack.c.0.s8 %v1878
    %v1880 = vlaneseq
    %v1881 = vshrl.u32 %v1880, 7
    %v1882 = vsub.s32 %v1879, %v1881
    %v1883 = vrot.slane %v1869, %v1882
    %v1884 = vcombine.high %v1876, %v1876
    %v1885 = vcombine.high %v1883, %v1883
    %v1887 = vunpack.c.l.s4 1983009808
    %v1888 = vunpack.c.0.s8 %v1887
    %v1889 = vlaneseq
    %v1890 = vshrl.u32 %v1889, 7
    %v1891 = vsub.s32 %v1888, %v1890
    %v1892 = vrot.slane %v1864, %v1891
    %v1893 = vcombine.high %v1892, %v1892
    %v1900 = vadd.f32 %v650, %v1876
    %v1901 = vadd.f32 %v651, %v1884
    %v1902 = vadd.f32 %v652, %v1883
    %v1903 = vadd.f32 %v653, %v1885
    %v1904 = vadd.f32 %v654, %v1892
    %v1905 = vadd.f32 %v655, %v1893
    %v1906 = vld [vmem:[%s16] sm:$0x1]
    %v1908 = vlaneseq
    %v1909 = vshrl.u32 %v1908, 7
    %v1910 = vsub.s32 0, %v1909
    %v1911 = vrot.slane %v1906, %v1910
    %v1912 = vcombine.high %v1911, %v1911
    %v1914 = vunpack.c.l.s4 1983009808
    %v1915 = vunpack.c.0.s8 %v1914
    %v1916 = vlaneseq
    %v1917 = vshrl.u32 %v1916, 7
    %v1918 = vsub.s32 %v1915, %v1917
    %v1919 = vrot.slane %v1911, %v1918
    %v1921 = vunpack.c.l.s4 1983009808
    %v1922 = vunpack.c.0.s8 %v1921
    %v1923 = vlaneseq
    %v1924 = vshrl.u32 %v1923, 7
    %v1925 = vsub.s32 %v1922, %v1924
    %v1926 = vrot.slane %v1912, %v1925
    %v1927 = vcombine.high %v1919, %v1919
    %v1928 = vcombine.high %v1926, %v1926
    %v1933 = vadd.f32 %v1900, %v1919
    %v1934 = vadd.f32 %v1901, %v1927
    %v1935 = vadd.f32 %v1902, %v1926
    %v1936 = vadd.f32 %v1903, %v1928
    %v1937 = vadd.f32 %v1904, %v1919
    %v1938 = vadd.f32 %v1905, %v1927
    %v1939 = vld [vmem:[%s17] sm:$0x1]
    %v1940 = vld [vmem:[%s18] sm:$0x1]
    %v1947 = vcombine.low %v1933, %v1934
    %v1948 = vcombine.low %v1935, %v1936
    %v1950 = vunpack.c.l.s4 1983009808
    %v1951 = vunpack.c.0.s8 %v1950
    %v1952 = vlaneseq
    %v1953 = vshrl.u32 %v1952, 7
    %v1954 = vsub.s32 %v1951, %v1953
    %v1955 = vrot.slane %v1947, %v1954
    %v1957 = vunpack.c.l.s4 1983009808
    %v1958 = vunpack.c.0.s8 %v1957
    %v1959 = vlaneseq
    %v1960 = vshrl.u32 %v1959, 7
    %v1961 = vsub.s32 %v1958, %v1960
    %v1962 = vrot.slane %v1948, %v1961
    %v1963 = vcombine.low %v1955, %v1962
    %v1964 = vcombine.low %v1937, %v1938
    %v1966 = vunpack.c.l.s4 1983009808
    %v1967 = vunpack.c.0.s8 %v1966
    %v1968 = vlaneseq
    %v1969 = vshrl.u32 %v1968, 7
    %v1970 = vsub.s32 %v1967, %v1969
    %v1971 = vrot.slane %v1964, %v1970
    %v1974 = vsel %vm709, %v1963, 0.0
    %1975 = vadd.xlane.f32.xlu0 %v1974
    %v1976 = vpop.xlane.xlu0 %1975
    %v1977 = vsel %vm713, %v1971, 0.0
    %1978 = vadd.xlane.f32.xlu0 %v1977
    %v1979 = vpop.xlane.xlu0 %1978
    %v1980 = vmul.f32 %v1976, %v717
    %v1981 = vmul.f32 %v1979, %v717
    %v1985 = vunpack.c.l.s4 269488144
    %v1986 = vunpack.c.0.s8 %v1985
    %v1987 = vlaneseq
    %v1988 = vshrl.u32 %v1987, 7
    %v1989 = vsub.s32 %v1986, %v1988
    %v1990 = vrot.slane %v1980, %v1989
    %v1992 = vunpack.c.l.s4 842150450
    %v1993 = vunpack.c.0.s8 %v1992
    %v1994 = vlaneseq
    %v1995 = vshrl.u32 %v1994, 7
    %v1996 = vsub.s32 %v1993, %v1995
    %v1997 = vrot.slane %v1980, %v1996
    %v1999 = vunpack.c.l.s4 1414812756
    %v2000 = vunpack.c.0.s8 %v1999
    %v2001 = vlaneseq
    %v2002 = vshrl.u32 %v2001, 7
    %v2003 = vsub.s32 %v2000, %v2002
    %v2004 = vrot.slane %v1980, %v2003
    %v2006 = vunpack.c.l.s4 1987475062
    %v2007 = vunpack.c.0.s8 %v2006
    %v2008 = vlaneseq
    %v2009 = vshrl.u32 %v2008, 7
    %v2010 = vsub.s32 %v2007, %v2009
    %v2011 = vrot.slane %v1980, %v2010
    %v2013 = vunpack.c.l.s4 269488144
    %v2014 = vunpack.c.0.s8 %v2013
    %v2015 = vlaneseq
    %v2016 = vshrl.u32 %v2015, 7
    %v2017 = vsub.s32 %v2014, %v2016
    %v2018 = vrot.slane %v1981, %v2017
    %v2020 = vunpack.c.l.s4 842150450
    %v2021 = vunpack.c.0.s8 %v2020
    %v2022 = vlaneseq
    %v2023 = vshrl.u32 %v2022, 7
    %v2024 = vsub.s32 %v2021, %v2023
    %v2025 = vrot.slane %v1981, %v2024
    %v2032 = vsub.f32 %v1933, %v1990
    %v2033 = vsub.f32 %v1934, %v1997
    %v2034 = vsub.f32 %v1935, %v2004
    %v2035 = vsub.f32 %v1936, %v2011
    %v2036 = vsub.f32 %v1937, %v2018
    %v2037 = vsub.f32 %v1938, %v2025
    %v2038 = vmul.f32 %v2032, %v2032
    %v2039 = vmul.f32 %v2033, %v2033
    %v2040 = vmul.f32 %v2034, %v2034
    %v2041 = vmul.f32 %v2035, %v2035
    %v2042 = vmul.f32 %v2036, %v2036
    %v2043 = vmul.f32 %v2037, %v2037
    %v2050 = vcombine.low %v2038, %v2039
    %v2051 = vcombine.low %v2040, %v2041
    %v2053 = vunpack.c.l.s4 1983009808
    %v2054 = vunpack.c.0.s8 %v2053
    %v2055 = vlaneseq
    %v2056 = vshrl.u32 %v2055, 7
    %v2057 = vsub.s32 %v2054, %v2056
    %v2058 = vrot.slane %v2050, %v2057
    %v2060 = vunpack.c.l.s4 1983009808
    %v2061 = vunpack.c.0.s8 %v2060
    %v2062 = vlaneseq
    %v2063 = vshrl.u32 %v2062, 7
    %v2064 = vsub.s32 %v2061, %v2063
    %v2065 = vrot.slane %v2051, %v2064
    %v2066 = vcombine.low %v2058, %v2065
    %v2067 = vcombine.low %v2042, %v2043
    %v2069 = vunpack.c.l.s4 1983009808
    %v2070 = vunpack.c.0.s8 %v2069
    %v2071 = vlaneseq
    %v2072 = vshrl.u32 %v2071, 7
    %v2073 = vsub.s32 %v2070, %v2072
    %v2074 = vrot.slane %v2067, %v2073
    %v2077 = vsel %vm709, %v2066, 0.0
    %2078 = vadd.xlane.f32.xlu0 %v2077
    %v2079 = vpop.xlane.xlu0 %2078
    %v2080 = vsel %vm713, %v2074, 0.0
    %2081 = vadd.xlane.f32.xlu0 %v2080
    %v2082 = vpop.xlane.xlu0 %2081
    %v2083 = vmul.f32 %v2079, %v717
    %v2084 = vmul.f32 %v2082, %v717
    %v2085 = vadd.f32 %v2083, 1e-05
    %v2086 = vadd.f32 %v2084, 1e-05
    %v2087 = vrsqrt.pop %v2085
    %v2088 = vrsqrt.pop %v2086
    %v2092 = vunpack.c.l.s4 269488144
    %v2093 = vunpack.c.0.s8 %v2092
    %v2094 = vlaneseq
    %v2095 = vshrl.u32 %v2094, 7
    %v2096 = vsub.s32 %v2093, %v2095
    %v2097 = vrot.slane %v2087, %v2096
    %v2099 = vunpack.c.l.s4 842150450
    %v2100 = vunpack.c.0.s8 %v2099
    %v2101 = vlaneseq
    %v2102 = vshrl.u32 %v2101, 7
    %v2103 = vsub.s32 %v2100, %v2102
    %v2104 = vrot.slane %v2087, %v2103
    %v2106 = vunpack.c.l.s4 1414812756
    %v2107 = vunpack.c.0.s8 %v2106
    %v2108 = vlaneseq
    %v2109 = vshrl.u32 %v2108, 7
    %v2110 = vsub.s32 %v2107, %v2109
    %v2111 = vrot.slane %v2087, %v2110
    %v2113 = vunpack.c.l.s4 1987475062
    %v2114 = vunpack.c.0.s8 %v2113
    %v2115 = vlaneseq
    %v2116 = vshrl.u32 %v2115, 7
    %v2117 = vsub.s32 %v2114, %v2116
    %v2118 = vrot.slane %v2087, %v2117
    %v2120 = vunpack.c.l.s4 269488144
    %v2121 = vunpack.c.0.s8 %v2120
    %v2122 = vlaneseq
    %v2123 = vshrl.u32 %v2122, 7
    %v2124 = vsub.s32 %v2121, %v2123
    %v2125 = vrot.slane %v2088, %v2124
    %v2127 = vunpack.c.l.s4 842150450
    %v2128 = vunpack.c.0.s8 %v2127
    %v2129 = vlaneseq
    %v2130 = vshrl.u32 %v2129, 7
    %v2131 = vsub.s32 %v2128, %v2130
    %v2132 = vrot.slane %v2088, %v2131
    %v2139 = vmul.f32 %v2032, %v2097
    %v2140 = vmul.f32 %v2033, %v2104
    %v2141 = vmul.f32 %v2034, %v2111
    %v2142 = vmul.f32 %v2035, %v2118
    %v2143 = vmul.f32 %v2036, %v2125
    %v2144 = vmul.f32 %v2037, %v2132
    %v2146 = vlaneseq
    %v2147 = vshrl.u32 %v2146, 7
    %v2148 = vsub.s32 0, %v2147
    %v2149 = vrot.slane %v1939, %v2148
    %v2150 = vcombine.high %v2149, %v2149
    %v2152 = vunpack.c.l.s4 1983009808
    %v2153 = vunpack.c.0.s8 %v2152
    %v2154 = vlaneseq
    %v2155 = vshrl.u32 %v2154, 7
    %v2156 = vsub.s32 %v2153, %v2155
    %v2157 = vrot.slane %v2149, %v2156
    %v2159 = vunpack.c.l.s4 1983009808
    %v2160 = vunpack.c.0.s8 %v2159
    %v2161 = vlaneseq
    %v2162 = vshrl.u32 %v2161, 7
    %v2163 = vsub.s32 %v2160, %v2162
    %v2164 = vrot.slane %v2150, %v2163
    %v2165 = vcombine.high %v2157, %v2157
    %v2166 = vcombine.high %v2164, %v2164
    %v2171 = vmul.f32 %v2139, %v2157
    %v2172 = vmul.f32 %v2140, %v2165
    %v2173 = vmul.f32 %v2141, %v2164
    %v2174 = vmul.f32 %v2142, %v2166
    %v2175 = vmul.f32 %v2143, %v2157
    %v2176 = vmul.f32 %v2144, %v2165
    %v2178 = vlaneseq
    %v2179 = vshrl.u32 %v2178, 7
    %v2180 = vsub.s32 0, %v2179
    %v2181 = vrot.slane %v1940, %v2180
    %v2182 = vcombine.high %v2181, %v2181
    %v2184 = vunpack.c.l.s4 1983009808
    %v2185 = vunpack.c.0.s8 %v2184
    %v2186 = vlaneseq
    %v2187 = vshrl.u32 %v2186, 7
    %v2188 = vsub.s32 %v2185, %v2187
    %v2189 = vrot.slane %v2181, %v2188
    %v2191 = vunpack.c.l.s4 1983009808
    %v2192 = vunpack.c.0.s8 %v2191
    %v2193 = vlaneseq
    %v2194 = vshrl.u32 %v2193, 7
    %v2195 = vsub.s32 %v2192, %v2194
    %v2196 = vrot.slane %v2182, %v2195
    %v2197 = vcombine.high %v2189, %v2189
    %v2198 = vcombine.high %v2196, %v2196
    %v2203 = vadd.f32 %v2171, %v2189
    %v2204 = vadd.f32 %v2172, %v2197
    %v2205 = vadd.f32 %v2173, %v2196
    %v2206 = vadd.f32 %v2174, %v2198
    %v2207 = vadd.f32 %v2175, %v2189
    %v2208 = vadd.f32 %v2176, %v2197
    %v2209 = vld [vmem:[%s19] sm:$0xf]
    %v2210 = vld [vmem:[%s19 + $0x4] sm:$0xf]
    %v2211 = vld [vmem:[%s19 + $0x8] sm:$0xf]
    %v2212 = vld [vmem:[%s19 + $0xc] sm:$0xf]
    %v2213 = vld [vmem:[%s19 + $0x10] sm:$0xf]
    %v2214 = vld [vmem:[%s19 + $0x14] sm:$0xf]
    %v2215 = vld [vmem:[%s19 + $0x18] sm:$0xf]
    %v2216 = vld [vmem:[%s19 + $0x1c] sm:$0xf]
    %v2223 = vcombine.low %v2203, %v2204
    %v2224 = vcombine.low %v2205, %v2206
    %v2226 = vunpack.c.l.s4 1983009808
    %v2227 = vunpack.c.0.s8 %v2226
    %v2228 = vlaneseq
    %v2229 = vshrl.u32 %v2228, 7
    %v2230 = vsub.s32 %v2227, %v2229
    %v2231 = vrot.slane %v2223, %v2230
    %v2233 = vunpack.c.l.s4 1983009808
    %v2234 = vunpack.c.0.s8 %v2233
    %v2235 = vlaneseq
    %v2236 = vshrl.u32 %v2235, 7
    %v2237 = vsub.s32 %v2234, %v2236
    %v2238 = vrot.slane %v2224, %v2237
    %v2239 = vcombine.low %v2231, %v2238
    %v2240 = vcombine.low %v2207, %v2208
    %v2242 = vunpack.c.l.s4 1983009808
    %v2243 = vunpack.c.0.s8 %v2242
    %v2244 = vlaneseq
    %v2245 = vshrl.u32 %v2244, 7
    %v2246 = vsub.s32 %v2243, %v2245
    %v2247 = vrot.slane %v2240, %v2246
    %v2250 = vpack.c.bf16 %v2247, %v2239
    %v2251 = vld [vmem:[%s20] sm:$0x1]
    %v2253 = vlaneseq
    %v2254 = vshrl.u32 %v2253, 7
    %v2255 = vsub.s32 0, %v2254
    %v2256 = vrot.slane %v2251, %v2255
    %v2266 = vunpack.c.l.b16 %v2209
    %v2267 = vunpack.c.l.b16 %v2210
    %v2268 = vunpack.c.l.b16 %v2211
    %v2269 = vunpack.c.l.b16 %v2212
    %v2270 = vunpack.c.l.b16 %v2213
    %v2271 = vunpack.c.l.b16 %v2214
    %v2272 = vunpack.c.l.b16 %v2215
    %v2273 = vunpack.c.l.b16 %v2216
    %v2274 = vpack.c.b16 %v2267, %v2266
    %v2275 = vpack.c.b16 %v2269, %v2268
    %v2276 = vpack.c.b16 %v2271, %v2270
    %v2277 = vpack.c.b16 %v2273, %v2272
    %v2283 = vsel %vm709, %v2250, 0
    %2285 = vmatprep.subr.bf16.mxu0 0
    %2286 = vmatpush1.bf16.msra.mxu0 %v2274
    %2287 = vmatprep.subr.bf16.mxu0 0
    %2288 = vmatpush1.bf16.msra.mxu0 %v2275
    %2289 = vmatprep.subr.bf16.mxu0 0
    %2290 = vmatpush1.bf16.msra.mxu0 %v2276
    %2291 = vmatprep.subr.bf16.mxu0 0
    %2292 = vmatpush1.bf16.msra.mxu0 %v2277
    %2293 = vmatprep.subr.bf16.mxu0 0
    %2294 = vmatpush1.bf16.msra.mxu0 0
    %2295 = vmatprep.subr.bf16.mxu0 0
    %2296 = vmatpush1.bf16.msra.mxu0 0
    %2297 = vmatprep.subr.bf16.mxu0 0
    %2298 = vmatpush1.bf16.msra.mxu0 0
    %2299 = vmatprep.subr.bf16.mxu0 0
    %2300 = vmatpush1.bf16.msra.mxu0 0
    %2301 = vmatprep.subr.bf16.mxu0 0
    %2302 = vmatpush1.bf16.msra.mxu0 0
    %2303 = vmatprep.subr.bf16.mxu0 0
    %2304 = vmatpush1.bf16.msra.mxu0 0
    %2305 = vmatprep.subr.bf16.mxu0 0
    %2306 = vmatpush1.bf16.msra.mxu0 0
    %2307 = vmatprep.subr.bf16.mxu0 0
    %2308 = vmatpush1.bf16.msra.mxu0 0
    %2309 = vmatprep.subr.bf16.mxu0 0
    %2310 = vmatpush1.bf16.msra.mxu0 0
    %2311 = vmatprep.subr.bf16.mxu0 0
    %2312 = vmatpush1.bf16.msra.mxu0 0
    %2313 = vmatprep.subr.bf16.mxu0 0
    %2314 = vmatpush1.bf16.msra.mxu0 0
    %2315 = vmatprep.subr.bf16.mxu0 0
    %2316 = vmatpush1.bf16.msra.mxu0 0
    %2317 = vmatprep.mubr.bf16.mxu0 0
    %2318 = vmatmul.mubr.bf16.gmra.mrb[0].mxu0 %v2283
    %v2319 = vpop.f32.mrb[0].mxu0
    %v2320 = vadd.f32 %v2256, %v2319
    %v2321 = vpop.f32.mrb[0].mxu0
    %v2322 = vpop.f32.mrb[0].mxu0
    %v2323 = vadd.f32 %v2256, %v2322
    %v2324 = vpop.f32.mrb[0].mxu0
    %2325 = vdwg.mxu0
    %v2326 = vmul.f32 %v2320, 0.5
    %v2327 = vmul.f32 %v2323, 0.5
    %v2328 = vmul.f32 %v2320, 0.044715
    %v2329 = vmul.f32 %v2323, 0.044715
    %v2330 = vmul.f32 %v2328, %v2320
    %v2331 = vmul.f32 %v2329, %v2323
    %v2332 = vmul.f32 %v2330, %v2320
    %v2333 = vmul.f32 %v2331, %v2323
    %v2334 = vadd.f32 %v2320, %v2332
    %v2335 = vadd.f32 %v2323, %v2333
    %v2336 = vmul.f32 %v2334, 0.7978846
    %v2337 = vmul.f32 %v2335, 0.7978846
    %v2338 = vtanh.pop %v2336
    %v2339 = vtanh.pop %v2337
    %v2340 = vadd.f32 %v2338, 1.0
    %v2341 = vadd.f32 %v2339, 1.0
    %v2342 = vmul.f32 %v2326, %v2340
    %v2343 = vmul.f32 %v2327, %v2341
    %v2344 = vld [vmem:[%s21] sm:$0xf]
    %v2345 = vld [vmem:[%s21 + $0x4] sm:$0xf]
    %v2346 = vld [vmem:[%s21 + $0x8] sm:$0xf]
    %v2347 = vld [vmem:[%s21 + $0xc] sm:$0xf]
    %v2348 = vld [vmem:[%s21 + $0x10] sm:$0xf]
    %v2349 = vld [vmem:[%s21 + $0x14] sm:$0xf]
    %v2350 = vld [vmem:[%s21 + $0x18] sm:$0xf]
    %v2351 = vld [vmem:[%s21 + $0x1c] sm:$0xf]
    %v2352 = vld [vmem:[%s21 + $0x20] sm:$0xf]
    %v2353 = vld [vmem:[%s21 + $0x24] sm:$0xf]
    %v2354 = vld [vmem:[%s21 + $0x28] sm:$0xf]
    %v2355 = vld [vmem:[%s21 + $0x2c] sm:$0xf]
    %v2356 = vld [vmem:[%s21 + $0x30] sm:$0xf]
    %v2357 = vld [vmem:[%s21 + $0x34] sm:$0xf]
    %v2358 = vld [vmem:[%s21 + $0x38] sm:$0xf]
    %v2359 = vld [vmem:[%s21 + $0x3c] sm:$0xf]
    %v2360 = vpack.c.bf16 %v2343, %v2342
    %v2377 = vunpack.c.l.b16 %v2344
    %v2378 = vunpack.c.l.b16 %v2345
    %v2379 = vunpack.c.l.b16 %v2346
    %v2380 = vunpack.c.l.b16 %v2347
    %v2381 = vunpack.c.l.b16 %v2348
    %v2382 = vunpack.c.l.b16 %v2349
    %v2383 = vunpack.c.l.b16 %v2350
    %v2384 = vunpack.c.l.b16 %v2351
    %v2385 = vunpack.c.l.b16 %v2352
    %v2386 = vunpack.c.l.b16 %v2353
    %v2387 = vunpack.c.l.b16 %v2354
    %v2388 = vunpack.c.l.b16 %v2355
    %v2389 = vunpack.c.l.b16 %v2356
    %v2390 = vunpack.c.l.b16 %v2357
    %v2391 = vunpack.c.l.b16 %v2358
    %v2392 = vunpack.c.l.b16 %v2359
    %v2393 = vpack.c.b16 %v2378, %v2377
    %v2394 = vpack.c.b16 %v2380, %v2379
    %v2395 = vpack.c.b16 %v2382, %v2381
    %v2396 = vpack.c.b16 %v2384, %v2383
    %v2397 = vpack.c.b16 %v2386, %v2385
    %v2398 = vpack.c.b16 %v2388, %v2387
    %v2399 = vpack.c.b16 %v2390, %v2389
    %v2400 = vpack.c.b16 %v2392, %v2391
    %2409 = vmatprep.subr.bf16.mxu0 0
    %2410 = vmatpush1.bf16.msra.mxu0 %v2393
    %2411 = vmatprep.subr.bf16.mxu0 0
    %2412 = vmatpush1.bf16.msra.mxu0 %v2394
    %2413 = vmatprep.subr.bf16.mxu0 0
    %2414 = vmatpush1.bf16.msra.mxu0 %v2395
    %2415 = vmatprep.subr.bf16.mxu0 0
    %2416 = vmatpush1.bf16.msra.mxu0 %v2396
    %2417 = vmatprep.subr.bf16.mxu0 0
    %2418 = vmatpush1.bf16.msra.mxu0 %v2397
    %2419 = vmatprep.subr.bf16.mxu0 0
    %2420 = vmatpush1.bf16.msra.mxu0 %v2398
    %2421 = vmatprep.subr.bf16.mxu0 0
    %2422 = vmatpush1.bf16.msra.mxu0 %v2399
    %2423 = vmatprep.subr.bf16.mxu0 0
    %2424 = vmatpush1.bf16.msra.mxu0 %v2400
    %2425 = vmatprep.subr.bf16.mxu0 0
    %2426 = vmatpush1.bf16.msra.mxu0 0
    %2427 = vmatprep.subr.bf16.mxu0 0
    %2428 = vmatpush1.bf16.msra.mxu0 0
    %2429 = vmatprep.subr.bf16.mxu0 0
    %2430 = vmatpush1.bf16.msra.mxu0 0
    %2431 = vmatprep.subr.bf16.mxu0 0
    %2432 = vmatpush1.bf16.msra.mxu0 0
    %2433 = vmatprep.subr.bf16.mxu0 0
    %2434 = vmatpush1.bf16.msra.mxu0 0
    %2435 = vmatprep.subr.bf16.mxu0 0
    %2436 = vmatpush1.bf16.msra.mxu0 0
    %2437 = vmatprep.subr.bf16.mxu0 0
    %2438 = vmatpush1.bf16.msra.mxu0 0
    %2439 = vmatprep.subr.bf16.mxu0 0
    %2440 = vmatpush1.bf16.msra.mxu0 0
    %2441 = vmatprep.mubr.bf16.mxu0 0
    %2442 = vmatmul.mubr.bf16.gmra.mrb[0].mxu0 %v2360
    %v2443 = vpop.f32.mrb[0].mxu0
    %v2444 = vadd.f32 0.0, %v2443
    %v2445 = vpop.f32.mrb[0].mxu0
    %v2446 = vpop.f32.mrb[0].mxu0
    %v2447 = vadd.f32 0.0, %v2446
    %v2448 = vpop.f32.mrb[0].mxu0
    %2449 = vdwg.mxu0
    %v2452 = vcombine.high %v2444, %v2444
    %v2454 = vunpack.c.l.s4 1983009808
    %v2455 = vunpack.c.0.s8 %v2454
    %v2456 = vlaneseq
    %v2457 = vshrl.u32 %v2456, 7
    %v2458 = vsub.s32 %v2455, %v2457
    %v2459 = vrot.slane %v2444, %v2458
    %v2461 = vunpack.c.l.s4 1983009808
    %v2462 = vunpack.c.0.s8 %v2461
    %v2463 = vlaneseq
    %v2464 = vshrl.u32 %v2463, 7
    %v2465 = vsub.s32 %v2462, %v2464
    %v2466 = vrot.slane %v2452, %v2465
    %v2467 = vcombine.high %v2459, %v2459
    %v2468 = vcombine.high %v2466, %v2466
    %v2470 = vunpack.c.l.s4 1983009808
    %v2471 = vunpack.c.0.s8 %v2470
    %v2472 = vlaneseq
    %v2473 = vshrl.u32 %v2472, 7
    %v2474 = vsub.s32 %v2471, %v2473
    %v2475 = vrot.slane %v2447, %v2474
    %v2476 = vcombine.high %v2475, %v2475
    %v2483 = vadd.f32 %v1933, %v2459
    %v2484 = vadd.f32 %v1934, %v2467
    %v2485 = vadd.f32 %v1935, %v2466
    %v2486 = vadd.f32 %v1936, %v2468
    %v2487 = vadd.f32 %v1937, %v2475
    %v2488 = vadd.f32 %v1938, %v2476
    %v2489 = vld [vmem:[%s22] sm:$0x1]
    %v2491 = vlaneseq
    %v2492 = vshrl.u32 %v2491, 7
    %v2493 = vsub.s32 0, %v2492
    %v2494 = vrot.slane %v2489, %v2493
    %v2495 = vcombine.high %v2494, %v2494
    %v2497 = vunpack.c.l.s4 1983009808
    %v2498 = vunpack.c.0.s8 %v2497
    %v2499 = vlaneseq
    %v2500 = vshrl.u32 %v2499, 7
    %v2501 = vsub.s32 %v2498, %v2500
    %v2502 = vrot.slane %v2494, %v2501
    %v2504 = vunpack.c.l.s4 1983009808
    %v2505 = vunpack.c.0.s8 %v2504
    %v2506 = vlaneseq
    %v2507 = vshrl.u32 %v2506, 7
    %v2508 = vsub.s32 %v2505, %v2507
    %v2509 = vrot.slane %v2495, %v2508
    %v2510 = vcombine.high %v2502, %v2502
    %v2511 = vcombine.high %v2509, %v2509
    %v2516 = vadd.f32 %v2483, %v2502
    %v2517 = vadd.f32 %v2484, %v2510
    %v2518 = vadd.f32 %v2485, %v2509
    %v2519 = vadd.f32 %v2486, %v2511
    %v2520 = vadd.f32 %v2487, %v2502
    %v2521 = vadd.f32 %v2488, %v2510
    %s2522 = scalar_lea.vmem %s11, 1
    %v2523 = vld [vmem:[%s2522] sm:$0x1]
    %s2524 = scalar_lea.vmem %s12, 1
    %v2525 = vld [vmem:[%s2524] sm:$0x1]
    %v2532 = vcombine.low %v2516, %v2517
    %v2533 = vcombine.low %v2518, %v2519
    %v2535 = vunpack.c.l.s4 1983009808
    %v2536 = vunpack.c.0.s8 %v2535
    %v2537 = vlaneseq
    %v2538 = vshrl.u32 %v2537, 7
    %v2539 = vsub.s32 %v2536, %v2538
    %v2540 = vrot.slane %v2532, %v2539
    %v2542 = vunpack.c.l.s4 1983009808
    %v2543 = vunpack.c.0.s8 %v2542
    %v2544 = vlaneseq
    %v2545 = vshrl.u32 %v2544, 7
    %v2546 = vsub.s32 %v2543, %v2545
    %v2547 = vrot.slane %v2533, %v2546
    %v2548 = vcombine.low %v2540, %v2547
    %v2549 = vcombine.low %v2520, %v2521
    %v2551 = vunpack.c.l.s4 1983009808
    %v2552 = vunpack.c.0.s8 %v2551
    %v2553 = vlaneseq
    %v2554 = vshrl.u32 %v2553, 7
    %v2555 = vsub.s32 %v2552, %v2554
    %v2556 = vrot.slane %v2549, %v2555
    %v2559 = vsel %vm709, %v2548, 0.0
    %2560 = vadd.xlane.f32.xlu0 %v2559
    %v2561 = vpop.xlane.xlu0 %2560
    %v2562 = vsel %vm713, %v2556, 0.0
    %2563 = vadd.xlane.f32.xlu0 %v2562
    %v2564 = vpop.xlane.xlu0 %2563
    %v2565 = vmul.f32 %v2561, %v717
    %v2566 = vmul.f32 %v2564, %v717
    %v2570 = vunpack.c.l.s4 269488144
    %v2571 = vunpack.c.0.s8 %v2570
    %v2572 = vlaneseq
    %v2573 = vshrl.u32 %v2572, 7
    %v2574 = vsub.s32 %v2571, %v2573
    %v2575 = vrot.slane %v2565, %v2574
    %v2577 = vunpack.c.l.s4 842150450
    %v2578 = vunpack.c.0.s8 %v2577
    %v2579 = vlaneseq
    %v2580 = vshrl.u32 %v2579, 7
    %v2581 = vsub.s32 %v2578, %v2580
    %v2582 = vrot.slane %v2565, %v2581
    %v2584 = vunpack.c.l.s4 1414812756
    %v2585 = vunpack.c.0.s8 %v2584
    %v2586 = vlaneseq
    %v2587 = vshrl.u32 %v2586, 7
    %v2588 = vsub.s32 %v2585, %v2587
    %v2589 = vrot.slane %v2565, %v2588
    %v2591 = vunpack.c.l.s4 1987475062
    %v2592 = vunpack.c.0.s8 %v2591
    %v2593 = vlaneseq
    %v2594 = vshrl.u32 %v2593, 7
    %v2595 = vsub.s32 %v2592, %v2594
    %v2596 = vrot.slane %v2565, %v2595
    %v2598 = vunpack.c.l.s4 269488144
    %v2599 = vunpack.c.0.s8 %v2598
    %v2600 = vlaneseq
    %v2601 = vshrl.u32 %v2600, 7
    %v2602 = vsub.s32 %v2599, %v2601
    %v2603 = vrot.slane %v2566, %v2602
    %v2605 = vunpack.c.l.s4 842150450
    %v2606 = vunpack.c.0.s8 %v2605
    %v2607 = vlaneseq
    %v2608 = vshrl.u32 %v2607, 7
    %v2609 = vsub.s32 %v2606, %v2608
    %v2610 = vrot.slane %v2566, %v2609
    %v2617 = vsub.f32 %v2516, %v2575
    %v2618 = vsub.f32 %v2517, %v2582
    %v2619 = vsub.f32 %v2518, %v2589
    %v2620 = vsub.f32 %v2519, %v2596
    %v2621 = vsub.f32 %v2520, %v2603
    %v2622 = vsub.f32 %v2521, %v2610
    %v2623 = vmul.f32 %v2617, %v2617
    %v2624 = vmul.f32 %v2618, %v2618
    %v2625 = vmul.f32 %v2619, %v2619
    %v2626 = vmul.f32 %v2620, %v2620
    %v2627 = vmul.f32 %v2621, %v2621
    %v2628 = vmul.f32 %v2622, %v2622
    %v2635 = vcombine.low %v2623, %v2624
    %v2636 = vcombine.low %v2625, %v2626
    %v2638 = vunpack.c.l.s4 1983009808
    %v2639 = vunpack.c.0.s8 %v2638
    %v2640 = vlaneseq
    %v2641 = vshrl.u32 %v2640, 7
    %v2642 = vsub.s32 %v2639, %v2641
    %v2643 = vrot.slane %v2635, %v2642
    %v2645 = vunpack.c.l.s4 1983009808
    %v2646 = vunpack.c.0.s8 %v2645
    %v2647 = vlaneseq
    %v2648 = vshrl.u32 %v2647, 7
    %v2649 = vsub.s32 %v2646, %v2648
    %v2650 = vrot.slane %v2636, %v2649
    %v2651 = vcombine.low %v2643, %v2650
    %v2652 = vcombine.low %v2627, %v2628
    %v2654 = vunpack.c.l.s4 1983009808
    %v2655 = vunpack.c.0.s8 %v2654
    %v2656 = vlaneseq
    %v2657 = vshrl.u32 %v2656, 7
    %v2658 = vsub.s32 %v2655, %v2657
    %v2659 = vrot.slane %v2652, %v2658
    %v2662 = vsel %vm709, %v2651, 0.0
    %2663 = vadd.xlane.f32.xlu0 %v2662
    %v2664 = vpop.xlane.xlu0 %2663
    %v2665 = vsel %vm713, %v2659, 0.0
    %2666 = vadd.xlane.f32.xlu0 %v2665
    %v2667 = vpop.xlane.xlu0 %2666
    %v2668 = vmul.f32 %v2664, %v717
    %v2669 = vmul.f32 %v2667, %v717
    %v2670 = vadd.f32 %v2668, 1e-05
    %v2671 = vadd.f32 %v2669, 1e-05
    %v2672 = vrsqrt.pop %v2670
    %v2673 = vrsqrt.pop %v2671
    %v2677 = vunpack.c.l.s4 269488144
    %v2678 = vunpack.c.0.s8 %v2677
    %v2679 = vlaneseq
    %v2680 = vshrl.u32 %v2679, 7
    %v2681 = vsub.s32 %v2678, %v2680
    %v2682 = vrot.slane %v2672, %v2681
    %v2684 = vunpack.c.l.s4 842150450
    %v2685 = vunpack.c.0.s8 %v2684
    %v2686 = vlaneseq
    %v2687 = vshrl.u32 %v2686, 7
    %v2688 = vsub.s32 %v2685, %v2687
    %v2689 = vrot.slane %v2672, %v2688
    %v2691 = vunpack.c.l.s4 1414812756
    %v2692 = vunpack.c.0.s8 %v2691
    %v2693 = vlaneseq
    %v2694 = vshrl.u32 %v2693, 7
    %v2695 = vsub.s32 %v2692, %v2694
    %v2696 = vrot.slane %v2672, %v2695
    %v2698 = vunpack.c.l.s4 1987475062
    %v2699 = vunpack.c.0.s8 %v2698
    %v2700 = vlaneseq
    %v2701 = vshrl.u32 %v2700, 7
    %v2702 = vsub.s32 %v2699, %v2701
    %v2703 = vrot.slane %v2672, %v2702
    %v2705 = vunpack.c.l.s4 269488144
    %v2706 = vunpack.c.0.s8 %v2705
    %v2707 = vlaneseq
    %v2708 = vshrl.u32 %v2707, 7
    %v2709 = vsub.s32 %v2706, %v2708
    %v2710 = vrot.slane %v2673, %v2709
    %v2712 = vunpack.c.l.s4 842150450
    %v2713 = vunpack.c.0.s8 %v2712
    %v2714 = vlaneseq
    %v2715 = vshrl.u32 %v2714, 7
    %v2716 = vsub.s32 %v2713, %v2715
    %v2717 = vrot.slane %v2673, %v2716
    %v2724 = vmul.f32 %v2617, %v2682
    %v2725 = vmul.f32 %v2618, %v2689
    %v2726 = vmul.f32 %v2619, %v2696
    %v2727 = vmul.f32 %v2620, %v2703
    %v2728 = vmul.f32 %v2621, %v2710
    %v2729 = vmul.f32 %v2622, %v2717
    %v2731 = vlaneseq
    %v2732 = vshrl.u32 %v2731, 7
    %v2733 = vsub.s32 0, %v2732
    %v2734 = vrot.slane %v2523, %v2733
    %v2735 = vcombine.high %v2734, %v2734
    %v2737 = vunpack.c.l.s4 1983009808
    %v2738 = vunpack.c.0.s8 %v2737
    %v2739 = vlaneseq
    %v2740 = vshrl.u32 %v2739, 7
    %v2741 = vsub.s32 %v2738, %v2740
    %v2742 = vrot.slane %v2734, %v2741
    %v2744 = vunpack.c.l.s4 1983009808
    %v2745 = vunpack.c.0.s8 %v2744
    %v2746 = vlaneseq
    %v2747 = vshrl.u32 %v2746, 7
    %v2748 = vsub.s32 %v2745, %v2747
    %v2749 = vrot.slane %v2735, %v2748
    %v2750 = vcombine.high %v2742, %v2742
    %v2751 = vcombine.high %v2749, %v2749
    %v2756 = vmul.f32 %v2724, %v2742
    %v2757 = vmul.f32 %v2725, %v2750
    %v2758 = vmul.f32 %v2726, %v2749
    %v2759 = vmul.f32 %v2727, %v2751
    %v2760 = vmul.f32 %v2728, %v2742
    %v2761 = vmul.f32 %v2729, %v2750
    %v2763 = vlaneseq
    %v2764 = vshrl.u32 %v2763, 7
    %v2765 = vsub.s32 0, %v2764
    %v2766 = vrot.slane %v2525, %v2765
    %v2767 = vcombine.high %v2766, %v2766
    %v2769 = vunpack.c.l.s4 1983009808
    %v2770 = vunpack.c.0.s8 %v2769
    %v2771 = vlaneseq
    %v2772 = vshrl.u32 %v2771, 7
    %v2773 = vsub.s32 %v2770, %v2772
    %v2774 = vrot.slane %v2766, %v2773
    %v2776 = vunpack.c.l.s4 1983009808
    %v2777 = vunpack.c.0.s8 %v2776
    %v2778 = vlaneseq
    %v2779 = vshrl.u32 %v2778, 7
    %v2780 = vsub.s32 %v2777, %v2779
    %v2781 = vrot.slane %v2767, %v2780
    %v2782 = vcombine.high %v2774, %v2774
    %v2783 = vcombine.high %v2781, %v2781
    %v2788 = vadd.f32 %v2756, %v2774
    %v2789 = vadd.f32 %v2757, %v2782
    %v2790 = vadd.f32 %v2758, %v2781
    %v2791 = vadd.f32 %v2759, %v2783
    %v2792 = vadd.f32 %v2760, %v2774
    %v2793 = vadd.f32 %v2761, %v2782
    %s2794 = scalar_lea.vmem %s13, 64
    %v2795 = vld [vmem:[%s2794] sm:$0xff]
    %v2796 = vld [vmem:[%s2794 + $0x8] sm:$0xff]
    %v2797 = vld [vmem:[%s2794 + $0x10] sm:$0xff]
    %v2798 = vld [vmem:[%s2794 + $0x18] sm:$0xff]
    %v2799 = vld [vmem:[%s2794 + $0x20] sm:$0xff]
    %v2800 = vld [vmem:[%s2794 + $0x28] sm:$0xff]
    %v2801 = vld [vmem:[%s2794 + $0x30] sm:$0xff]
    %v2802 = vld [vmem:[%s2794 + $0x38] sm:$0xff]
    %v2809 = vcombine.low %v2788, %v2789
    %v2810 = vcombine.low %v2790, %v2791
    %v2812 = vunpack.c.l.s4 1983009808
    %v2813 = vunpack.c.0.s8 %v2812
    %v2814 = vlaneseq
    %v2815 = vshrl.u32 %v2814, 7
    %v2816 = vsub.s32 %v2813, %v2815
    %v2817 = vrot.slane %v2809, %v2816
    %v2819 = vunpack.c.l.s4 1983009808
    %v2820 = vunpack.c.0.s8 %v2819
    %v2821 = vlaneseq
    %v2822 = vshrl.u32 %v2821, 7
    %v2823 = vsub.s32 %v2820, %v2822
    %v2824 = vrot.slane %v2810, %v2823
    %v2825 = vcombine.low %v2817, %v2824
    %v2826 = vcombine.low %v2792, %v2793
    %v2828 = vunpack.c.l.s4 1983009808
    %v2829 = vunpack.c.0.s8 %v2828
    %v2830 = vlaneseq
    %v2831 = vshrl.u32 %v2830, 7
    %v2832 = vsub.s32 %v2829, %v2831
    %v2833 = vrot.slane %v2826, %v2832
    %v2836 = vpack.c.bf16 %v2833, %v2825
    %s2837 = scalar_lea.vmem %s14, 2
    %v2838 = vld [vmem:[%s2837] sm:$0x3]
    %v2840 = vlaneseq
    %v2841 = vshrl.u32 %v2840, 7
    %v2842 = vsub.s32 0, %v2841
    %v2843 = vrot.slane %v2838, %v2842
    %v2844 = vlaneseq
    %v2845 = vshrl.u32 %v2844, 7
    %v2846 = vsub.s32 1, %v2845
    %v2847 = vrot.slane %v2838, %v2846
    %v2858 = vunpack.c.l.b16 %v2795
    %v2859 = vunpack.c.h.b16 %v2795
    %v2860 = vunpack.c.l.b16 %v2796
    %v2861 = vunpack.c.h.b16 %v2796
    %v2862 = vunpack.c.l.b16 %v2797
    %v2863 = vunpack.c.h.b16 %v2797
    %v2864 = vunpack.c.l.b16 %v2798
    %v2865 = vunpack.c.h.b16 %v2798
    %v2866 = vunpack.c.l.b16 %v2799
    %v2867 = vunpack.c.h.b16 %v2799
    %v2868 = vunpack.c.l.b16 %v2800
    %v2869 = vunpack.c.h.b16 %v2800
    %v2870 = vunpack.c.l.b16 %v2801
    %v2871 = vunpack.c.h.b16 %v2801
    %v2872 = vunpack.c.l.b16 %v2802
    %v2873 = vunpack.c.h.b16 %v2802
    %v2874 = vpack.c.b16 %v2860, %v2858
    %v2875 = vpack.c.b16 %v2861, %v2859
    %v2876 = vpack.c.b16 %v2864, %v2862
    %v2877 = vpack.c.b16 %v2865, %v2863
    %v2878 = vpack.c.b16 %v2868, %v2866
    %v2879 = vpack.c.b16 %v2869, %v2867
    %v2880 = vpack.c.b16 %v2872, %v2870
    %v2881 = vpack.c.b16 %v2873, %v2871
    %v2891 = vsel %vm709, %v2836, 0
    %2893 = vmatprep.subr.bf16.mxu0 %v2875
    %2894 = vmatpush1.bf16.msra.mxu0 %v2874
    %2895 = vmatprep.subr.bf16.mxu0 %v2877
    %2896 = vmatpush1.bf16.msra.mxu0 %v2876
    %2897 = vmatprep.subr.bf16.mxu0 %v2879
    %2898 = vmatpush1.bf16.msra.mxu0 %v2878
    %2899 = vmatprep.subr.bf16.mxu0 %v2881
    %2900 = vmatpush1.bf16.msra.mxu0 %v2880
    %2901 = vmatprep.subr.bf16.mxu0 0
    %2902 = vmatpush1.bf16.msra.mxu0 0
    %2903 = vmatprep.subr.bf16.mxu0 0
    %2904 = vmatpush1.bf16.msra.mxu0 0
    %2905 = vmatprep.subr.bf16.mxu0 0
    %2906 = vmatpush1.bf16.msra.mxu0 0
    %2907 = vmatprep.subr.bf16.mxu0 0
    %2908 = vmatpush1.bf16.msra.mxu0 0
    %2909 = vmatprep.subr.bf16.mxu0 0
    %2910 = vmatpush1.bf16.msra.mxu0 0
    %2911 = vmatprep.subr.bf16.mxu0 0
    %2912 = vmatpush1.bf16.msra.mxu0 0
    %2913 = vmatprep.subr.bf16.mxu0 0
    %2914 = vmatpush1.bf16.msra.mxu0 0
    %2915 = vmatprep.subr.bf16.mxu0 0
    %2916 = vmatpush1.bf16.msra.mxu0 0
    %2917 = vmatprep.subr.bf16.mxu0 0
    %2918 = vmatpush1.bf16.msra.mxu0 0
    %2919 = vmatprep.subr.bf16.mxu0 0
    %2920 = vmatpush1.bf16.msra.mxu0 0
    %2921 = vmatprep.subr.bf16.mxu0 0
    %2922 = vmatpush1.bf16.msra.mxu0 0
    %2923 = vmatprep.subr.bf16.mxu0 0
    %2924 = vmatpush1.bf16.msra.mxu0 0
    %2925 = vmatprep.mubr.bf16.mxu0 0
    %2926 = vmatmul.mubr.bf16.gmra.mrb[0].mxu0 %v2891
    %v2927 = vpop.f32.mrb[0].mxu0
    %v2928 = vadd.f32 %v2843, %v2927
    %v2929 = vpop.f32.mrb[0].mxu0
    %v2930 = vadd.f32 %v2847, %v2929
    %v2931 = vpop.f32.mrb[0].mxu0
    %v2932 = vadd.f32 %v2843, %v2931
    %v2933 = vpop.f32.mrb[0].mxu0
    %v2934 = vadd.f32 %v2847, %v2933
    %2935 = vdwg.mxu0
    %v2940 = vcombine.low %v2928, %v2930
    %v2941 = vcombine.high %v2928, %v2930
    %v2943 = vunpack.c.l.s4 1983009808
    %v2944 = vunpack.c.0.s8 %v2943
    %v2945 = vlaneseq
    %v2946 = vshrl.u32 %v2945, 7
    %v2947 = vsub.s32 %v2944, %v2946
    %v2948 = vrot.slane %v2940, %v2947
    %v2950 = vunpack.c.l.s4 1983009808
    %v2951 = vunpack.c.0.s8 %v2950
    %v2952 = vlaneseq
    %v2953 = vshrl.u32 %v2952, 7
    %v2954 = vsub.s32 %v2951, %v2953
    %v2955 = vrot.slane %v2941, %v2954
    %v2956 = vcombine.high %v2948, %v2948
    %v2957 = vcombine.high %v2955, %v2955
    %v2958 = vcombine.low %v2932, %v2934
    %v2960 = vunpack.c.l.s4 1983009808
    %v2961 = vunpack.c.0.s8 %v2960
    %v2962 = vlaneseq
    %v2963 = vshrl.u32 %v2962, 7
    %v2964 = vsub.s32 %v2961, %v2963
    %v2965 = vrot.slane %v2958, %v2964
    %v2966 = vcombine.high %v2965, %v2965
    %v2973 = vmul.f32 %v2948, 0.17677669
    %v2974 = vmul.f32 %v2956, 0.17677669
    %v2975 = vmul.f32 %v2955, 0.17677669
    %v2976 = vmul.f32 %v2957, 0.17677669
    %v2977 = vmul.f32 %v2965, 0.17677669
    %v2978 = vmul.f32 %v2966, 0.17677669
    %v2979 = vcombine.low %v2948, %v2956
    %v2981 = vunpack.c.l.s4 1983009808
    %v2982 = vunpack.c.0.s8 %v2981
    %v2983 = vlaneseq
    %v2984 = vshrl.u32 %v2983, 7
    %v2985 = vsub.s32 %v2982, %v2984
    %v2986 = vrot.slane %v2979, %v2985
    %v2988 = vunpack.c.l.s4 1983009808
    %v2989 = vunpack.c.0.s8 %v2988
    %v2990 = vlaneseq
    %v2991 = vshrl.u32 %v2990, 7
    %v2992 = vsub.s32 %v2989, %v2991
    %v2993 = vrot.slane %v2955, %v2992
    %v2994 = vcombine.low %v2986, %v2993
    %v2995 = vcombine.low %v2957, %v2965
    %v2997 = vunpack.c.l.s4 1983009808
    %v2998 = vunpack.c.0.s8 %v2997
    %v2999 = vlaneseq
    %v3000 = vshrl.u32 %v2999, 7
    %v3001 = vsub.s32 %v2998, %v3000
    %v3002 = vrot.slane %v2995, %v3001
    %v3004 = vunpack.c.l.s4 1983009808
    %v3005 = vunpack.c.0.s8 %v3004
    %v3006 = vlaneseq
    %v3007 = vshrl.u32 %v3006, 7
    %v3008 = vsub.s32 %v3005, %v3007
    %v3009 = vrot.slane %v2966, %v3008
    %v3010 = vcombine.low %v3002, %v3009
    %v3013 = vpack.c.bf16 %v2994, %v2994
    %v3014 = vpack.c.bf16 %v3010, %v3010
    %v3015 = vcombine.high %v2986, %v2993
    %v3016 = vcombine.high %v3002, %v3009
    %v3019 = vpack.c.bf16 %v3015, %v3015
    %v3020 = vpack.c.bf16 %v3016, %v3016
    %v3021 = vmul.f32 %v2973, %v1180
    %v3022 = vmul.f32 %v2974, %v1188
    %v3023 = vmul.f32 %v2975, %v1187
    %v3024 = vmul.f32 %v2976, %v1180
    %v3025 = vmul.f32 %v2977, %v1188
    %v3026 = vmul.f32 %v2978, %v1187
    %v3033 = vcombine.low %v3021, %v3022
    %v3035 = vunpack.c.l.s4 1983009808
    %v3036 = vunpack.c.0.s8 %v3035
    %v3037 = vlaneseq
    %v3038 = vshrl.u32 %v3037, 7
    %v3039 = vsub.s32 %v3036, %v3038
    %v3040 = vrot.slane %v3033, %v3039
    %v3042 = vunpack.c.l.s4 1983009808
    %v3043 = vunpack.c.0.s8 %v3042
    %v3044 = vlaneseq
    %v3045 = vshrl.u32 %v3044, 7
    %v3046 = vsub.s32 %v3043, %v3045
    %v3047 = vrot.slane %v3023, %v3046
    %v3048 = vcombine.low %v3040, %v3047
    %v3049 = vcombine.low %v3024, %v3025
    %v3051 = vunpack.c.l.s4 1983009808
    %v3052 = vunpack.c.0.s8 %v3051
    %v3053 = vlaneseq
    %v3054 = vshrl.u32 %v3053, 7
    %v3055 = vsub.s32 %v3052, %v3054
    %v3056 = vrot.slane %v3049, %v3055
    %v3058 = vunpack.c.l.s4 1983009808
    %v3059 = vunpack.c.0.s8 %v3058
    %v3060 = vlaneseq
    %v3061 = vshrl.u32 %v3060, 7
    %v3062 = vsub.s32 %v3059, %v3061
    %v3063 = vrot.slane %v3026, %v3062
    %v3064 = vcombine.low %v3056, %v3063
    %v3067 = vpack.c.bf16 %v3048, %v3048
    %v3068 = vpack.c.bf16 %v3064, %v3064
    %3070 = vrot.lane.b32.xlu0 %v3013, 64
    %v3071 = vpop.permute.xlu0 %3070
    %v3073 = vsel %vm709, %v3067, 0
    %v3076 = vsel %vm709, %v3071, 0
    %3078 = vmatprep.subr.bf16.mxu0 0
    %3079 = vmatpush1.bf16.xpose.msra.mxu0 %v3076
    %3080 = vmatprep.subr.bf16.mxu0 0
    %3081 = vmatpush1.bf16.xpose.msra.mxu0 0
    %3082 = vmatprep.subr.bf16.mxu0 0
    %3083 = vmatpush1.bf16.xpose.msra.mxu0 0
    %3084 = vmatprep.subr.bf16.mxu0 0
    %3085 = vmatpush1.bf16.xpose.msra.mxu0 0
    %3086 = vmatprep.subr.bf16.mxu0 0
    %3087 = vmatpush1.bf16.xpose.msra.mxu0 0
    %3088 = vmatprep.subr.bf16.mxu0 0
    %3089 = vmatpush1.bf16.xpose.msra.mxu0 0
    %3090 = vmatprep.subr.bf16.mxu0 0
    %3091 = vmatpush1.bf16.xpose.msra.mxu0 0
    %3092 = vmatprep.subr.bf16.mxu0 0
    %3093 = vmatpush1.bf16.xpose.msra.mxu0 0
    %3094 = vmatprep.subr.bf16.mxu0 0
    %3095 = vmatpush1.bf16.xpose.msra.mxu0 0
    %3096 = vmatprep.subr.bf16.mxu0 0
    %3097 = vmatpush1.bf16.xpose.msra.mxu0 0
    %3098 = vmatprep.subr.bf16.mxu0 0
    %3099 = vmatpush1.bf16.xpose.msra.mxu0 0
    %3100 = vmatprep.subr.bf16.mxu0 0
    %3101 = vmatpush1.bf16.xpose.msra.mxu0 0
    %3102 = vmatprep.subr.bf16.mxu0 0
    %3103 = vmatpush1.bf16.xpose.msra.mxu0 0
    %3104 = vmatprep.subr.bf16.mxu0 0
    %3105 = vmatpush1.bf16.xpose.msra.mxu0 0
    %3106 = vmatprep.subr.bf16.mxu0 0
    %3107 = vmatpush1.bf16.xpose.msra.mxu0 0
    %3108 = vmatprep.subr.bf16.mxu0 0
    %3109 = vmatpush1.bf16.xpose.msra.mxu0 0
    %3110 = vmatprep.mubr.bf16.mxu0 0
    %3111 = vmatmul.mubr.bf16.gmra.mrb[0].mxu0 %v3073
    %v3112 = vpop.f32.mrb[0].mxu0
    %v3113 = vadd.f32 %v663, %v3112
    %v3114 = vpop.f32.mrb[0].mxu0
    %v3115 = vpop.f32.mrb[0].mxu0
    %v3116 = vpop.f32.mrb[0].mxu0
    %3117 = vdwg.mxu0
    %3119 = vrot.lane.b32.xlu0 %v3014, 64
    %v3120 = vpop.permute.xlu0 %3119
    %v3122 = vsel %vm709, %v3068, 0
    %v3125 = vsel %vm709, %v3120, 0
    %3127 = vmatprep.subr.bf16.mxu0 0
    %3128 = vmatpush1.bf16.xpose.msra.mxu0 %v3125
    %3129 = vmatprep.subr.bf16.mxu0 0
    %3130 = vmatpush1.bf16.xpose.msra.mxu0 0
    %3131 = vmatprep.subr.bf16.mxu0 0
    %3132 = vmatpush1.bf16.xpose.msra.mxu0 0
    %3133 = vmatprep.subr.bf16.mxu0 0
    %3134 = vmatpush1.bf16.xpose.msra.mxu0 0
    %3135 = vmatprep.subr.bf16.mxu0 0
    %3136 = vmatpush1.bf16.xpose.msra.mxu0 0
    %3137 = vmatprep.subr.bf16.mxu0 0
    %3138 = vmatpush1.bf16.xpose.msra.mxu0 0
    %3139 = vmatprep.subr.bf16.mxu0 0
    %3140 = vmatpush1.bf16.xpose.msra.mxu0 0
    %3141 = vmatprep.subr.bf16.mxu0 0
    %3142 = vmatpush1.bf16.xpose.msra.mxu0 0
    %3143 = vmatprep.subr.bf16.mxu0 0
    %3144 = vmatpush1.bf16.xpose.msra.mxu0 0
    %3145 = vmatprep.subr.bf16.mxu0 0
    %3146 = vmatpush1.bf16.xpose.msra.mxu0 0
    %3147 = vmatprep.subr.bf16.mxu0 0
    %3148 = vmatpush1.bf16.xpose.msra.mxu0 0
    %3149 = vmatprep.subr.bf16.mxu0 0
    %3150 = vmatpush1.bf16.xpose.msra.mxu0 0
    %3151 = vmatprep.subr.bf16.mxu0 0
    %3152 = vmatpush1.bf16.xpose.msra.mxu0 0
    %3153 = vmatprep.subr.bf16.mxu0 0
    %3154 = vmatpush1.bf16.xpose.msra.mxu0 0
    %3155 = vmatprep.subr.bf16.mxu0 0
    %3156 = vmatpush1.bf16.xpose.msra.mxu0 0
    %3157 = vmatprep.subr.bf16.mxu0 0
    %3158 = vmatpush1.bf16.xpose.msra.mxu0 0
    %3159 = vmatprep.mubr.bf16.mxu0 0
    %3160 = vmatmul.mubr.bf16.gmra.mrb[0].mxu0 %v3122
    %v3161 = vpop.f32.mrb[0].mxu0
    %v3162 = vadd.f32 %v663, %v3161
    %v3163 = vpop.f32.mrb[0].mxu0
    %v3164 = vpop.f32.mrb[0].mxu0
    %v3165 = vpop.f32.mrb[0].mxu0
    %3166 = vdwg.mxu0
    %v3167 = vsel %vm1338, %v3113, -inf
    %3168 = vmax.xlane.f32.xlu0 %v3167
    %v3169 = vpop.xlane.xlu0 %3168
    %v3170 = vsel %vm1338, %v3162, -inf
    %3171 = vmax.xlane.f32.xlu0 %v3170
    %v3172 = vpop.xlane.xlu0 %3171
    %v3173 = vsub.f32 %v3113, %v3169
    %v3174 = vsub.f32 %v3162, %v3172
    %v3175 = vmul.f32 %v3173, 1.442695
    %v3176 = vpow.pop %v3175
    %v3177 = vmul.f32 %v3174, 1.442695
    %v3178 = vpow.pop %v3177
    %v3179 = vsel %vm1338, %v3176, 0.0
    %3180 = vadd.xlane.f32.xlu0 %v3179
    %v3181 = vpop.xlane.xlu0 %3180
    %v3182 = vsel %vm1338, %v3178, 0.0
    %3183 = vadd.xlane.f32.xlu0 %v3182
    %v3184 = vpop.xlane.xlu0 %3183
    %v3185 = vrcp.pop %v3181
    %v3186 = vrcp.pop %v3184
    %v3187 = vmul.f32 %v3176, %v3185
    %v3188 = vmul.f32 %v3178, %v3186
    %v3189 = vpack.c.bf16 %v3187, %v3187
    %v3190 = vpack.c.bf16 %v3188, %v3188
    %v3192 = vsel %vm1363, %v3189, 0
    %v3195 = vsel %vm1367, %v3019, 0
    %3197 = vmatprep.subr.bf16.mxu0 0
    %3198 = vmatpush1.bf16.msra.mxu0 %v3195
    %3199 = vmatprep.subr.bf16.mxu0 0
    %3200 = vmatpush1.bf16.msra.mxu0 0
    %3201 = vmatprep.subr.bf16.mxu0 0
    %3202 = vmatpush1.bf16.msra.mxu0 0
    %3203 = vmatprep.subr.bf16.mxu0 0
    %3204 = vmatpush1.bf16.msra.mxu0 0
    %3205 = vmatprep.subr.bf16.mxu0 0
    %3206 = vmatpush1.bf16.msra.mxu0 0
    %3207 = vmatprep.subr.bf16.mxu0 0
    %3208 = vmatpush1.bf16.msra.mxu0 0
    %3209 = vmatprep.subr.bf16.mxu0 0
    %3210 = vmatpush1.bf16.msra.mxu0 0
    %3211 = vmatprep.subr.bf16.mxu0 0
    %3212 = vmatpush1.bf16.msra.mxu0 0
    %3213 = vmatprep.subr.bf16.mxu0 0
    %3214 = vmatpush1.bf16.msra.mxu0 0
    %3215 = vmatprep.subr.bf16.mxu0 0
    %3216 = vmatpush1.bf16.msra.mxu0 0
    %3217 = vmatprep.subr.bf16.mxu0 0
    %3218 = vmatpush1.bf16.msra.mxu0 0
    %3219 = vmatprep.subr.bf16.mxu0 0
    %3220 = vmatpush1.bf16.msra.mxu0 0
    %3221 = vmatprep.subr.bf16.mxu0 0
    %3222 = vmatpush1.bf16.msra.mxu0 0
    %3223 = vmatprep.subr.bf16.mxu0 0
    %3224 = vmatpush1.bf16.msra.mxu0 0
    %3225 = vmatprep.subr.bf16.mxu0 0
    %3226 = vmatpush1.bf16.msra.mxu0 0
    %3227 = vmatprep.subr.bf16.mxu0 0
    %3228 = vmatpush1.bf16.msra.mxu0 0
    %3229 = vmatprep.mubr.bf16.mxu0 0
    %3230 = vmatmul.mubr.bf16.gmra.mrb[0].mxu0 %v3192
    %v3231 = vpop.f32.mrb[0].mxu0
    %v3232 = vadd.f32 0.0, %v3231
    %v3233 = vpop.f32.mrb[0].mxu0
    %v3234 = vpop.f32.mrb[0].mxu0
    %v3235 = vpop.f32.mrb[0].mxu0
    %3236 = vdwg.mxu0
    %v3238 = vsel %vm1363, %v3190, 0
    %v3241 = vsel %vm1367, %v3020, 0
    %3243 = vmatprep.subr.bf16.mxu0 0
    %3244 = vmatpush1.bf16.msra.mxu0 %v3241
    %3245 = vmatprep.subr.bf16.mxu0 0
    %3246 = vmatpush1.bf16.msra.mxu0 0
    %3247 = vmatprep.subr.bf16.mxu0 0
    %3248 = vmatpush1.bf16.msra.mxu0 0
    %3249 = vmatprep.subr.bf16.mxu0 0
    %3250 = vmatpush1.bf16.msra.mxu0 0
    %3251 = vmatprep.subr.bf16.mxu0 0
    %3252 = vmatpush1.bf16.msra.mxu0 0
    %3253 = vmatprep.subr.bf16.mxu0 0
    %3254 = vmatpush1.bf16.msra.mxu0 0
    %3255 = vmatprep.subr.bf16.mxu0 0
    %3256 = vmatpush1.bf16.msra.mxu0 0
    %3257 = vmatprep.subr.bf16.mxu0 0
    %3258 = vmatpush1.bf16.msra.mxu0 0
    %3259 = vmatprep.subr.bf16.mxu0 0
    %3260 = vmatpush1.bf16.msra.mxu0 0
    %3261 = vmatprep.subr.bf16.mxu0 0
    %3262 = vmatpush1.bf16.msra.mxu0 0
    %3263 = vmatprep.subr.bf16.mxu0 0
    %3264 = vmatpush1.bf16.msra.mxu0 0
    %3265 = vmatprep.subr.bf16.mxu0 0
    %3266 = vmatpush1.bf16.msra.mxu0 0
    %3267 = vmatprep.subr.bf16.mxu0 0
    %3268 = vmatpush1.bf16.msra.mxu0 0
    %3269 = vmatprep.subr.bf16.mxu0 0
    %3270 = vmatpush1.bf16.msra.mxu0 0
    %3271 = vmatprep.subr.bf16.mxu0 0
    %3272 = vmatpush1.bf16.msra.mxu0 0
    %3273 = vmatprep.subr.bf16.mxu0 0
    %3274 = vmatpush1.bf16.msra.mxu0 0
    %3275 = vmatprep.mubr.bf16.mxu0 0
    %3276 = vmatmul.mubr.bf16.gmra.mrb[0].mxu0 %v3238
    %v3277 = vpop.f32.mrb[0].mxu0
    %v3278 = vadd.f32 0.0, %v3277
    %v3279 = vpop.f32.mrb[0].mxu0
    %v3280 = vpop.f32.mrb[0].mxu0
    %v3281 = vpop.f32.mrb[0].mxu0
    %3282 = vdwg.mxu0
    %v3283 = vmul.f32 %v3232, %v668
    %v3284 = vmul.f32 %v3278, %v668
    %v3285 = vadd.f32 %v3283, 0.0
    %v3286 = vadd.f32 %v3284, 0.0
    %v3287 = vmul.f32 %v2973, %v1469
    %v3288 = vmul.f32 %v2974, %v1477
    %v3289 = vmul.f32 %v2975, %v1476
    %v3290 = vmul.f32 %v2976, %v1469
    %v3291 = vmul.f32 %v2977, %v1477
    %v3292 = vmul.f32 %v2978, %v1476
    %v3299 = vcombine.low %v3287, %v3288
    %v3301 = vunpack.c.l.s4 1983009808
    %v3302 = vunpack.c.0.s8 %v3301
    %v3303 = vlaneseq
    %v3304 = vshrl.u32 %v3303, 7
    %v3305 = vsub.s32 %v3302, %v3304
    %v3306 = vrot.slane %v3299, %v3305
    %v3308 = vunpack.c.l.s4 1983009808
    %v3309 = vunpack.c.0.s8 %v3308
    %v3310 = vlaneseq
    %v3311 = vshrl.u32 %v3310, 7
    %v3312 = vsub.s32 %v3309, %v3311
    %v3313 = vrot.slane %v3289, %v3312
    %v3314 = vcombine.low %v3306, %v3313
    %v3315 = vcombine.low %v3290, %v3291
    %v3317 = vunpack.c.l.s4 1983009808
    %v3318 = vunpack.c.0.s8 %v3317
    %v3319 = vlaneseq
    %v3320 = vshrl.u32 %v3319, 7
    %v3321 = vsub.s32 %v3318, %v3320
    %v3322 = vrot.slane %v3315, %v3321
    %v3324 = vunpack.c.l.s4 1983009808
    %v3325 = vunpack.c.0.s8 %v3324
    %v3326 = vlaneseq
    %v3327 = vshrl.u32 %v3326, 7
    %v3328 = vsub.s32 %v3325, %v3327
    %v3329 = vrot.slane %v3292, %v3328
    %v3330 = vcombine.low %v3322, %v3329
    %v3333 = vpack.c.bf16 %v3314, %v3314
    %v3334 = vpack.c.bf16 %v3330, %v3330
    %v3336 = vsel %vm709, %v3333, 0
    %3338 = vmatprep.subr.bf16.mxu0 0
    %3339 = vmatpush1.bf16.xpose.msra.mxu0 %v3076
    %3340 = vmatprep.subr.bf16.mxu0 0
    %3341 = vmatpush1.bf16.xpose.msra.mxu0 0
    %3342 = vmatprep.subr.bf16.mxu0 0
    %3343 = vmatpush1.bf16.xpose.msra.mxu0 0
    %3344 = vmatprep.subr.bf16.mxu0 0
    %3345 = vmatpush1.bf16.xpose.msra.mxu0 0
    %3346 = vmatprep.subr.bf16.mxu0 0
    %3347 = vmatpush1.bf16.xpose.msra.mxu0 0
    %3348 = vmatprep.subr.bf16.mxu0 0
    %3349 = vmatpush1.bf16.xpose.msra.mxu0 0
    %3350 = vmatprep.subr.bf16.mxu0 0
    %3351 = vmatpush1.bf16.xpose.msra.mxu0 0
    %3352 = vmatprep.subr.bf16.mxu0 0
    %3353 = vmatpush1.bf16.xpose.msra.mxu0 0
    %3354 = vmatprep.subr.bf16.mxu0 0
    %3355 = vmatpush1.bf16.xpose.msra.mxu0 0
    %3356 = vmatprep.subr.bf16.mxu0 0
    %3357 = vmatpush1.bf16.xpose.msra.mxu0 0
    %3358 = vmatprep.subr.bf16.mxu0 0
    %3359 = vmatpush1.bf16.xpose.msra.mxu0 0
    %3360 = vmatprep.subr.bf16.mxu0 0
    %3361 = vmatpush1.bf16.xpose.msra.mxu0 0
    %3362 = vmatprep.subr.bf16.mxu0 0
    %3363 = vmatpush1.bf16.xpose.msra.mxu0 0
    %3364 = vmatprep.subr.bf16.mxu0 0
    %3365 = vmatpush1.bf16.xpose.msra.mxu0 0
    %3366 = vmatprep.subr.bf16.mxu0 0
    %3367 = vmatpush1.bf16.xpose.msra.mxu0 0
    %3368 = vmatprep.subr.bf16.mxu0 0
    %3369 = vmatpush1.bf16.xpose.msra.mxu0 0
    %3370 = vmatprep.mubr.bf16.mxu0 0
    %3371 = vmatmul.mubr.bf16.gmra.mrb[0].mxu0 %v3336
    %v3372 = vpop.f32.mrb[0].mxu0
    %v3373 = vadd.f32 %v663, %v3372
    %v3374 = vpop.f32.mrb[0].mxu0
    %v3375 = vpop.f32.mrb[0].mxu0
    %v3376 = vpop.f32.mrb[0].mxu0
    %3377 = vdwg.mxu0
    %v3379 = vsel %vm709, %v3334, 0
    %3381 = vmatprep.subr.bf16.mxu0 0
    %3382 = vmatpush1.bf16.xpose.msra.mxu0 %v3125
    %3383 = vmatprep.subr.bf16.mxu0 0
    %3384 = vmatpush1.bf16.xpose.msra.mxu0 0
    %3385 = vmatprep.subr.bf16.mxu0 0
    %3386 = vmatpush1.bf16.xpose.msra.mxu0 0
    %3387 = vmatprep.subr.bf16.mxu0 0
    %3388 = vmatpush1.bf16.xpose.msra.mxu0 0
    %3389 = vmatprep.subr.bf16.mxu0 0
    %3390 = vmatpush1.bf16.xpose.msra.mxu0 0
    %3391 = vmatprep.subr.bf16.mxu0 0
    %3392 = vmatpush1.bf16.xpose.msra.mxu0 0
    %3393 = vmatprep.subr.bf16.mxu0 0
    %3394 = vmatpush1.bf16.xpose.msra.mxu0 0
    %3395 = vmatprep.subr.bf16.mxu0 0
    %3396 = vmatpush1.bf16.xpose.msra.mxu0 0
    %3397 = vmatprep.subr.bf16.mxu0 0
    %3398 = vmatpush1.bf16.xpose.msra.mxu0 0
    %3399 = vmatprep.subr.bf16.mxu0 0
    %3400 = vmatpush1.bf16.xpose.msra.mxu0 0
    %3401 = vmatprep.subr.bf16.mxu0 0
    %3402 = vmatpush1.bf16.xpose.msra.mxu0 0
    %3403 = vmatprep.subr.bf16.mxu0 0
    %3404 = vmatpush1.bf16.xpose.msra.mxu0 0
    %3405 = vmatprep.subr.bf16.mxu0 0
    %3406 = vmatpush1.bf16.xpose.msra.mxu0 0
    %3407 = vmatprep.subr.bf16.mxu0 0
    %3408 = vmatpush1.bf16.xpose.msra.mxu0 0
    %3409 = vmatprep.subr.bf16.mxu0 0
    %3410 = vmatpush1.bf16.xpose.msra.mxu0 0
    %3411 = vmatprep.subr.bf16.mxu0 0
    %3412 = vmatpush1.bf16.xpose.msra.mxu0 0
    %3413 = vmatprep.mubr.bf16.mxu0 0
    %3414 = vmatmul.mubr.bf16.gmra.mrb[0].mxu0 %v3379
    %v3415 = vpop.f32.mrb[0].mxu0
    %v3416 = vadd.f32 %v663, %v3415
    %v3417 = vpop.f32.mrb[0].mxu0
    %v3418 = vpop.f32.mrb[0].mxu0
    %v3419 = vpop.f32.mrb[0].mxu0
    %3420 = vdwg.mxu0
    %v3421 = vsel %vm1338, %v3373, -inf
    %3422 = vmax.xlane.f32.xlu0 %v3421
    %v3423 = vpop.xlane.xlu0 %3422
    %v3424 = vsel %vm1338, %v3416, -inf
    %3425 = vmax.xlane.f32.xlu0 %v3424
    %v3426 = vpop.xlane.xlu0 %3425
    %v3427 = vsub.f32 %v3373, %v3423
    %v3428 = vsub.f32 %v3416, %v3426
    %v3429 = vmul.f32 %v3427, 1.442695
    %v3430 = vpow.pop %v3429
    %v3431 = vmul.f32 %v3428, 1.442695
    %v3432 = vpow.pop %v3431
    %v3433 = vsel %vm1338, %v3430, 0.0
    %3434 = vadd.xlane.f32.xlu0 %v3433
    %v3435 = vpop.xlane.xlu0 %3434
    %v3436 = vsel %vm1338, %v3432, 0.0
    %3437 = vadd.xlane.f32.xlu0 %v3436
    %v3438 = vpop.xlane.xlu0 %3437
    %v3439 = vrcp.pop %v3435
    %v3440 = vrcp.pop %v3438
    %v3441 = vmul.f32 %v3430, %v3439
    %v3442 = vmul.f32 %v3432, %v3440
    %v3443 = vpack.c.bf16 %v3441, %v3441
    %v3444 = vpack.c.bf16 %v3442, %v3442
    %v3446 = vsel %vm1363, %v3443, 0
    %3448 = vmatprep.subr.bf16.mxu0 0
    %3449 = vmatpush1.bf16.msra.mxu0 %v3195
    %3450 = vmatprep.subr.bf16.mxu0 0
    %3451 = vmatpush1.bf16.msra.mxu0 0
    %3452 = vmatprep.subr.bf16.mxu0 0
    %3453 = vmatpush1.bf16.msra.mxu0 0
    %3454 = vmatprep.subr.bf16.mxu0 0
    %3455 = vmatpush1.bf16.msra.mxu0 0
    %3456 = vmatprep.subr.bf16.mxu0 0
    %3457 = vmatpush1.bf16.msra.mxu0 0
    %3458 = vmatprep.subr.bf16.mxu0 0
    %3459 = vmatpush1.bf16.msra.mxu0 0
    %3460 = vmatprep.subr.bf16.mxu0 0
    %3461 = vmatpush1.bf16.msra.mxu0 0
    %3462 = vmatprep.subr.bf16.mxu0 0
    %3463 = vmatpush1.bf16.msra.mxu0 0
    %3464 = vmatprep.subr.bf16.mxu0 0
    %3465 = vmatpush1.bf16.msra.mxu0 0
    %3466 = vmatprep.subr.bf16.mxu0 0
    %3467 = vmatpush1.bf16.msra.mxu0 0
    %3468 = vmatprep.subr.bf16.mxu0 0
    %3469 = vmatpush1.bf16.msra.mxu0 0
    %3470 = vmatprep.subr.bf16.mxu0 0
    %3471 = vmatpush1.bf16.msra.mxu0 0
    %3472 = vmatprep.subr.bf16.mxu0 0
    %3473 = vmatpush1.bf16.msra.mxu0 0
    %3474 = vmatprep.subr.bf16.mxu0 0
    %3475 = vmatpush1.bf16.msra.mxu0 0
    %3476 = vmatprep.subr.bf16.mxu0 0
    %3477 = vmatpush1.bf16.msra.mxu0 0
    %3478 = vmatprep.subr.bf16.mxu0 0
    %3479 = vmatpush1.bf16.msra.mxu0 0
    %3480 = vmatprep.mubr.bf16.mxu0 0
    %3481 = vmatmul.mubr.bf16.gmra.mrb[0].mxu0 %v3446
    %v3482 = vpop.f32.mrb[0].mxu0
    %v3483 = vadd.f32 0.0, %v3482
    %v3484 = vpop.f32.mrb[0].mxu0
    %v3485 = vpop.f32.mrb[0].mxu0
    %v3486 = vpop.f32.mrb[0].mxu0
    %3487 = vdwg.mxu0
    %v3489 = vsel %vm1363, %v3444, 0
    %3491 = vmatprep.subr.bf16.mxu0 0
    %3492 = vmatpush1.bf16.msra.mxu0 %v3241
    %3493 = vmatprep.subr.bf16.mxu0 0
    %3494 = vmatpush1.bf16.msra.mxu0 0
    %3495 = vmatprep.subr.bf16.mxu0 0
    %3496 = vmatpush1.bf16.msra.mxu0 0
    %3497 = vmatprep.subr.bf16.mxu0 0
    %3498 = vmatpush1.bf16.msra.mxu0 0
    %3499 = vmatprep.subr.bf16.mxu0 0
    %3500 = vmatpush1.bf16.msra.mxu0 0
    %3501 = vmatprep.subr.bf16.mxu0 0
    %3502 = vmatpush1.bf16.msra.mxu0 0
    %3503 = vmatprep.subr.bf16.mxu0 0
    %3504 = vmatpush1.bf16.msra.mxu0 0
    %3505 = vmatprep.subr.bf16.mxu0 0
    %3506 = vmatpush1.bf16.msra.mxu0 0
    %3507 = vmatprep.subr.bf16.mxu0 0
    %3508 = vmatpush1.bf16.msra.mxu0 0
    %3509 = vmatprep.subr.bf16.mxu0 0
    %3510 = vmatpush1.bf16.msra.mxu0 0
    %3511 = vmatprep.subr.bf16.mxu0 0
    %3512 = vmatpush1.bf16.msra.mxu0 0
    %3513 = vmatprep.subr.bf16.mxu0 0
    %3514 = vmatpush1.bf16.msra.mxu0 0
    %3515 = vmatprep.subr.bf16.mxu0 0
    %3516 = vmatpush1.bf16.msra.mxu0 0
    %3517 = vmatprep.subr.bf16.mxu0 0
    %3518 = vmatpush1.bf16.msra.mxu0 0
    %3519 = vmatprep.subr.bf16.mxu0 0
    %3520 = vmatpush1.bf16.msra.mxu0 0
    %3521 = vmatprep.subr.bf16.mxu0 0
    %3522 = vmatpush1.bf16.msra.mxu0 0
    %3523 = vmatprep.mubr.bf16.mxu0 0
    %3524 = vmatmul.mubr.bf16.gmra.mrb[0].mxu0 %v3489
    %v3525 = vpop.f32.mrb[0].mxu0
    %v3526 = vadd.f32 0.0, %v3525
    %v3527 = vpop.f32.mrb[0].mxu0
    %v3528 = vpop.f32.mrb[0].mxu0
    %v3529 = vpop.f32.mrb[0].mxu0
    %3530 = vdwg.mxu0
    %v3531 = vmul.f32 %v3483, %v673
    %v3532 = vmul.f32 %v3526, %v673
    %v3533 = vadd.f32 %v3285, %v3531
    %v3534 = vadd.f32 %v3286, %v3532
    %v3537 = vcombine.high %v3533, %v3533
    %v3539 = vunpack.c.l.s4 1983009808
    %v3540 = vunpack.c.0.s8 %v3539
    %v3541 = vlaneseq
    %v3542 = vshrl.u32 %v3541, 7
    %v3543 = vsub.s32 %v3540, %v3542
    %v3544 = vrot.slane %v3533, %v3543
    %v3546 = vunpack.c.l.s4 1983009808
    %v3547 = vunpack.c.0.s8 %v3546
    %v3548 = vlaneseq
    %v3549 = vshrl.u32 %v3548, 7
    %v3550 = vsub.s32 %v3547, %v3549
    %v3551 = vrot.slane %v3537, %v3550
    %v3552 = vcombine.high %v3544, %v3544
    %v3553 = vcombine.high %v3534, %v3534
    %v3555 = vunpack.c.l.s4 1983009808
    %v3556 = vunpack.c.0.s8 %v3555
    %v3557 = vlaneseq
    %v3558 = vshrl.u32 %v3557, 7
    %v3559 = vsub.s32 %v3556, %v3558
    %v3560 = vrot.slane %v3534, %v3559
    %v3562 = vunpack.c.l.s4 1983009808
    %v3563 = vunpack.c.0.s8 %v3562
    %v3564 = vlaneseq
    %v3565 = vshrl.u32 %v3564, 7
    %v3566 = vsub.s32 %v3563, %v3565
    %v3567 = vrot.slane %v3553, %v3566
    %v3568 = vcombine.high %v3560, %v3560
    %s3569 = scalar_lea.vmem %s15, 32
    %v3570 = vld [vmem:[%s3569] sm:$0xf]
    %v3571 = vld [vmem:[%s3569 + $0x4] sm:$0xf]
    %v3572 = vld [vmem:[%s3569 + $0x8] sm:$0xf]
    %v3573 = vld [vmem:[%s3569 + $0xc] sm:$0xf]
    %v3574 = vld [vmem:[%s3569 + $0x10] sm:$0xf]
    %v3575 = vld [vmem:[%s3569 + $0x14] sm:$0xf]
    %v3576 = vld [vmem:[%s3569 + $0x18] sm:$0xf]
    %v3577 = vld [vmem:[%s3569 + $0x1c] sm:$0xf]
    %v3578 = vcombine.low %v3544, %v3552
    %v3579 = vcombine.low %v3551, %v3560
    %v3581 = vunpack.c.l.s4 1983009808
    %v3582 = vunpack.c.0.s8 %v3581
    %v3583 = vlaneseq
    %v3584 = vshrl.u32 %v3583, 7
    %v3585 = vsub.s32 %v3582, %v3584
    %v3586 = vrot.slane %v3578, %v3585
    %v3588 = vunpack.c.l.s4 1983009808
    %v3589 = vunpack.c.0.s8 %v3588
    %v3590 = vlaneseq
    %v3591 = vshrl.u32 %v3590, 7
    %v3592 = vsub.s32 %v3589, %v3591
    %v3593 = vrot.slane %v3579, %v3592
    %v3594 = vcombine.low %v3586, %v3593
    %v3595 = vcombine.low %v3568, %v3567
    %v3597 = vunpack.c.l.s4 1983009808
    %v3598 = vunpack.c.0.s8 %v3597
    %v3599 = vlaneseq
    %v3600 = vshrl.u32 %v3599, 7
    %v3601 = vsub.s32 %v3598, %v3600
    %v3602 = vrot.slane %v3595, %v3601
    %v3605 = vpack.c.bf16 %v3602, %v3594
    %v3614 = vunpack.c.l.b16 %v3570
    %v3615 = vunpack.c.l.b16 %v3571
    %v3616 = vunpack.c.l.b16 %v3572
    %v3617 = vunpack.c.l.b16 %v3573
    %v3618 = vunpack.c.l.b16 %v3574
    %v3619 = vunpack.c.l.b16 %v3575
    %v3620 = vunpack.c.l.b16 %v3576
    %v3621 = vunpack.c.l.b16 %v3577
    %v3622 = vpack.c.b16 %v3615, %v3614
    %v3623 = vpack.c.b16 %v3617, %v3616
    %v3624 = vpack.c.b16 %v3619, %v3618
    %v3625 = vpack.c.b16 %v3621, %v3620
    %v3631 = vsel %vm709, %v3605, 0
    %3633 = vmatprep.subr.bf16.mxu0 0
    %3634 = vmatpush1.bf16.msra.mxu0 %v3622
    %3635 = vmatprep.subr.bf16.mxu0 0
    %3636 = vmatpush1.bf16.msra.mxu0 %v3623
    %3637 = vmatprep.subr.bf16.mxu0 0
    %3638 = vmatpush1.bf16.msra.mxu0 %v3624
    %3639 = vmatprep.subr.bf16.mxu0 0
    %3640 = vmatpush1.bf16.msra.mxu0 %v3625
    %3641 = vmatprep.subr.bf16.mxu0 0
    %3642 = vmatpush1.bf16.msra.mxu0 0
    %3643 = vmatprep.subr.bf16.mxu0 0
    %3644 = vmatpush1.bf16.msra.mxu0 0
    %3645 = vmatprep.subr.bf16.mxu0 0
    %3646 = vmatpush1.bf16.msra.mxu0 0
    %3647 = vmatprep.subr.bf16.mxu0 0
    %3648 = vmatpush1.bf16.msra.mxu0 0
    %3649 = vmatprep.subr.bf16.mxu0 0
    %3650 = vmatpush1.bf16.msra.mxu0 0
    %3651 = vmatprep.subr.bf16.mxu0 0
    %3652 = vmatpush1.bf16.msra.mxu0 0
    %3653 = vmatprep.subr.bf16.mxu0 0
    %3654 = vmatpush1.bf16.msra.mxu0 0
    %3655 = vmatprep.subr.bf16.mxu0 0
    %3656 = vmatpush1.bf16.msra.mxu0 0
    %3657 = vmatprep.subr.bf16.mxu0 0
    %3658 = vmatpush1.bf16.msra.mxu0 0
    %3659 = vmatprep.subr.bf16.mxu0 0
    %3660 = vmatpush1.bf16.msra.mxu0 0
    %3661 = vmatprep.subr.bf16.mxu0 0
    %3662 = vmatpush1.bf16.msra.mxu0 0
    %3663 = vmatprep.subr.bf16.mxu0 0
    %3664 = vmatpush1.bf16.msra.mxu0 0
    %3665 = vmatprep.mubr.bf16.mxu0 0
    %3666 = vmatmul.mubr.bf16.gmra.mrb[0].mxu0 %v3631
    %v3667 = vpop.f32.mrb[0].mxu0
    %v3668 = vadd.f32 0.0, %v3667
    %v3669 = vpop.f32.mrb[0].mxu0
    %v3670 = vpop.f32.mrb[0].mxu0
    %v3671 = vadd.f32 0.0, %v3670
    %v3672 = vpop.f32.mrb[0].mxu0
    %3673 = vdwg.mxu0
    %v3676 = vcombine.high %v3668, %v3668
    %v3678 = vunpack.c.l.s4 1983009808
    %v3679 = vunpack.c.0.s8 %v3678
    %v3680 = vlaneseq
    %v3681 = vshrl.u32 %v3680, 7
    %v3682 = vsub.s32 %v3679, %v3681
    %v3683 = vrot.slane %v3668, %v3682
    %v3685 = vunpack.c.l.s4 1983009808
    %v3686 = vunpack.c.0.s8 %v3685
    %v3687 = vlaneseq
    %v3688 = vshrl.u32 %v3687, 7
    %v3689 = vsub.s32 %v3686, %v3688
    %v3690 = vrot.slane %v3676, %v3689
    %v3691 = vcombine.high %v3683, %v3683
    %v3692 = vcombine.high %v3690, %v3690
    %v3694 = vunpack.c.l.s4 1983009808
    %v3695 = vunpack.c.0.s8 %v3694
    %v3696 = vlaneseq
    %v3697 = vshrl.u32 %v3696, 7
    %v3698 = vsub.s32 %v3695, %v3697
    %v3699 = vrot.slane %v3671, %v3698
    %v3700 = vcombine.high %v3699, %v3699
    %v3707 = vadd.f32 %v2516, %v3683
    %v3708 = vadd.f32 %v2517, %v3691
    %v3709 = vadd.f32 %v2518, %v3690
    %v3710 = vadd.f32 %v2519, %v3692
    %v3711 = vadd.f32 %v2520, %v3699
    %v3712 = vadd.f32 %v2521, %v3700
    %s3713 = scalar_lea.vmem %s16, 1
    %v3714 = vld [vmem:[%s3713] sm:$0x1]
    %v3716 = vlaneseq
    %v3717 = vshrl.u32 %v3716, 7
    %v3718 = vsub.s32 0, %v3717
    %v3719 = vrot.slane %v3714, %v3718
    %v3720 = vcombine.high %v3719, %v3719
    %v3722 = vunpack.c.l.s4 1983009808
    %v3723 = vunpack.c.0.s8 %v3722
    %v3724 = vlaneseq
    %v3725 = vshrl.u32 %v3724, 7
    %v3726 = vsub.s32 %v3723, %v3725
    %v3727 = vrot.slane %v3719, %v3726
    %v3729 = vunpack.c.l.s4 1983009808
    %v3730 = vunpack.c.0.s8 %v3729
    %v3731 = vlaneseq
    %v3732 = vshrl.u32 %v3731, 7
    %v3733 = vsub.s32 %v3730, %v3732
    %v3734 = vrot.slane %v3720, %v3733
    %v3735 = vcombine.high %v3727, %v3727
    %v3736 = vcombine.high %v3734, %v3734
    %v3741 = vadd.f32 %v3707, %v3727
    %v3742 = vadd.f32 %v3708, %v3735
    %v3743 = vadd.f32 %v3709, %v3734
    %v3744 = vadd.f32 %v3710, %v3736
    %v3745 = vadd.f32 %v3711, %v3727
    %v3746 = vadd.f32 %v3712, %v3735
    %s3747 = scalar_lea.vmem %s17, 1
    %v3748 = vld [vmem:[%s3747] sm:$0x1]
    %s3749 = scalar_lea.vmem %s18, 1
    %v3750 = vld [vmem:[%s3749] sm:$0x1]
    %v3757 = vcombine.low %v3741, %v3742
    %v3758 = vcombine.low %v3743, %v3744
    %v3760 = vunpack.c.l.s4 1983009808
    %v3761 = vunpack.c.0.s8 %v3760
    %v3762 = vlaneseq
    %v3763 = vshrl.u32 %v3762, 7
    %v3764 = vsub.s32 %v3761, %v3763
    %v3765 = vrot.slane %v3757, %v3764
    %v3767 = vunpack.c.l.s4 1983009808
    %v3768 = vunpack.c.0.s8 %v3767
    %v3769 = vlaneseq
    %v3770 = vshrl.u32 %v3769, 7
    %v3771 = vsub.s32 %v3768, %v3770
    %v3772 = vrot.slane %v3758, %v3771
    %v3773 = vcombine.low %v3765, %v3772
    %v3774 = vcombine.low %v3745, %v3746
    %v3776 = vunpack.c.l.s4 1983009808
    %v3777 = vunpack.c.0.s8 %v3776
    %v3778 = vlaneseq
    %v3779 = vshrl.u32 %v3778, 7
    %v3780 = vsub.s32 %v3777, %v3779
    %v3781 = vrot.slane %v3774, %v3780
    %v3784 = vsel %vm709, %v3773, 0.0
    %3785 = vadd.xlane.f32.xlu0 %v3784
    %v3786 = vpop.xlane.xlu0 %3785
    %v3787 = vsel %vm713, %v3781, 0.0
    %3788 = vadd.xlane.f32.xlu0 %v3787
    %v3789 = vpop.xlane.xlu0 %3788
    %v3790 = vmul.f32 %v3786, %v717
    %v3791 = vmul.f32 %v3789, %v717
    %v3795 = vunpack.c.l.s4 269488144
    %v3796 = vunpack.c.0.s8 %v3795
    %v3797 = vlaneseq
    %v3798 = vshrl.u32 %v3797, 7
    %v3799 = vsub.s32 %v3796, %v3798
    %v3800 = vrot.slane %v3790, %v3799
    %v3802 = vunpack.c.l.s4 842150450
    %v3803 = vunpack.c.0.s8 %v3802
    %v3804 = vlaneseq
    %v3805 = vshrl.u32 %v3804, 7
    %v3806 = vsub.s32 %v3803, %v3805
    %v3807 = vrot.slane %v3790, %v3806
    %v3809 = vunpack.c.l.s4 1414812756
    %v3810 = vunpack.c.0.s8 %v3809
    %v3811 = vlaneseq
    %v3812 = vshrl.u32 %v3811, 7
    %v3813 = vsub.s32 %v3810, %v3812
    %v3814 = vrot.slane %v3790, %v3813
    %v3816 = vunpack.c.l.s4 1987475062
    %v3817 = vunpack.c.0.s8 %v3816
    %v3818 = vlaneseq
    %v3819 = vshrl.u32 %v3818, 7
    %v3820 = vsub.s32 %v3817, %v3819
    %v3821 = vrot.slane %v3790, %v3820
    %v3823 = vunpack.c.l.s4 269488144
    %v3824 = vunpack.c.0.s8 %v3823
    %v3825 = vlaneseq
    %v3826 = vshrl.u32 %v3825, 7
    %v3827 = vsub.s32 %v3824, %v3826
    %v3828 = vrot.slane %v3791, %v3827
    %v3830 = vunpack.c.l.s4 842150450
    %v3831 = vunpack.c.0.s8 %v3830
    %v3832 = vlaneseq
    %v3833 = vshrl.u32 %v3832, 7
    %v3834 = vsub.s32 %v3831, %v3833
    %v3835 = vrot.slane %v3791, %v3834
    %v3842 = vsub.f32 %v3741, %v3800
    %v3843 = vsub.f32 %v3742, %v3807
    %v3844 = vsub.f32 %v3743, %v3814
    %v3845 = vsub.f32 %v3744, %v3821
    %v3846 = vsub.f32 %v3745, %v3828
    %v3847 = vsub.f32 %v3746, %v3835
    %v3848 = vmul.f32 %v3842, %v3842
    %v3849 = vmul.f32 %v3843, %v3843
    %v3850 = vmul.f32 %v3844, %v3844
    %v3851 = vmul.f32 %v3845, %v3845
    %v3852 = vmul.f32 %v3846, %v3846
    %v3853 = vmul.f32 %v3847, %v3847
    %v3860 = vcombine.low %v3848, %v3849
    %v3861 = vcombine.low %v3850, %v3851
    %v3863 = vunpack.c.l.s4 1983009808
    %v3864 = vunpack.c.0.s8 %v3863
    %v3865 = vlaneseq
    %v3866 = vshrl.u32 %v3865, 7
    %v3867 = vsub.s32 %v3864, %v3866
    %v3868 = vrot.slane %v3860, %v3867
    %v3870 = vunpack.c.l.s4 1983009808
    %v3871 = vunpack.c.0.s8 %v3870
    %v3872 = vlaneseq
    %v3873 = vshrl.u32 %v3872, 7
    %v3874 = vsub.s32 %v3871, %v3873
    %v3875 = vrot.slane %v3861, %v3874
    %v3876 = vcombine.low %v3868, %v3875
    %v3877 = vcombine.low %v3852, %v3853
    %v3879 = vunpack.c.l.s4 1983009808
    %v3880 = vunpack.c.0.s8 %v3879
    %v3881 = vlaneseq
    %v3882 = vshrl.u32 %v3881, 7
    %v3883 = vsub.s32 %v3880, %v3882
    %v3884 = vrot.slane %v3877, %v3883
    %v3887 = vsel %vm709, %v3876, 0.0
    %3888 = vadd.xlane.f32.xlu0 %v3887
    %v3889 = vpop.xlane.xlu0 %3888
    %v3890 = vsel %vm713, %v3884, 0.0
    %3891 = vadd.xlane.f32.xlu0 %v3890
    %v3892 = vpop.xlane.xlu0 %3891
    %v3893 = vmul.f32 %v3889, %v717
    %v3894 = vmul.f32 %v3892, %v717
    %v3895 = vadd.f32 %v3893, 1e-05
    %v3896 = vadd.f32 %v3894, 1e-05
    %v3897 = vrsqrt.pop %v3895
    %v3898 = vrsqrt.pop %v3896
    %v3902 = vunpack.c.l.s4 269488144
    %v3903 = vunpack.c.0.s8 %v3902
    %v3904 = vlaneseq
    %v3905 = vshrl.u32 %v3904, 7
    %v3906 = vsub.s32 %v3903, %v3905
    %v3907 = vrot.slane %v3897, %v3906
    %v3909 = vunpack.c.l.s4 842150450
    %v3910 = vunpack.c.0.s8 %v3909
    %v3911 = vlaneseq
    %v3912 = vshrl.u32 %v3911, 7
    %v3913 = vsub.s32 %v3910, %v3912
    %v3914 = vrot.slane %v3897, %v3913
    %v3916 = vunpack.c.l.s4 1414812756
    %v3917 = vunpack.c.0.s8 %v3916
    %v3918 = vlaneseq
    %v3919 = vshrl.u32 %v3918, 7
    %v3920 = vsub.s32 %v3917, %v3919
    %v3921 = vrot.slane %v3897, %v3920
    %v3923 = vunpack.c.l.s4 1987475062
    %v3924 = vunpack.c.0.s8 %v3923
    %v3925 = vlaneseq
    %v3926 = vshrl.u32 %v3925, 7
    %v3927 = vsub.s32 %v3924, %v3926
    %v3928 = vrot.slane %v3897, %v3927
    %v3930 = vunpack.c.l.s4 269488144
    %v3931 = vunpack.c.0.s8 %v3930
    %v3932 = vlaneseq
    %v3933 = vshrl.u32 %v3932, 7
    %v3934 = vsub.s32 %v3931, %v3933
    %v3935 = vrot.slane %v3898, %v3934
    %v3937 = vunpack.c.l.s4 842150450
    %v3938 = vunpack.c.0.s8 %v3937
    %v3939 = vlaneseq
    %v3940 = vshrl.u32 %v3939, 7
    %v3941 = vsub.s32 %v3938, %v3940
    %v3942 = vrot.slane %v3898, %v3941
    %v3949 = vmul.f32 %v3842, %v3907
    %v3950 = vmul.f32 %v3843, %v3914
    %v3951 = vmul.f32 %v3844, %v3921
    %v3952 = vmul.f32 %v3845, %v3928
    %v3953 = vmul.f32 %v3846, %v3935
    %v3954 = vmul.f32 %v3847, %v3942
    %v3956 = vlaneseq
    %v3957 = vshrl.u32 %v3956, 7
    %v3958 = vsub.s32 0, %v3957
    %v3959 = vrot.slane %v3748, %v3958
    %v3960 = vcombine.high %v3959, %v3959
    %v3962 = vunpack.c.l.s4 1983009808
    %v3963 = vunpack.c.0.s8 %v3962
    %v3964 = vlaneseq
    %v3965 = vshrl.u32 %v3964, 7
    %v3966 = vsub.s32 %v3963, %v3965
    %v3967 = vrot.slane %v3959, %v3966
    %v3969 = vunpack.c.l.s4 1983009808
    %v3970 = vunpack.c.0.s8 %v3969
    %v3971 = vlaneseq
    %v3972 = vshrl.u32 %v3971, 7
    %v3973 = vsub.s32 %v3970, %v3972
    %v3974 = vrot.slane %v3960, %v3973
    %v3975 = vcombine.high %v3967, %v3967
    %v3976 = vcombine.high %v3974, %v3974
    %v3981 = vmul.f32 %v3949, %v3967
    %v3982 = vmul.f32 %v3950, %v3975
    %v3983 = vmul.f32 %v3951, %v3974
    %v3984 = vmul.f32 %v3952, %v3976
    %v3985 = vmul.f32 %v3953, %v3967
    %v3986 = vmul.f32 %v3954, %v3975
    %v3988 = vlaneseq
    %v3989 = vshrl.u32 %v3988, 7
    %v3990 = vsub.s32 0, %v3989
    %v3991 = vrot.slane %v3750, %v3990
    %v3992 = vcombine.high %v3991, %v3991
    %v3994 = vunpack.c.l.s4 1983009808
    %v3995 = vunpack.c.0.s8 %v3994
    %v3996 = vlaneseq
    %v3997 = vshrl.u32 %v3996, 7
    %v3998 = vsub.s32 %v3995, %v3997
    %v3999 = vrot.slane %v3991, %v3998
    %v4001 = vunpack.c.l.s4 1983009808
    %v4002 = vunpack.c.0.s8 %v4001
    %v4003 = vlaneseq
    %v4004 = vshrl.u32 %v4003, 7
    %v4005 = vsub.s32 %v4002, %v4004
    %v4006 = vrot.slane %v3992, %v4005
    %v4007 = vcombine.high %v3999, %v3999
    %v4008 = vcombine.high %v4006, %v4006
    %v4013 = vadd.f32 %v3981, %v3999
    %v4014 = vadd.f32 %v3982, %v4007
    %v4015 = vadd.f32 %v3983, %v4006
    %v4016 = vadd.f32 %v3984, %v4008
    %v4017 = vadd.f32 %v3985, %v3999
    %v4018 = vadd.f32 %v3986, %v4007
    %s4019 = scalar_lea.vmem %s19, 32
    %v4020 = vld [vmem:[%s4019] sm:$0xf]
    %v4021 = vld [vmem:[%s4019 + $0x4] sm:$0xf]
    %v4022 = vld [vmem:[%s4019 + $0x8] sm:$0xf]
    %v4023 = vld [vmem:[%s4019 + $0xc] sm:$0xf]
    %v4024 = vld [vmem:[%s4019 + $0x10] sm:$0xf]
    %v4025 = vld [vmem:[%s4019 + $0x14] sm:$0xf]
    %v4026 = vld [vmem:[%s4019 + $0x18] sm:$0xf]
    %v4027 = vld [vmem:[%s4019 + $0x1c] sm:$0xf]
    %v4034 = vcombine.low %v4013, %v4014
    %v4035 = vcombine.low %v4015, %v4016
    %v4037 = vunpack.c.l.s4 1983009808
    %v4038 = vunpack.c.0.s8 %v4037
    %v4039 = vlaneseq
    %v4040 = vshrl.u32 %v4039, 7
    %v4041 = vsub.s32 %v4038, %v4040
    %v4042 = vrot.slane %v4034, %v4041
    %v4044 = vunpack.c.l.s4 1983009808
    %v4045 = vunpack.c.0.s8 %v4044
    %v4046 = vlaneseq
    %v4047 = vshrl.u32 %v4046, 7
    %v4048 = vsub.s32 %v4045, %v4047
    %v4049 = vrot.slane %v4035, %v4048
    %v4050 = vcombine.low %v4042, %v4049
    %v4051 = vcombine.low %v4017, %v4018
    %v4053 = vunpack.c.l.s4 1983009808
    %v4054 = vunpack.c.0.s8 %v4053
    %v4055 = vlaneseq
    %v4056 = vshrl.u32 %v4055, 7
    %v4057 = vsub.s32 %v4054, %v4056
    %v4058 = vrot.slane %v4051, %v4057
    %v4061 = vpack.c.bf16 %v4058, %v4050
    %s4062 = scalar_lea.vmem %s20, 1
    %v4063 = vld [vmem:[%s4062] sm:$0x1]
    %v4065 = vlaneseq
    %v4066 = vshrl.u32 %v4065, 7
    %v4067 = vsub.s32 0, %v4066
    %v4068 = vrot.slane %v4063, %v4067
    %v4078 = vunpack.c.l.b16 %v4020
    %v4079 = vunpack.c.l.b16 %v4021
    %v4080 = vunpack.c.l.b16 %v4022
    %v4081 = vunpack.c.l.b16 %v4023
    %v4082 = vunpack.c.l.b16 %v4024
    %v4083 = vunpack.c.l.b16 %v4025
    %v4084 = vunpack.c.l.b16 %v4026
    %v4085 = vunpack.c.l.b16 %v4027
    %v4086 = vpack.c.b16 %v4079, %v4078
    %v4087 = vpack.c.b16 %v4081, %v4080
    %v4088 = vpack.c.b16 %v4083, %v4082
    %v4089 = vpack.c.b16 %v4085, %v4084
    %v4095 = vsel %vm709, %v4061, 0
    %4097 = vmatprep.subr.bf16.mxu0 0
    %4098 = vmatpush1.bf16.msra.mxu0 %v4086
    %4099 = vmatprep.subr.bf16.mxu0 0
    %4100 = vmatpush1.bf16.msra.mxu0 %v4087
    %4101 = vmatprep.subr.bf16.mxu0 0
    %4102 = vmatpush1.bf16.msra.mxu0 %v4088
    %4103 = vmatprep.subr.bf16.mxu0 0
    %4104 = vmatpush1.bf16.msra.mxu0 %v4089
    %4105 = vmatprep.subr.bf16.mxu0 0
    %4106 = vmatpush1.bf16.msra.mxu0 0
    %4107 = vmatprep.subr.bf16.mxu0 0
    %4108 = vmatpush1.bf16.msra.mxu0 0
    %4109 = vmatprep.subr.bf16.mxu0 0
    %4110 = vmatpush1.bf16.msra.mxu0 0
    %4111 = vmatprep.subr.bf16.mxu0 0
    %4112 = vmatpush1.bf16.msra.mxu0 0
    %4113 = vmatprep.subr.bf16.mxu0 0
    %4114 = vmatpush1.bf16.msra.mxu0 0
    %4115 = vmatprep.subr.bf16.mxu0 0
    %4116 = vmatpush1.bf16.msra.mxu0 0
    %4117 = vmatprep.subr.bf16.mxu0 0
    %4118 = vmatpush1.bf16.msra.mxu0 0
    %4119 = vmatprep.subr.bf16.mxu0 0
    %4120 = vmatpush1.bf16.msra.mxu0 0
    %4121 = vmatprep.subr.bf16.mxu0 0
    %4122 = vmatpush1.bf16.msra.mxu0 0
    %4123 = vmatprep.subr.bf16.mxu0 0
    %4124 = vmatpush1.bf16.msra.mxu0 0
    %4125 = vmatprep.subr.bf16.mxu0 0
    %4126 = vmatpush1.bf16.msra.mxu0 0
    %4127 = vmatprep.subr.bf16.mxu0 0
    %4128 = vmatpush1.bf16.msra.mxu0 0
    %4129 = vmatprep.mubr.bf16.mxu0 0
    %4130 = vmatmul.mubr.bf16.gmra.mrb[0].mxu0 %v4095
    %v4131 = vpop.f32.mrb[0].mxu0
    %v4132 = vadd.f32 %v4068, %v4131
    %v4133 = vpop.f32.mrb[0].mxu0
    %v4134 = vpop.f32.mrb[0].mxu0
    %v4135 = vadd.f32 %v4068, %v4134
    %v4136 = vpop.f32.mrb[0].mxu0
    %4137 = vdwg.mxu0
    %v4138 = vmul.f32 %v4132, 0.5
    %v4139 = vmul.f32 %v4135, 0.5
    %v4140 = vmul.f32 %v4132, 0.044715
    %v4141 = vmul.f32 %v4135, 0.044715
    %v4142 = vmul.f32 %v4140, %v4132
    %v4143 = vmul.f32 %v4141, %v4135
    %v4144 = vmul.f32 %v4142, %v4132
    %v4145 = vmul.f32 %v4143, %v4135
    %v4146 = vadd.f32 %v4132, %v4144
    %v4147 = vadd.f32 %v4135, %v4145
    %v4148 = vmul.f32 %v4146, 0.7978846
    %v4149 = vmul.f32 %v4147, 0.7978846
    %v4150 = vtanh.pop %v4148
    %v4151 = vtanh.pop %v4149
    %v4152 = vadd.f32 %v4150, 1.0
    %v4153 = vadd.f32 %v4151, 1.0
    %v4154 = vmul.f32 %v4138, %v4152
    %v4155 = vmul.f32 %v4139, %v4153
    %s4156 = scalar_lea.vmem %s21, 64
    %v4157 = vld [vmem:[%s4156] sm:$0xf]
    %v4158 = vld [vmem:[%s4156 + $0x4] sm:$0xf]
    %v4159 = vld [vmem:[%s4156 + $0x8] sm:$0xf]
    %v4160 = vld [vmem:[%s4156 + $0xc] sm:$0xf]
    %v4161 = vld [vmem:[%s4156 + $0x10] sm:$0xf]
    %v4162 = vld [vmem:[%s4156 + $0x14] sm:$0xf]
    %v4163 = vld [vmem:[%s4156 + $0x18] sm:$0xf]
    %v4164 = vld [vmem:[%s4156 + $0x1c] sm:$0xf]
    %v4165 = vld [vmem:[%s4156 + $0x20] sm:$0xf]
    %v4166 = vld [vmem:[%s4156 + $0x24] sm:$0xf]
    %v4167 = vld [vmem:[%s4156 + $0x28] sm:$0xf]
    %v4168 = vld [vmem:[%s4156 + $0x2c] sm:$0xf]
    %v4169 = vld [vmem:[%s4156 + $0x30] sm:$0xf]
    %v4170 = vld [vmem:[%s4156 + $0x34] sm:$0xf]
    %v4171 = vld [vmem:[%s4156 + $0x38] sm:$0xf]
    %v4172 = vld [vmem:[%s4156 + $0x3c] sm:$0xf]
    %v4173 = vpack.c.bf16 %v4155, %v4154
    %v4190 = vunpack.c.l.b16 %v4157
    %v4191 = vunpack.c.l.b16 %v4158
    %v4192 = vunpack.c.l.b16 %v4159
    %v4193 = vunpack.c.l.b16 %v4160
    %v4194 = vunpack.c.l.b16 %v4161
    %v4195 = vunpack.c.l.b16 %v4162
    %v4196 = vunpack.c.l.b16 %v4163
    %v4197 = vunpack.c.l.b16 %v4164
    %v4198 = vunpack.c.l.b16 %v4165
    %v4199 = vunpack.c.l.b16 %v4166
    %v4200 = vunpack.c.l.b16 %v4167
    %v4201 = vunpack.c.l.b16 %v4168
    %v4202 = vunpack.c.l.b16 %v4169
    %v4203 = vunpack.c.l.b16 %v4170
    %v4204 = vunpack.c.l.b16 %v4171
    %v4205 = vunpack.c.l.b16 %v4172
    %v4206 = vpack.c.b16 %v4191, %v4190
    %v4207 = vpack.c.b16 %v4193, %v4192
    %v4208 = vpack.c.b16 %v4195, %v4194
    %v4209 = vpack.c.b16 %v4197, %v4196
    %v4210 = vpack.c.b16 %v4199, %v4198
    %v4211 = vpack.c.b16 %v4201, %v4200
    %v4212 = vpack.c.b16 %v4203, %v4202
    %v4213 = vpack.c.b16 %v4205, %v4204
    %4222 = vmatprep.subr.bf16.mxu0 0
    %4223 = vmatpush1.bf16.msra.mxu0 %v4206
    %4224 = vmatprep.subr.bf16.mxu0 0
    %4225 = vmatpush1.bf16.msra.mxu0 %v4207
    %4226 = vmatprep.subr.bf16.mxu0 0
    %4227 = vmatpush1.bf16.msra.mxu0 %v4208
    %4228 = vmatprep.subr.bf16.mxu0 0
    %4229 = vmatpush1.bf16.msra.mxu0 %v4209
    %4230 = vmatprep.subr.bf16.mxu0 0
    %4231 = vmatpush1.bf16.msra.mxu0 %v4210
    %4232 = vmatprep.subr.bf16.mxu0 0
    %4233 = vmatpush1.bf16.msra.mxu0 %v4211
    %4234 = vmatprep.subr.bf16.mxu0 0
    %4235 = vmatpush1.bf16.msra.mxu0 %v4212
    %4236 = vmatprep.subr.bf16.mxu0 0
    %4237 = vmatpush1.bf16.msra.mxu0 %v4213
    %4238 = vmatprep.subr.bf16.mxu0 0
    %4239 = vmatpush1.bf16.msra.mxu0 0
    %4240 = vmatprep.subr.bf16.mxu0 0
    %4241 = vmatpush1.bf16.msra.mxu0 0
    %4242 = vmatprep.subr.bf16.mxu0 0
    %4243 = vmatpush1.bf16.msra.mxu0 0
    %4244 = vmatprep.subr.bf16.mxu0 0
    %4245 = vmatpush1.bf16.msra.mxu0 0
    %4246 = vmatprep.subr.bf16.mxu0 0
    %4247 = vmatpush1.bf16.msra.mxu0 0
    %4248 = vmatprep.subr.bf16.mxu0 0
    %4249 = vmatpush1.bf16.msra.mxu0 0
    %4250 = vmatprep.subr.bf16.mxu0 0
    %4251 = vmatpush1.bf16.msra.mxu0 0
    %4252 = vmatprep.subr.bf16.mxu0 0
    %4253 = vmatpush1.bf16.msra.mxu0 0
    %4254 = vmatprep.mubr.bf16.mxu0 0
    %4255 = vmatmul.mubr.bf16.gmra.mrb[0].mxu0 %v4173
    %v4256 = vpop.f32.mrb[0].mxu0
    %v4257 = vadd.f32 0.0, %v4256
    %v4258 = vpop.f32.mrb[0].mxu0
    %v4259 = vpop.f32.mrb[0].mxu0
    %v4260 = vadd.f32 0.0, %v4259
    %v4261 = vpop.f32.mrb[0].mxu0
    %4262 = vdwg.mxu0
    %v4265 = vcombine.high %v4257, %v4257
    %v4267 = vunpack.c.l.s4 1983009808
    %v4268 = vunpack.c.0.s8 %v4267
    %v4269 = vlaneseq
    %v4270 = vshrl.u32 %v4269, 7
    %v4271 = vsub.s32 %v4268, %v4270
    %v4272 = vrot.slane %v4257, %v4271
    %v4274 = vunpack.c.l.s4 1983009808
    %v4275 = vunpack.c.0.s8 %v4274
    %v4276 = vlaneseq
    %v4277 = vshrl.u32 %v4276, 7
    %v4278 = vsub.s32 %v4275, %v4277
    %v4279 = vrot.slane %v4265, %v4278
    %v4280 = vcombine.high %v4272, %v4272
    %v4281 = vcombine.high %v4279, %v4279
    %v4283 = vunpack.c.l.s4 1983009808
    %v4284 = vunpack.c.0.s8 %v4283
    %v4285 = vlaneseq
    %v4286 = vshrl.u32 %v4285, 7
    %v4287 = vsub.s32 %v4284, %v4286
    %v4288 = vrot.slane %v4260, %v4287
    %v4289 = vcombine.high %v4288, %v4288
    %v4296 = vadd.f32 %v3741, %v4272
    %v4297 = vadd.f32 %v3742, %v4280
    %v4298 = vadd.f32 %v3743, %v4279
    %v4299 = vadd.f32 %v3744, %v4281
    %v4300 = vadd.f32 %v3745, %v4288
    %v4301 = vadd.f32 %v3746, %v4289
    %s4302 = scalar_lea.vmem %s22, 1
    %v4303 = vld [vmem:[%s4302] sm:$0x1]
    %v4305 = vlaneseq
    %v4306 = vshrl.u32 %v4305, 7
    %v4307 = vsub.s32 0, %v4306
    %v4308 = vrot.slane %v4303, %v4307
    %v4309 = vcombine.high %v4308, %v4308
    %v4311 = vunpack.c.l.s4 1983009808
    %v4312 = vunpack.c.0.s8 %v4311
    %v4313 = vlaneseq
    %v4314 = vshrl.u32 %v4313, 7
    %v4315 = vsub.s32 %v4312, %v4314
    %v4316 = vrot.slane %v4308, %v4315
    %v4318 = vunpack.c.l.s4 1983009808
    %v4319 = vunpack.c.0.s8 %v4318
    %v4320 = vlaneseq
    %v4321 = vshrl.u32 %v4320, 7
    %v4322 = vsub.s32 %v4319, %v4321
    %v4323 = vrot.slane %v4309, %v4322
    %v4324 = vcombine.high %v4316, %v4316
    %v4325 = vcombine.high %v4323, %v4323
    %v4330 = vadd.f32 %v4296, %v4316
    %v4331 = vadd.f32 %v4297, %v4324
    %v4332 = vadd.f32 %v4298, %v4323
    %v4333 = vadd.f32 %v4299, %v4325
    %v4334 = vadd.f32 %v4300, %v4316
    %v4335 = vadd.f32 %v4301, %v4324
    %v4336 = vld [vmem:[%s23] sm:$0x1]
    %v4337 = vld [vmem:[%s24] sm:$0x1]
    %v4344 = vcombine.low %v4330, %v4331
    %v4345 = vcombine.low %v4332, %v4333
    %v4347 = vunpack.c.l.s4 1983009808
    %v4348 = vunpack.c.0.s8 %v4347
    %v4349 = vlaneseq
    %v4350 = vshrl.u32 %v4349, 7
    %v4351 = vsub.s32 %v4348, %v4350
    %v4352 = vrot.slane %v4344, %v4351
    %v4354 = vunpack.c.l.s4 1983009808
    %v4355 = vunpack.c.0.s8 %v4354
    %v4356 = vlaneseq
    %v4357 = vshrl.u32 %v4356, 7
    %v4358 = vsub.s32 %v4355, %v4357
    %v4359 = vrot.slane %v4345, %v4358
    %v4360 = vcombine.low %v4352, %v4359
    %v4361 = vcombine.low %v4334, %v4335
    %v4363 = vunpack.c.l.s4 1983009808
    %v4364 = vunpack.c.0.s8 %v4363
    %v4365 = vlaneseq
    %v4366 = vshrl.u32 %v4365, 7
    %v4367 = vsub.s32 %v4364, %v4366
    %v4368 = vrot.slane %v4361, %v4367
    %v4371 = vsel %vm709, %v4360, 0.0
    %4372 = vadd.xlane.f32.xlu0 %v4371
    %v4373 = vpop.xlane.xlu0 %4372
    %v4374 = vsel %vm713, %v4368, 0.0
    %4375 = vadd.xlane.f32.xlu0 %v4374
    %v4376 = vpop.xlane.xlu0 %4375
    %v4377 = vmul.f32 %v4373, %v717
    %v4378 = vmul.f32 %v4376, %v717
    %v4382 = vunpack.c.l.s4 269488144
    %v4383 = vunpack.c.0.s8 %v4382
    %v4384 = vlaneseq
    %v4385 = vshrl.u32 %v4384, 7
    %v4386 = vsub.s32 %v4383, %v4385
    %v4387 = vrot.slane %v4377, %v4386
    %v4389 = vunpack.c.l.s4 842150450
    %v4390 = vunpack.c.0.s8 %v4389
    %v4391 = vlaneseq
    %v4392 = vshrl.u32 %v4391, 7
    %v4393 = vsub.s32 %v4390, %v4392
    %v4394 = vrot.slane %v4377, %v4393
    %v4396 = vunpack.c.l.s4 1414812756
    %v4397 = vunpack.c.0.s8 %v4396
    %v4398 = vlaneseq
    %v4399 = vshrl.u32 %v4398, 7
    %v4400 = vsub.s32 %v4397, %v4399
    %v4401 = vrot.slane %v4377, %v4400
    %v4403 = vunpack.c.l.s4 1987475062
    %v4404 = vunpack.c.0.s8 %v4403
    %v4405 = vlaneseq
    %v4406 = vshrl.u32 %v4405, 7
    %v4407 = vsub.s32 %v4404, %v4406
    %v4408 = vrot.slane %v4377, %v4407
    %v4410 = vunpack.c.l.s4 269488144
    %v4411 = vunpack.c.0.s8 %v4410
    %v4412 = vlaneseq
    %v4413 = vshrl.u32 %v4412, 7
    %v4414 = vsub.s32 %v4411, %v4413
    %v4415 = vrot.slane %v4378, %v4414
    %v4417 = vunpack.c.l.s4 842150450
    %v4418 = vunpack.c.0.s8 %v4417
    %v4419 = vlaneseq
    %v4420 = vshrl.u32 %v4419, 7
    %v4421 = vsub.s32 %v4418, %v4420
    %v4422 = vrot.slane %v4378, %v4421
    %v4429 = vsub.f32 %v4330, %v4387
    %v4430 = vsub.f32 %v4331, %v4394
    %v4431 = vsub.f32 %v4332, %v4401
    %v4432 = vsub.f32 %v4333, %v4408
    %v4433 = vsub.f32 %v4334, %v4415
    %v4434 = vsub.f32 %v4335, %v4422
    %v4435 = vmul.f32 %v4429, %v4429
    %v4436 = vmul.f32 %v4430, %v4430
    %v4437 = vmul.f32 %v4431, %v4431
    %v4438 = vmul.f32 %v4432, %v4432
    %v4439 = vmul.f32 %v4433, %v4433
    %v4440 = vmul.f32 %v4434, %v4434
    %v4447 = vcombine.low %v4435, %v4436
    %v4448 = vcombine.low %v4437, %v4438
    %v4450 = vunpack.c.l.s4 1983009808
    %v4451 = vunpack.c.0.s8 %v4450
    %v4452 = vlaneseq
    %v4453 = vshrl.u32 %v4452, 7
    %v4454 = vsub.s32 %v4451, %v4453
    %v4455 = vrot.slane %v4447, %v4454
    %v4457 = vunpack.c.l.s4 1983009808
    %v4458 = vunpack.c.0.s8 %v4457
    %v4459 = vlaneseq
    %v4460 = vshrl.u32 %v4459, 7
    %v4461 = vsub.s32 %v4458, %v4460
    %v4462 = vrot.slane %v4448, %v4461
    %v4463 = vcombine.low %v4455, %v4462
    %v4464 = vcombine.low %v4439, %v4440
    %v4466 = vunpack.c.l.s4 1983009808
    %v4467 = vunpack.c.0.s8 %v4466
    %v4468 = vlaneseq
    %v4469 = vshrl.u32 %v4468, 7
    %v4470 = vsub.s32 %v4467, %v4469
    %v4471 = vrot.slane %v4464, %v4470
    %v4474 = vsel %vm709, %v4463, 0.0
    %4475 = vadd.xlane.f32.xlu0 %v4474
    %v4476 = vpop.xlane.xlu0 %4475
    %v4477 = vsel %vm713, %v4471, 0.0
    %4478 = vadd.xlane.f32.xlu0 %v4477
    %v4479 = vpop.xlane.xlu0 %4478
    %v4480 = vmul.f32 %v4476, %v717
    %v4481 = vmul.f32 %v4479, %v717
    %v4482 = vadd.f32 %v4480, 1e-05
    %v4483 = vadd.f32 %v4481, 1e-05
    %v4484 = vrsqrt.pop %v4482
    %v4485 = vrsqrt.pop %v4483
    %v4489 = vunpack.c.l.s4 269488144
    %v4490 = vunpack.c.0.s8 %v4489
    %v4491 = vlaneseq
    %v4492 = vshrl.u32 %v4491, 7
    %v4493 = vsub.s32 %v4490, %v4492
    %v4494 = vrot.slane %v4484, %v4493
    %v4496 = vunpack.c.l.s4 842150450
    %v4497 = vunpack.c.0.s8 %v4496
    %v4498 = vlaneseq
    %v4499 = vshrl.u32 %v4498, 7
    %v4500 = vsub.s32 %v4497, %v4499
    %v4501 = vrot.slane %v4484, %v4500
    %v4503 = vunpack.c.l.s4 1414812756
    %v4504 = vunpack.c.0.s8 %v4503
    %v4505 = vlaneseq
    %v4506 = vshrl.u32 %v4505, 7
    %v4507 = vsub.s32 %v4504, %v4506
    %v4508 = vrot.slane %v4484, %v4507
    %v4510 = vunpack.c.l.s4 1987475062
    %v4511 = vunpack.c.0.s8 %v4510
    %v4512 = vlaneseq
    %v4513 = vshrl.u32 %v4512, 7
    %v4514 = vsub.s32 %v4511, %v4513
    %v4515 = vrot.slane %v4484, %v4514
    %v4517 = vunpack.c.l.s4 269488144
    %v4518 = vunpack.c.0.s8 %v4517
    %v4519 = vlaneseq
    %v4520 = vshrl.u32 %v4519, 7
    %v4521 = vsub.s32 %v4518, %v4520
    %v4522 = vrot.slane %v4485, %v4521
    %v4524 = vunpack.c.l.s4 842150450
    %v4525 = vunpack.c.0.s8 %v4524
    %v4526 = vlaneseq
    %v4527 = vshrl.u32 %v4526, 7
    %v4528 = vsub.s32 %v4525, %v4527
    %v4529 = vrot.slane %v4485, %v4528
    %v4536 = vmul.f32 %v4429, %v4494
    %v4537 = vmul.f32 %v4430, %v4501
    %v4538 = vmul.f32 %v4431, %v4508
    %v4539 = vmul.f32 %v4432, %v4515
    %v4540 = vmul.f32 %v4433, %v4522
    %v4541 = vmul.f32 %v4434, %v4529
    %v4543 = vlaneseq
    %v4544 = vshrl.u32 %v4543, 7
    %v4545 = vsub.s32 0, %v4544
    %v4546 = vrot.slane %v4336, %v4545
    %v4547 = vcombine.high %v4546, %v4546
    %v4549 = vunpack.c.l.s4 1983009808
    %v4550 = vunpack.c.0.s8 %v4549
    %v4551 = vlaneseq
    %v4552 = vshrl.u32 %v4551, 7
    %v4553 = vsub.s32 %v4550, %v4552
    %v4554 = vrot.slane %v4546, %v4553
    %v4556 = vunpack.c.l.s4 1983009808
    %v4557 = vunpack.c.0.s8 %v4556
    %v4558 = vlaneseq
    %v4559 = vshrl.u32 %v4558, 7
    %v4560 = vsub.s32 %v4557, %v4559
    %v4561 = vrot.slane %v4547, %v4560
    %v4562 = vcombine.high %v4554, %v4554
    %v4563 = vcombine.high %v4561, %v4561
    %v4568 = vmul.f32 %v4536, %v4554
    %v4569 = vmul.f32 %v4537, %v4562
    %v4570 = vmul.f32 %v4538, %v4561
    %v4571 = vmul.f32 %v4539, %v4563
    %v4572 = vmul.f32 %v4540, %v4554
    %v4573 = vmul.f32 %v4541, %v4562
    %v4575 = vlaneseq
    %v4576 = vshrl.u32 %v4575, 7
    %v4577 = vsub.s32 0, %v4576
    %v4578 = vrot.slane %v4337, %v4577
    %v4579 = vcombine.high %v4578, %v4578
    %v4581 = vunpack.c.l.s4 1983009808
    %v4582 = vunpack.c.0.s8 %v4581
    %v4583 = vlaneseq
    %v4584 = vshrl.u32 %v4583, 7
    %v4585 = vsub.s32 %v4582, %v4584
    %v4586 = vrot.slane %v4578, %v4585
    %v4588 = vunpack.c.l.s4 1983009808
    %v4589 = vunpack.c.0.s8 %v4588
    %v4590 = vlaneseq
    %v4591 = vshrl.u32 %v4590, 7
    %v4592 = vsub.s32 %v4589, %v4591
    %v4593 = vrot.slane %v4579, %v4592
    %v4594 = vcombine.high %v4586, %v4586
    %v4595 = vcombine.high %v4593, %v4593
    %v4600 = vadd.f32 %v4568, %v4586
    %v4601 = vadd.f32 %v4569, %v4594
    %v4602 = vadd.f32 %v4570, %v4593
    %v4603 = vadd.f32 %v4571, %v4595
    %v4604 = vadd.f32 %v4572, %v4586
    %v4605 = vadd.f32 %v4573, %v4594
    %v4606 = vld [vmem:[%s25] sm:$0xf]
    %v4607 = vld [vmem:[%s25 + $0x4] sm:$0xf]
    %v4608 = vld [vmem:[%s25 + $0x8] sm:$0xf]
    %v4609 = vld [vmem:[%s25 + $0xc] sm:$0xf]
    %v4610 = vld [vmem:[%s25 + $0x10] sm:$0xf]
    %v4611 = vld [vmem:[%s25 + $0x14] sm:$0xf]
    %v4612 = vld [vmem:[%s25 + $0x18] sm:$0xf]
    %v4613 = vld [vmem:[%s25 + $0x1c] sm:$0xf]
    %v4620 = vcombine.low %v4600, %v4601
    %v4621 = vcombine.low %v4602, %v4603
    %v4623 = vunpack.c.l.s4 1983009808
    %v4624 = vunpack.c.0.s8 %v4623
    %v4625 = vlaneseq
    %v4626 = vshrl.u32 %v4625, 7
    %v4627 = vsub.s32 %v4624, %v4626
    %v4628 = vrot.slane %v4620, %v4627
    %v4630 = vunpack.c.l.s4 1983009808
    %v4631 = vunpack.c.0.s8 %v4630
    %v4632 = vlaneseq
    %v4633 = vshrl.u32 %v4632, 7
    %v4634 = vsub.s32 %v4631, %v4633
    %v4635 = vrot.slane %v4621, %v4634
    %v4636 = vcombine.low %v4628, %v4635
    %v4637 = vcombine.low %v4604, %v4605
    %v4639 = vunpack.c.l.s4 1983009808
    %v4640 = vunpack.c.0.s8 %v4639
    %v4641 = vlaneseq
    %v4642 = vshrl.u32 %v4641, 7
    %v4643 = vsub.s32 %v4640, %v4642
    %v4644 = vrot.slane %v4637, %v4643
    %v4647 = vpack.c.bf16 %v4644, %v4636
    %v4648 = vld [vmem:[%s26] sm:$0x1]
    %v4650 = vlaneseq
    %v4651 = vshrl.u32 %v4650, 7
    %v4652 = vsub.s32 0, %v4651
    %v4653 = vrot.slane %v4648, %v4652
    %v4663 = vunpack.c.l.b16 %v4606
    %v4664 = vunpack.c.l.b16 %v4607
    %v4665 = vunpack.c.l.b16 %v4608
    %v4666 = vunpack.c.l.b16 %v4609
    %v4667 = vunpack.c.l.b16 %v4610
    %v4668 = vunpack.c.l.b16 %v4611
    %v4669 = vunpack.c.l.b16 %v4612
    %v4670 = vunpack.c.l.b16 %v4613
    %v4671 = vpack.c.b16 %v4664, %v4663
    %v4672 = vpack.c.b16 %v4666, %v4665
    %v4673 = vpack.c.b16 %v4668, %v4667
    %v4674 = vpack.c.b16 %v4670, %v4669
    %v4680 = vsel %vm709, %v4647, 0
    %4682 = vmatprep.subr.bf16.mxu0 0
    %4683 = vmatpush1.bf16.msra.mxu0 %v4671
    %4684 = vmatprep.subr.bf16.mxu0 0
    %4685 = vmatpush1.bf16.msra.mxu0 %v4672
    %4686 = vmatprep.subr.bf16.mxu0 0
    %4687 = vmatpush1.bf16.msra.mxu0 %v4673
    %4688 = vmatprep.subr.bf16.mxu0 0
    %4689 = vmatpush1.bf16.msra.mxu0 %v4674
    %4690 = vmatprep.subr.bf16.mxu0 0
    %4691 = vmatpush1.bf16.msra.mxu0 0
    %4692 = vmatprep.subr.bf16.mxu0 0
    %4693 = vmatpush1.bf16.msra.mxu0 0
    %4694 = vmatprep.subr.bf16.mxu0 0
    %4695 = vmatpush1.bf16.msra.mxu0 0
    %4696 = vmatprep.subr.bf16.mxu0 0
    %4697 = vmatpush1.bf16.msra.mxu0 0
    %4698 = vmatprep.subr.bf16.mxu0 0
    %4699 = vmatpush1.bf16.msra.mxu0 0
    %4700 = vmatprep.subr.bf16.mxu0 0
    %4701 = vmatpush1.bf16.msra.mxu0 0
    %4702 = vmatprep.subr.bf16.mxu0 0
    %4703 = vmatpush1.bf16.msra.mxu0 0
    %4704 = vmatprep.subr.bf16.mxu0 0
    %4705 = vmatpush1.bf16.msra.mxu0 0
    %4706 = vmatprep.subr.bf16.mxu0 0
    %4707 = vmatpush1.bf16.msra.mxu0 0
    %4708 = vmatprep.subr.bf16.mxu0 0
    %4709 = vmatpush1.bf16.msra.mxu0 0
    %4710 = vmatprep.subr.bf16.mxu0 0
    %4711 = vmatpush1.bf16.msra.mxu0 0
    %4712 = vmatprep.subr.bf16.mxu0 0
    %4713 = vmatpush1.bf16.msra.mxu0 0
    %4714 = vmatprep.mubr.bf16.mxu0 0
    %4715 = vmatmul.mubr.bf16.gmra.mrb[0].mxu0 %v4680
    %v4716 = vpop.f32.mrb[0].mxu0
    %v4717 = vadd.f32 %v4653, %v4716
    %v4718 = vpop.f32.mrb[0].mxu0
    %v4719 = vpop.f32.mrb[0].mxu0
    %v4720 = vadd.f32 %v4653, %v4719
    %v4721 = vpop.f32.mrb[0].mxu0
    %4722 = vdwg.mxu0
    %v4723 = vsub.f32 %v4717, %v373
    %v4724 = vsub.f32 %v4720, %v374
    %v4725 = vmul.f32 %v4723, %v4723
    %v4726 = vmul.f32 %v4724, %v4724
    %v4727 = vmul.f32 %v4725, -10.0
    %v4728 = vmul.f32 %v4726, -10.0
    %v4729 = vmul.f32 %v4727, 1.442695
    %v4730 = vpow.pop %v4729
    %v4731 = vmul.f32 %v4728, 1.442695
    %v4732 = vpow.pop %v4731
    %v4733 = vsub.f32 1.0, %v4730
    %v4734 = vsub.f32 1.0, %v4732
    %v4735 = vpow.f32 %v4733, 2.0
    %v4736 = vpow.f32 %v4734, 2.0
    %v4737 = vmul.f32 %v4735, %v4725
    %v4738 = vmul.f32 %v4736, %v4726
    %v4739 = vsel %vm177, %v4737, 0.0
    %v4740 = vsel %vm178, %v4738, 0.0
    %v4741 = vsel %vm476, %v4739, 0.0
    %vm4742 = vcmask 257024
    %v4743 = vsel %vm4742, %v4740, 0.0
    %v4744 = vadd.f32 %v4741, %v4743
    %4745 = vadd.xlane.f32.xlu0 %v4744
    %v4746 = vpop.xlane.xlu0 %4745
    %v4747 = vrot.slane %v4746, 4
    %v4748 = vadd.f32 %v4746, %v4747
    %v4749 = vrot.slane %v4748, 2
    %v4750 = vadd.f32 %v4748, %v4749
    %v4751 = vrot.slane %v4750, 1
    %v4752 = vadd.f32 %v4750, %v4751
    %s4753 = vtos %v4752
    %v4754 = vrcp.pop 256.0
    %s4755 = vtos %v4754
    %s4756 = smul.f32 %s4753, %s4755
    %s4757 = scalar_lea.smem [#allocation13], 0
    %4758 = sst [smem:[%s4757]] %s4756
    // Predicated region
    $region134: #{tpu_custom_call.1} parent=1 // pred_check
      _
    $region135: #{tpu_custom_call.1} parent=1 // pred_check_branch
      %4760 = sbr.rel (0) target = $region137
    $region136: #{tpu_custom_call.1} parent=1 // pred_region
      %s4762 = ssub.s32 16, 16
      %4763 = vsyncadd [#allocation5], %s4762
      %4766 = dma.smem_to_hbm [#allocation13], 16, %s27, [#allocation5]
    $region137: #{tpu_custom_call.1} parent=1 // pred_fallthru
      _
    // Predicated region
    $region138: #{tpu_custom_call.1} parent=1 // pred_check
      _
    $region139: #{tpu_custom_call.1} parent=1 // pred_check_branch
      %4768 = sbr.rel (0) target = $region141
    $region140: #{tpu_custom_call.1} parent=1 // pred_region
      %4769 = dma.done [#allocation5], 16
    $region141: #{tpu_custom_call.1} parent=1 // pred_fallthru
      _
    %4770 = sfence
    %4771 = vsyncpa [#allocation3], 1
    %4772 = vsyncpa [#allocation8], 1
    %4773 = vsyncpa [#allocation11], 1
    %4774 = vsyncpa [#allocation4], 1
    %4775 = vsyncpa [#allocation5], 1

</llo_original>
